<compile_context>
chip_gen: v7x
topology: tpu7x:2x2x1
jax: 0.10.0
libtpu: 0.0.40
codegen_flags: <defaults>
</compile_context>

<pallas_src>
import functools

import numpy as np
import jax
import jax.numpy as jnp
from jax import lax
from jax.experimental import pallas as pl
from jax.experimental.pallas import tpu as pltpu


def _round_up(x, m):
    return (x + m - 1) // m * m


def _vmem_limit_bytes():
    # Per-generation VMEM budget (~75% of capacity): 96 MiB on v5e/v6e, 48 MiB on
    # v7x.  Falls back to a conservative 48 MiB if the query is unavailable.
    try:
        cap = int(pltpu.get_tpu_info().vmem_capacity_bytes)
    except Exception:
        cap = 64 * 1024 * 1024
    return max(32 * 1024 * 1024, cap * 3 // 4)


# --------------------------------------------------------------------------
# Pallas kernel: grid = (batch_block, decoder_time_chunk)
# --------------------------------------------------------------------------
def gru_autoencoder_kernel(
    x_ref,                                   # (T, BT, Dp)  time-major, padded, compute dtype
    w_ih_e_ref, w_hh_e_ref,                  # (Dp, 3Hp), (Hp, 3Hp)   [compute dtype]
    b_e_gi_ref, b_e_hn_ref,                  # (1, 3Hp) folded, (1, Hp) b_hh_n   [f32]
    w_ih_d_ref, w_hh_d_ref,                  # (Hp, 3Hp), (Hp, 3Hp)
    b_d_gi_ref, b_d_hn_ref,                  # (1, 3Hp), (1, Hp)
    w_out_ref, b_out_ref,                    # (Hp, Dp), (1, Dp)
    out_ref,                                 # (TC, BT, Dp)  one decoder time chunk
    gi_enc_ref,                              # scratch (T, BT, 3Hp) f32
    gi_dec_ref,                              # scratch (BT, 3Hp) f32 (loop-invariant)
    h_carry_ref,                             # scratch (BT, Hp) f32 (decoder state across chunks)
    h_chunk_ref,                             # scratch (TC, BT, Hp) compute dtype
    *, compute_dtype, unroll_enc, unroll_dec,
):
    t_in, bt, dp = x_ref.shape
    tc = out_ref.shape[0]
    hp = h_carry_ref.shape[-1]
    cdt = compute_dtype
    f32 = jnp.float32

    def gates(gi, gh, b_hn, h):
        # PyTorch GRU gate order (r, z, n); every slice is 128-lane aligned.
        r = jax.nn.sigmoid(gi[:, 0:hp] + gh[:, 0:hp])
        z = jax.nn.sigmoid(gi[:, hp:2 * hp] + gh[:, hp:2 * hp])
        n = jnp.tanh(gi[:, 2 * hp:3 * hp] + r * (gh[:, 2 * hp:3 * hp] + b_hn))
        return (1.0 - z) * n + z * h

    # ---- first time chunk of every batch block: run the encoder once, cache
    # ---- the loop-invariant decoder input gates, reset the decoder state. ----
    @pl.when(pl.program_id(1) == 0)
    def _():
        w_hh_e = w_hh_e_ref[...]
        b_e_hn = jnp.broadcast_to(b_e_hn_ref[...], (bt, hp))

        # Encoder input projection for ALL timesteps: one big MXU matmul.
        x_flat = x_ref[...].reshape(t_in * bt, dp)
        gi_all = (jnp.dot(x_flat, w_ih_e_ref[...], preferred_element_type=f32)
                  + b_e_gi_ref[...])                      # bias (r,z folded) included
        gi_enc_ref[...] = gi_all.reshape(t_in, bt, 3 * hp)

        # Encoder recurrence: only h @ W_hh remains in the serial loop.
        def enc_step(t, h):
            gh = jnp.dot(h.astype(cdt), w_hh_e, preferred_element_type=f32)
            return gates(gi_enc_ref[t], gh, b_e_hn, h)

        h0 = jnp.zeros((bt, hp), f32)
        h_n = lax.fori_loop(0, t_in, enc_step, h0, unroll=unroll_enc)

        # Decoder input-gate projection is loop-invariant (decoder input is h_n
        # repeated).  Keep it in VMEM so large BT doesn't spill vregs.
        gi_dec_ref[...] = (jnp.dot(h_n.astype(cdt), w_ih_d_ref[...],
                                   preferred_element_type=f32) + b_d_gi_ref[...])
        h_carry_ref[...] = jnp.zeros((bt, hp), f32)

    # ---- decoder recurrence for this time chunk ------------------------------
    w_hh_d = w_hh_d_ref[...]
    b_d_hn = jnp.broadcast_to(b_d_hn_ref[...], (bt, hp))

    def dec_step(t, h):
        gh = jnp.dot(h.astype(cdt), w_hh_d, preferred_element_type=f32)
        h_new = gates(gi_dec_ref[...], gh, b_d_hn, h)
        h_chunk_ref[t] = h_new.astype(h_chunk_ref.dtype)
        return h_new

    h_last = lax.fori_loop(0, tc, dec_step, h_carry_ref[...], unroll=unroll_dec)
    h_carry_ref[...] = h_last                              # carry into next chunk

    # ---- output Linear for this chunk: one lane-dense matmul + single store --
    h_flat = h_chunk_ref[...].reshape(tc * bt, hp)
    y = (jnp.dot(h_flat, w_out_ref[...], preferred_element_type=f32)
         + b_out_ref[...])
    out_ref[...] = y.reshape(tc, bt, dp).astype(out_ref.dtype)


# --------------------------------------------------------------------------
# Wrapper: padding, weight repacking (per-gate, lane aligned), pallas_call
# --------------------------------------------------------------------------
def gru_autoencoder_forward(x, params, seq_length, *,
                            compute_dtype=jnp.float32,
                            batch_tile=None, time_chunk=None):
    """x: (B, T, input_dim) batch-first, like the PyTorch module."""
    B, T, Din = x.shape
    H = params["w_hh_e"].shape[1]                      # weight_hh: (3H, H)

    f32 = jnp.float32
    Hp = _round_up(H, 128)                             # lane-aligned gate width
    Dp = _round_up(Din, 128)                           # lane-dense input/output

    # --- batch tiling: fill the MXU rows with one tile (default cap 128);
    # --- batches > cap split into multiple blocks so the "parallel" batch axis
    # --- can shard across v7x's two TensorCores.
    Bp0 = _round_up(B, 8)
    if batch_tile is None:
        batch_tile = min(Bp0, 128)
    BT = max(8, _round_up(min(batch_tile, Bp0), 8))
    Bp = _round_up(Bp0, BT)

    # --- decoder time chunking: caps resident VMEM (v7x 64 MiB) at long seq_length.
    if time_chunk is None:
        time_chunk = min(seq_length, 64)
    TC = max(1, int(time_chunk))
    Sp = _round_up(seq_length, TC)
    nt = Sp // TC

    # -- repack GRU weights: (3H, in) torch layout -> (in_pad, 3*Hp), per gate --
    def pack_gru_w(w, in_dim, in_pad):
        wT = w.T.astype(f32)                           # (in_dim, 3H)
        cols = [jnp.pad(wT[:, g * H:(g + 1) * H],
                        ((0, in_pad - in_dim), (0, Hp - H))) for g in range(3)]
        return jnp.concatenate(cols, axis=1).astype(compute_dtype)

    def pad_gate_vec(v):
        return jnp.pad(v.astype(f32), (0, Hp - H))

    def pack_gi_bias(b_ih, b_hh):
        # r, z gates take the folded (b_ih + b_hh); n gate keeps only b_ih here
        # (b_hh_n must stay inside the r * (.) term).
        br = pad_gate_vec(b_ih[0:H] + b_hh[0:H])
        bz = pad_gate_vec(b_ih[H:2 * H] + b_hh[H:2 * H])
        bn = pad_gate_vec(b_ih[2 * H:3 * H])
        return jnp.concatenate([br, bz, bn]).reshape(1, 3 * Hp)

    def pack_hn_bias(b_hh):
        return pad_gate_vec(b_hh[2 * H:3 * H]).reshape(1, Hp)

    w_ih_e = pack_gru_w(params["w_ih_e"], Din, Dp)
    w_hh_e = pack_gru_w(params["w_hh_e"], H, Hp)
    b_e_gi = pack_gi_bias(params["b_ih_e"], params["b_hh_e"])
    b_e_hn = pack_hn_bias(params["b_hh_e"])

    w_ih_d = pack_gru_w(params["w_ih_d"], H, Hp)
    w_hh_d = pack_gru_w(params["w_hh_d"], H, Hp)
    b_d_gi = pack_gi_bias(params["b_ih_d"], params["b_hh_d"])
    b_d_hn = pack_hn_bias(params["b_hh_d"])

    w_out = jnp.pad(params["w_out"].T.astype(f32),
                    ((0, Hp - H), (0, Dp - Din))).astype(compute_dtype)
    b_out = jnp.pad(params["b_out"].astype(f32), (0, Dp - Din)).reshape(1, Dp)

    # -- input: time-major, pad batch (sublanes) and features (lanes), cast to
    # -- compute dtype (halves HBM->VMEM DMA bytes on the bf16 path) --
    x_tm = jnp.transpose(x, (1, 0, 2)).astype(f32)                 # (T, B, Din)
    x_pad = jnp.pad(x_tm, ((0, 0), (0, Bp - B), (0, Dp - Din))
                    ).astype(compute_dtype)                        # (T, Bp, Dp)

    kernel = functools.partial(
        gru_autoencoder_kernel,
        compute_dtype=compute_dtype,
        unroll_enc=T if T <= 16 else 4,
        unroll_dec=TC if TC <= 16 else 4,
    )

    def full_spec(a):
        return pl.BlockSpec(a.shape, lambda b, t: (0,) * a.ndim)

    in_specs = [
        pl.BlockSpec((T, BT, Dp), lambda b, t: (0, b, 0)),         # x (batch-blocked,
                                                                   #    resident across t)
        full_spec(w_ih_e), full_spec(w_hh_e), full_spec(b_e_gi), full_spec(b_e_hn),
        full_spec(w_ih_d), full_spec(w_hh_d), full_spec(b_d_gi), full_spec(b_d_hn),
        full_spec(w_out), full_spec(b_out),
    ]
    out_specs = pl.BlockSpec((TC, BT, Dp), lambda b, t: (t, b, 0))

    out_pad = pl.pallas_call(
        kernel,
        out_shape=jax.ShapeDtypeStruct((Sp, Bp, Dp), jnp.float32),
        grid=(Bp // BT, nt),                                       # (batch, time-chunk)
        in_specs=in_specs,
        out_specs=out_specs,
        scratch_shapes=[
            pltpu.VMEM((T, BT, 3 * Hp), jnp.float32),              # encoder gi for all t
            pltpu.VMEM((BT, 3 * Hp), jnp.float32),                 # decoder gi (invariant)
            pltpu.VMEM((BT, Hp), jnp.float32),                     # decoder state carry
            pltpu.VMEM((TC, BT, Hp), compute_dtype),               # decoder hiddens (chunk)
        ],
        compiler_params=pltpu.CompilerParams(
            dimension_semantics=("parallel", "arbitrary"),         # megacore on batch
            vmem_limit_bytes=_vmem_limit_bytes()),
    )(x_pad, w_ih_e, w_hh_e, b_e_gi, b_e_hn,
      w_ih_d, w_hh_d, b_d_gi, b_d_hn, w_out, b_out)

    # back to batch-first, strip batch / time / feature padding
    return jnp.transpose(out_pad, (1, 0, 2))[:B, :seq_length, :Din]


# --------------------------------------------------------------------------
# Pure-JAX reference (for correctness check)
# --------------------------------------------------------------------------
def gru_scan_ref(x_seq, h0, w_ih, w_hh, b_ih, b_hh):
    H = h0.shape[1]

    def step(h, x_t):
        gi = x_t @ w_ih.T + b_ih
        gh = h @ w_hh.T + b_hh
        r = jax.nn.sigmoid(gi[:, :H] + gh[:, :H])
        z = jax.nn.sigmoid(gi[:, H:2 * H] + gh[:, H:2 * H])
        n = jnp.tanh(gi[:, 2 * H:] + r * gh[:, 2 * H:])
        h_new = (1.0 - z) * n + z * h
        return h_new, h_new

    h_last, hs = lax.scan(step, h0, x_seq)
    return h_last, hs


def reference_forward(x, params, seq_length):
    B, T, Din = x.shape
    H = params["w_hh_e"].shape[1]
    h0 = jnp.zeros((B, H), jnp.float32)
    x_tm = jnp.transpose(x, (1, 0, 2))
    h_n, _ = gru_scan_ref(x_tm, h0, params["w_ih_e"], params["w_hh_e"],
                          params["b_ih_e"], params["b_hh_e"])
    dec_in = jnp.broadcast_to(h_n[None, :, :], (seq_length, B, H))
    _, dec_seq = gru_scan_ref(dec_in, h0, params["w_ih_d"], params["w_hh_d"],
                              params["b_ih_d"], params["b_hh_d"])
    out = dec_seq @ params["w_out"].T + params["b_out"]
    return jnp.transpose(out, (1, 0, 2))


# --------------------------------------------------------------------------
def init_params(key, input_dim, hidden_dim):
    ks = jax.random.split(key, 10)
    s = 1.0 / np.sqrt(hidden_dim)
    u = lambda k, shape, scale: jax.random.uniform(
        k, shape, jnp.float32, minval=-scale, maxval=scale)
    return {
        # encoder GRU (PyTorch shapes)
        "w_ih_e": u(ks[0], (3 * hidden_dim, input_dim), s),
        "w_hh_e": u(ks[1], (3 * hidden_dim, hidden_dim), s),
        "b_ih_e": u(ks[2], (3 * hidden_dim,), s),
        "b_hh_e": u(ks[3], (3 * hidden_dim,), s),
        # decoder GRU
        "w_ih_d": u(ks[4], (3 * hidden_dim, hidden_dim), s),
        "w_hh_d": u(ks[5], (3 * hidden_dim, hidden_dim), s),
        "b_ih_d": u(ks[6], (3 * hidden_dim,), s),
        "b_hh_d": u(ks[7], (3 * hidden_dim,), s),
        # output Linear(hidden_dim -> input_dim)
        "w_out": u(ks[8], (input_dim, hidden_dim), 1.0 / np.sqrt(hidden_dim)),
        "b_out": u(ks[9], (input_dim,), 1.0 / np.sqrt(hidden_dim)),
    }


if __name__ == "__main__":
    # Small shapes consistent with the module: x is (batch, seq, input_dim).
    B, T, Din, H = 2, 8, 8, 32
    seq_length = 8   # module's decoder length (500 in the original; small here)

    key = jax.random.PRNGKey(0)
    k_x, k_p, k_x2 = jax.random.split(key, 3)
    x = jax.random.normal(k_x, (B, T, Din), jnp.float32)
    params = init_params(k_p, Din, H)

    ref = jax.block_until_ready(reference_forward(x, params, seq_length))

    # 1) f32 compute path (default): strict check against the pure-JAX reference.
    out = jax.block_until_ready(gru_autoencoder_forward(x, params, seq_length))
    assert out.shape == (B, seq_length, Din), out.shape
    assert np.allclose(np.asarray(out), np.asarray(ref), rtol=1e-3, atol=1e-4), (
        np.abs(np.asarray(out) - np.asarray(ref)).max())

    # 2) Time-chunked decoder (2 chunks): exercises the cross-chunk state carry.
    out_tc = jax.block_until_ready(
        gru_autoencoder_forward(x, params, seq_length, time_chunk=4))
    assert np.allclose(np.asarray(out_tc), np.asarray(ref), rtol=1e-3, atol=1e-4), (
        np.abs(np.asarray(out_tc) - np.asarray(ref)).max())

    # 3) Multi-block batch grid (2 batch blocks on the "parallel" axis).
    B2 = 10
    x2 = jax.random.normal(k_x2, (B2, T, Din), jnp.float32)
    ref2 = jax.block_until_ready(reference_forward(x2, params, seq_length))
    out2 = jax.block_until_ready(
        gru_autoencoder_forward(x2, params, seq_length, batch_tile=8))
    assert np.allclose(np.asarray(out2), np.asarray(ref2), rtol=1e-3, atol=1e-4), (
        np.abs(np.asarray(out2) - np.asarray(ref2)).max())

    # 4) bf16 matmul-input path (recommended on v6e/v7x): loose sanity check.
    #    (For production-length sequences, validate accuracy at that length or
    #     keep the recurrence matmul in f32.)
    out_bf16 = jax.block_until_ready(
        gru_autoencoder_forward(x, params, seq_length, compute_dtype=jnp.bfloat16))
    assert out_bf16.shape == (B, seq_length, Din), out_bf16.shape
    assert np.allclose(np.asarray(out_bf16), np.asarray(ref), rtol=1e-1, atol=1e-1), (
        np.abs(np.asarray(out_bf16) - np.asarray(ref)).max())

    print("KERNEL_OK")
</pallas_src>

<mosaic_0001>
module attributes {stable_mosaic.version = 11 : i64} {
  func.func @gru_autoencoder_kernel(%arg0: i32, %arg1: i32, %arg2: memref<8x8x128xf32, #tpu.memory_space<vmem>>, %arg3: memref<128x384xf32, #tpu.memory_space<vmem>>, %arg4: memref<128x384xf32, #tpu.memory_space<vmem>>, %arg5: memref<1x384xf32, #tpu.memory_space<vmem>>, %arg6: memref<1x128xf32, #tpu.memory_space<vmem>>, %arg7: memref<128x384xf32, #tpu.memory_space<vmem>>, %arg8: memref<128x384xf32, #tpu.memory_space<vmem>>, %arg9: memref<1x384xf32, #tpu.memory_space<vmem>>, %arg10: memref<1x128xf32, #tpu.memory_space<vmem>>, %arg11: memref<128x128xf32, #tpu.memory_space<vmem>>, %arg12: memref<1x128xf32, #tpu.memory_space<vmem>>, %arg13: memref<8x8x128xf32, #tpu.memory_space<vmem>>, %arg14: memref<8x8x384xf32, #tpu.memory_space<vmem>>, %arg15: memref<8x384xf32, #tpu.memory_space<vmem>>, %arg16: memref<8x128xf32, #tpu.memory_space<vmem>>, %arg17: memref<8x8x128xf32, #tpu.memory_space<vmem>>) attributes {dimension_semantics = [#tpu.dimension_semantics<parallel>, #tpu.dimension_semantics<arbitrary>], iteration_bounds = array<i64: 1, 1>, scalar_prefetch = 0 : i64, scratch_operands = 4 : i64, tpu.core_type = #tpu.core_type<tc>, window_params = [{transform_indices = @transform_0, window_bounds = array<i64: 8, 8, 128>}, {pipeline_mode = #tpu.pipeline_mode<synchronous>, transform_indices = @transform_1, window_bounds = array<i64: 128, 384>}, {pipeline_mode = #tpu.pipeline_mode<synchronous>, transform_indices = @transform_2, window_bounds = array<i64: 128, 384>}, {pipeline_mode = #tpu.pipeline_mode<synchronous>, transform_indices = @transform_3, window_bounds = array<i64: 1, 384>}, {pipeline_mode = #tpu.pipeline_mode<synchronous>, transform_indices = @transform_4, window_bounds = array<i64: 1, 128>}, {pipeline_mode = #tpu.pipeline_mode<synchronous>, transform_indices = @transform_5, window_bounds = array<i64: 128, 384>}, {pipeline_mode = #tpu.pipeline_mode<synchronous>, transform_indices = @transform_6, window_bounds = array<i64: 128, 384>}, {pipeline_mode = #tpu.pipeline_mode<synchronous>, transform_indices = @transform_7, window_bounds = array<i64: 1, 384>}, {pipeline_mode = #tpu.pipeline_mode<synchronous>, transform_indices = @transform_8, window_bounds = array<i64: 1, 128>}, {pipeline_mode = #tpu.pipeline_mode<synchronous>, transform_indices = @transform_9, window_bounds = array<i64: 128, 128>}, {pipeline_mode = #tpu.pipeline_mode<synchronous>, transform_indices = @transform_10, window_bounds = array<i64: 1, 128>}, {transform_indices = @transform_11, window_bounds = array<i64: 8, 8, 128>}]} {
    %c0_i32 = arith.constant 0 : i32
    %0 = arith.cmpi eq, %arg1, %c0_i32 : i32
    %1 = arith.extui %0 : i1 to i32
    %c0_i32_0 = arith.constant 0 : i32
    %2 = arith.cmpi ne, %1, %c0_i32_0 : i32
    scf.if %2 {
      %c0_83 = arith.constant 0 : index
      %c0_84 = arith.constant 0 : index
      %282 = vector.load %arg4[%c0_83, %c0_84] : memref<128x384xf32, #tpu.memory_space<vmem>>, vector<128x384xf32>
      %c0_85 = arith.constant 0 : index
      %c0_86 = arith.constant 0 : index
      %283 = vector.load %arg6[%c0_85, %c0_86] : memref<1x128xf32, #tpu.memory_space<vmem>>, vector<1x128xf32>
      %284 = vector.shape_cast %283 : vector<1x128xf32> to vector<1x128xf32>
      %285 = vector.broadcast %284 : vector<1x128xf32> to vector<8x128xf32>
      %c0_87 = arith.constant 0 : index
      %c0_88 = arith.constant 0 : index
      %c0_89 = arith.constant 0 : index
      %286 = vector.load %arg2[%c0_87, %c0_88, %c0_89] : memref<8x8x128xf32, #tpu.memory_space<vmem>>, vector<8x8x128xf32>
      %287 = vector.shape_cast %286 : vector<8x8x128xf32> to vector<64x128xf32>
      %c0_90 = arith.constant 0 : index
      %c0_91 = arith.constant 0 : index
      %288 = vector.load %arg3[%c0_90, %c0_91] : memref<128x384xf32, #tpu.memory_space<vmem>>, vector<128x384xf32>
      %cst_92 = arith.constant dense<0.000000e+00> : vector<64x384xf32>
      %289 = tpu.matmul %287, %288, %cst_92 {dimension_numbers = #tpu.dot_dimension_numbers<[1], [0], [0], [1], [0, 0, 1, 1], [], []>} : vector<64x128xf32>, vector<128x384xf32>, vector<64x384xf32> -> vector<64x384xf32>
      %c0_93 = arith.constant 0 : index
      %c0_94 = arith.constant 0 : index
      %290 = vector.load %arg5[%c0_93, %c0_94] : memref<1x384xf32, #tpu.memory_space<vmem>>, vector<1x384xf32>
      %291 = vector.broadcast %290 : vector<1x384xf32> to vector<64x384xf32>
      %292 = arith.addf %289, %291 : vector<64x384xf32>
      %293 = vector.shape_cast %292 : vector<64x384xf32> to vector<8x8x384xf32>
      %c0_95 = arith.constant 0 : index
      %c0_96 = arith.constant 0 : index
      %c0_97 = arith.constant 0 : index
      %294 = vector.load %arg14[%c0_95, %c0_96, %c0_97] : memref<8x8x384xf32, #tpu.memory_space<vmem>>, vector<8x8x384xf32>
      tpu.vector_store %arg14[%c0_95, %c0_96, %c0_97], %293 {strides = array<i32>} : memref<8x8x384xf32, #tpu.memory_space<vmem>>, vector<8x8x384xf32>,
      %cst_98 = arith.constant 0.000000e+00 : f32
      %295 = vector.broadcast %cst_98 : f32 to vector<8x128xf32>
      %c0_i32_99 = arith.constant 0 : i32
      %cst_100 = arith.constant dense<0.000000e+00> : vector<8x384xf32>
      %296 = tpu.matmul %295, %282, %cst_100 {dimension_numbers = #tpu.dot_dimension_numbers<[1], [0], [0], [1], [0, 0, 1, 1], [], []>} : vector<8x128xf32>, vector<128x384xf32>, vector<8x384xf32> -> vector<8x384xf32>
      %297 = arith.index_cast %c0_i32_99 : i32 to index
      %c0_101 = arith.constant 0 : index
      %c0_102 = arith.constant 0 : index
      %298 = vector.load %arg14[%297, %c0_101, %c0_102] : memref<8x8x384xf32, #tpu.memory_space<vmem>>, vector<1x8x384xf32>
      %299 = vector.shape_cast %298 : vector<1x8x384xf32> to vector<8x384xf32>
      %300 = vector.extract_strided_slice %299 {offsets = [0, 0], sizes = [8, 128], strides = [1, 1]} : vector<8x384xf32> to vector<8x128xf32>
      %301 = vector.extract_strided_slice %296 {offsets = [0, 0], sizes = [8, 128], strides = [1, 1]} : vector<8x384xf32> to vector<8x128xf32>
      %302 = arith.addf %300, %301 : vector<8x128xf32>
      %303 = arith.negf %302 : vector<8x128xf32>
      %304 = math.exp %303 : vector<8x128xf32>
      %cst_103 = arith.constant 1.000000e+00 : f32
      %305 = vector.broadcast %cst_103 : f32 to vector<8x128xf32>
      %306 = arith.addf %305, %304 : vector<8x128xf32>
      %307 = arith.divf %305, %306 : vector<8x128xf32>
      %308 = vector.extract_strided_slice %299 {offsets = [0, 128], sizes = [8, 128], strides = [1, 1]} : vector<8x384xf32> to vector<8x128xf32>
      %309 = vector.extract_strided_slice %296 {offsets = [0, 128], sizes = [8, 128], strides = [1, 1]} : vector<8x384xf32> to vector<8x128xf32>
      %310 = arith.addf %308, %309 : vector<8x128xf32>
      %311 = arith.negf %310 : vector<8x128xf32>
      %312 = math.exp %311 : vector<8x128xf32>
      %cst_104 = arith.constant 1.000000e+00 : f32
      %313 = vector.broadcast %cst_104 : f32 to vector<8x128xf32>
      %314 = arith.addf %313, %312 : vector<8x128xf32>
      %315 = arith.divf %313, %314 : vector<8x128xf32>
      %316 = vector.extract_strided_slice %299 {offsets = [0, 256], sizes = [8, 128], strides = [1, 1]} : vector<8x384xf32> to vector<8x128xf32>
      %317 = vector.extract_strided_slice %296 {offsets = [0, 256], sizes = [8, 128], strides = [1, 1]} : vector<8x384xf32> to vector<8x128xf32>
      %318 = arith.addf %317, %285 : vector<8x128xf32>
      %319 = arith.mulf %307, %318 : vector<8x128xf32>
      %320 = arith.addf %316, %319 : vector<8x128xf32>
      %321 = math.tanh %320 : vector<8x128xf32>
      %cst_105 = arith.constant 1.000000e+00 : f32
      %322 = vector.broadcast %cst_105 : f32 to vector<8x128xf32>
      %323 = arith.subf %322, %315 : vector<8x128xf32>
      %324 = arith.mulf %323, %321 : vector<8x128xf32>
      %325 = arith.mulf %315, %295 : vector<8x128xf32>
      %326 = arith.addf %324, %325 : vector<8x128xf32>
      %c1_i32_106 = arith.constant 1 : i32
      %cst_107 = arith.constant dense<0.000000e+00> : vector<8x384xf32>
      %327 = tpu.matmul %326, %282, %cst_107 {dimension_numbers = #tpu.dot_dimension_numbers<[1], [0], [0], [1], [0, 0, 1, 1], [], []>} : vector<8x128xf32>, vector<128x384xf32>, vector<8x384xf32> -> vector<8x384xf32>
      %328 = arith.index_cast %c1_i32_106 : i32 to index
      %c0_108 = arith.constant 0 : index
      %c0_109 = arith.constant 0 : index
      %329 = vector.load %arg14[%328, %c0_108, %c0_109] : memref<8x8x384xf32, #tpu.memory_space<vmem>>, vector<1x8x384xf32>
      %330 = vector.shape_cast %329 : vector<1x8x384xf32> to vector<8x384xf32>
      %331 = vector.extract_strided_slice %330 {offsets = [0, 0], sizes = [8, 128], strides = [1, 1]} : vector<8x384xf32> to vector<8x128xf32>
      %332 = vector.extract_strided_slice %327 {offsets = [0, 0], sizes = [8, 128], strides = [1, 1]} : vector<8x384xf32> to vector<8x128xf32>
      %333 = arith.addf %331, %332 : vector<8x128xf32>
      %334 = arith.negf %333 : vector<8x128xf32>
      %335 = math.exp %334 : vector<8x128xf32>
      %cst_110 = arith.constant 1.000000e+00 : f32
      %336 = vector.broadcast %cst_110 : f32 to vector<8x128xf32>
      %337 = arith.addf %336, %335 : vector<8x128xf32>
      %338 = arith.divf %336, %337 : vector<8x128xf32>
      %339 = vector.extract_strided_slice %330 {offsets = [0, 128], sizes = [8, 128], strides = [1, 1]} : vector<8x384xf32> to vector<8x128xf32>
      %340 = vector.extract_strided_slice %327 {offsets = [0, 128], sizes = [8, 128], strides = [1, 1]} : vector<8x384xf32> to vector<8x128xf32>
      %341 = arith.addf %339, %340 : vector<8x128xf32>
      %342 = arith.negf %341 : vector<8x128xf32>
      %343 = math.exp %342 : vector<8x128xf32>
      %cst_111 = arith.constant 1.000000e+00 : f32
      %344 = vector.broadcast %cst_111 : f32 to vector<8x128xf32>
      %345 = arith.addf %344, %343 : vector<8x128xf32>
      %346 = arith.divf %344, %345 : vector<8x128xf32>
      %347 = vector.extract_strided_slice %330 {offsets = [0, 256], sizes = [8, 128], strides = [1, 1]} : vector<8x384xf32> to vector<8x128xf32>
      %348 = vector.extract_strided_slice %327 {offsets = [0, 256], sizes = [8, 128], strides = [1, 1]} : vector<8x384xf32> to vector<8x128xf32>
      %349 = arith.addf %348, %285 : vector<8x128xf32>
      %350 = arith.mulf %338, %349 : vector<8x128xf32>
      %351 = arith.addf %347, %350 : vector<8x128xf32>
      %352 = math.tanh %351 : vector<8x128xf32>
      %cst_112 = arith.constant 1.000000e+00 : f32
      %353 = vector.broadcast %cst_112 : f32 to vector<8x128xf32>
      %354 = arith.subf %353, %346 : vector<8x128xf32>
      %355 = arith.mulf %354, %352 : vector<8x128xf32>
      %356 = arith.mulf %346, %326 : vector<8x128xf32>
      %357 = arith.addf %355, %356 : vector<8x128xf32>
      %c2_i32_113 = arith.constant 2 : i32
      %cst_114 = arith.constant dense<0.000000e+00> : vector<8x384xf32>
      %358 = tpu.matmul %357, %282, %cst_114 {dimension_numbers = #tpu.dot_dimension_numbers<[1], [0], [0], [1], [0, 0, 1, 1], [], []>} : vector<8x128xf32>, vector<128x384xf32>, vector<8x384xf32> -> vector<8x384xf32>
      %359 = arith.index_cast %c2_i32_113 : i32 to index
      %c0_115 = arith.constant 0 : index
      %c0_116 = arith.constant 0 : index
      %360 = vector.load %arg14[%359, %c0_115, %c0_116] : memref<8x8x384xf32, #tpu.memory_space<vmem>>, vector<1x8x384xf32>
      %361 = vector.shape_cast %360 : vector<1x8x384xf32> to vector<8x384xf32>
      %362 = vector.extract_strided_slice %361 {offsets = [0, 0], sizes = [8, 128], strides = [1, 1]} : vector<8x384xf32> to vector<8x128xf32>
      %363 = vector.extract_strided_slice %358 {offsets = [0, 0], sizes = [8, 128], strides = [1, 1]} : vector<8x384xf32> to vector<8x128xf32>
      %364 = arith.addf %362, %363 : vector<8x128xf32>
      %365 = arith.negf %364 : vector<8x128xf32>
      %366 = math.exp %365 : vector<8x128xf32>
      %cst_117 = arith.constant 1.000000e+00 : f32
      %367 = vector.broadcast %cst_117 : f32 to vector<8x128xf32>
      %368 = arith.addf %367, %366 : vector<8x128xf32>
      %369 = arith.divf %367, %368 : vector<8x128xf32>
      %370 = vector.extract_strided_slice %361 {offsets = [0, 128], sizes = [8, 128], strides = [1, 1]} : vector<8x384xf32> to vector<8x128xf32>
      %371 = vector.extract_strided_slice %358 {offsets = [0, 128], sizes = [8, 128], strides = [1, 1]} : vector<8x384xf32> to vector<8x128xf32>
      %372 = arith.addf %370, %371 : vector<8x128xf32>
      %373 = arith.negf %372 : vector<8x128xf32>
      %374 = math.exp %373 : vector<8x128xf32>
      %cst_118 = arith.constant 1.000000e+00 : f32
      %375 = vector.broadcast %cst_118 : f32 to vector<8x128xf32>
      %376 = arith.addf %375, %374 : vector<8x128xf32>
      %377 = arith.divf %375, %376 : vector<8x128xf32>
      %378 = vector.extract_strided_slice %361 {offsets = [0, 256], sizes = [8, 128], strides = [1, 1]} : vector<8x384xf32> to vector<8x128xf32>
      %379 = vector.extract_strided_slice %358 {offsets = [0, 256], sizes = [8, 128], strides = [1, 1]} : vector<8x384xf32> to vector<8x128xf32>
      %380 = arith.addf %379, %285 : vector<8x128xf32>
      %381 = arith.mulf %369, %380 : vector<8x128xf32>
      %382 = arith.addf %378, %381 : vector<8x128xf32>
      %383 = math.tanh %382 : vector<8x128xf32>
      %cst_119 = arith.constant 1.000000e+00 : f32
      %384 = vector.broadcast %cst_119 : f32 to vector<8x128xf32>
      %385 = arith.subf %384, %377 : vector<8x128xf32>
      %386 = arith.mulf %385, %383 : vector<8x128xf32>
      %387 = arith.mulf %377, %357 : vector<8x128xf32>
      %388 = arith.addf %386, %387 : vector<8x128xf32>
      %c3_i32_120 = arith.constant 3 : i32
      %cst_121 = arith.constant dense<0.000000e+00> : vector<8x384xf32>
      %389 = tpu.matmul %388, %282, %cst_121 {dimension_numbers = #tpu.dot_dimension_numbers<[1], [0], [0], [1], [0, 0, 1, 1], [], []>} : vector<8x128xf32>, vector<128x384xf32>, vector<8x384xf32> -> vector<8x384xf32>
      %390 = arith.index_cast %c3_i32_120 : i32 to index
      %c0_122 = arith.constant 0 : index
      %c0_123 = arith.constant 0 : index
      %391 = vector.load %arg14[%390, %c0_122, %c0_123] : memref<8x8x384xf32, #tpu.memory_space<vmem>>, vector<1x8x384xf32>
      %392 = vector.shape_cast %391 : vector<1x8x384xf32> to vector<8x384xf32>
      %393 = vector.extract_strided_slice %392 {offsets = [0, 0], sizes = [8, 128], strides = [1, 1]} : vector<8x384xf32> to vector<8x128xf32>
      %394 = vector.extract_strided_slice %389 {offsets = [0, 0], sizes = [8, 128], strides = [1, 1]} : vector<8x384xf32> to vector<8x128xf32>
      %395 = arith.addf %393, %394 : vector<8x128xf32>
      %396 = arith.negf %395 : vector<8x128xf32>
      %397 = math.exp %396 : vector<8x128xf32>
      %cst_124 = arith.constant 1.000000e+00 : f32
      %398 = vector.broadcast %cst_124 : f32 to vector<8x128xf32>
      %399 = arith.addf %398, %397 : vector<8x128xf32>
      %400 = arith.divf %398, %399 : vector<8x128xf32>
      %401 = vector.extract_strided_slice %392 {offsets = [0, 128], sizes = [8, 128], strides = [1, 1]} : vector<8x384xf32> to vector<8x128xf32>
      %402 = vector.extract_strided_slice %389 {offsets = [0, 128], sizes = [8, 128], strides = [1, 1]} : vector<8x384xf32> to vector<8x128xf32>
      %403 = arith.addf %401, %402 : vector<8x128xf32>
      %404 = arith.negf %403 : vector<8x128xf32>
      %405 = math.exp %404 : vector<8x128xf32>
      %cst_125 = arith.constant 1.000000e+00 : f32
      %406 = vector.broadcast %cst_125 : f32 to vector<8x128xf32>
      %407 = arith.addf %406, %405 : vector<8x128xf32>
      %408 = arith.divf %406, %407 : vector<8x128xf32>
      %409 = vector.extract_strided_slice %392 {offsets = [0, 256], sizes = [8, 128], strides = [1, 1]} : vector<8x384xf32> to vector<8x128xf32>
      %410 = vector.extract_strided_slice %389 {offsets = [0, 256], sizes = [8, 128], strides = [1, 1]} : vector<8x384xf32> to vector<8x128xf32>
      %411 = arith.addf %410, %285 : vector<8x128xf32>
      %412 = arith.mulf %400, %411 : vector<8x128xf32>
      %413 = arith.addf %409, %412 : vector<8x128xf32>
      %414 = math.tanh %413 : vector<8x128xf32>
      %cst_126 = arith.constant 1.000000e+00 : f32
      %415 = vector.broadcast %cst_126 : f32 to vector<8x128xf32>
      %416 = arith.subf %415, %408 : vector<8x128xf32>
      %417 = arith.mulf %416, %414 : vector<8x128xf32>
      %418 = arith.mulf %408, %388 : vector<8x128xf32>
      %419 = arith.addf %417, %418 : vector<8x128xf32>
      %c4_i32_127 = arith.constant 4 : i32
      %cst_128 = arith.constant dense<0.000000e+00> : vector<8x384xf32>
      %420 = tpu.matmul %419, %282, %cst_128 {dimension_numbers = #tpu.dot_dimension_numbers<[1], [0], [0], [1], [0, 0, 1, 1], [], []>} : vector<8x128xf32>, vector<128x384xf32>, vector<8x384xf32> -> vector<8x384xf32>
      %421 = arith.index_cast %c4_i32_127 : i32 to index
      %c0_129 = arith.constant 0 : index
      %c0_130 = arith.constant 0 : index
      %422 = vector.load %arg14[%421, %c0_129, %c0_130] : memref<8x8x384xf32, #tpu.memory_space<vmem>>, vector<1x8x384xf32>
      %423 = vector.shape_cast %422 : vector<1x8x384xf32> to vector<8x384xf32>
      %424 = vector.extract_strided_slice %423 {offsets = [0, 0], sizes = [8, 128], strides = [1, 1]} : vector<8x384xf32> to vector<8x128xf32>
      %425 = vector.extract_strided_slice %420 {offsets = [0, 0], sizes = [8, 128], strides = [1, 1]} : vector<8x384xf32> to vector<8x128xf32>
      %426 = arith.addf %424, %425 : vector<8x128xf32>
      %427 = arith.negf %426 : vector<8x128xf32>
      %428 = math.exp %427 : vector<8x128xf32>
      %cst_131 = arith.constant 1.000000e+00 : f32
      %429 = vector.broadcast %cst_131 : f32 to vector<8x128xf32>
      %430 = arith.addf %429, %428 : vector<8x128xf32>
      %431 = arith.divf %429, %430 : vector<8x128xf32>
      %432 = vector.extract_strided_slice %423 {offsets = [0, 128], sizes = [8, 128], strides = [1, 1]} : vector<8x384xf32> to vector<8x128xf32>
      %433 = vector.extract_strided_slice %420 {offsets = [0, 128], sizes = [8, 128], strides = [1, 1]} : vector<8x384xf32> to vector<8x128xf32>
      %434 = arith.addf %432, %433 : vector<8x128xf32>
      %435 = arith.negf %434 : vector<8x128xf32>
      %436 = math.exp %435 : vector<8x128xf32>
      %cst_132 = arith.constant 1.000000e+00 : f32
      %437 = vector.broadcast %cst_132 : f32 to vector<8x128xf32>
      %438 = arith.addf %437, %436 : vector<8x128xf32>
      %439 = arith.divf %437, %438 : vector<8x128xf32>
      %440 = vector.extract_strided_slice %423 {offsets = [0, 256], sizes = [8, 128], strides = [1, 1]} : vector<8x384xf32> to vector<8x128xf32>
      %441 = vector.extract_strided_slice %420 {offsets = [0, 256], sizes = [8, 128], strides = [1, 1]} : vector<8x384xf32> to vector<8x128xf32>
      %442 = arith.addf %441, %285 : vector<8x128xf32>
      %443 = arith.mulf %431, %442 : vector<8x128xf32>
      %444 = arith.addf %440, %443 : vector<8x128xf32>
      %445 = math.tanh %444 : vector<8x128xf32>
      %cst_133 = arith.constant 1.000000e+00 : f32
      %446 = vector.broadcast %cst_133 : f32 to vector<8x128xf32>
      %447 = arith.subf %446, %439 : vector<8x128xf32>
      %448 = arith.mulf %447, %445 : vector<8x128xf32>
      %449 = arith.mulf %439, %419 : vector<8x128xf32>
      %450 = arith.addf %448, %449 : vector<8x128xf32>
      %c5_i32_134 = arith.constant 5 : i32
      %cst_135 = arith.constant dense<0.000000e+00> : vector<8x384xf32>
      %451 = tpu.matmul %450, %282, %cst_135 {dimension_numbers = #tpu.dot_dimension_numbers<[1], [0], [0], [1], [0, 0, 1, 1], [], []>} : vector<8x128xf32>, vector<128x384xf32>, vector<8x384xf32> -> vector<8x384xf32>
      %452 = arith.index_cast %c5_i32_134 : i32 to index
      %c0_136 = arith.constant 0 : index
      %c0_137 = arith.constant 0 : index
      %453 = vector.load %arg14[%452, %c0_136, %c0_137] : memref<8x8x384xf32, #tpu.memory_space<vmem>>, vector<1x8x384xf32>
      %454 = vector.shape_cast %453 : vector<1x8x384xf32> to vector<8x384xf32>
      %455 = vector.extract_strided_slice %454 {offsets = [0, 0], sizes = [8, 128], strides = [1, 1]} : vector<8x384xf32> to vector<8x128xf32>
      %456 = vector.extract_strided_slice %451 {offsets = [0, 0], sizes = [8, 128], strides = [1, 1]} : vector<8x384xf32> to vector<8x128xf32>
      %457 = arith.addf %455, %456 : vector<8x128xf32>
      %458 = arith.negf %457 : vector<8x128xf32>
      %459 = math.exp %458 : vector<8x128xf32>
      %cst_138 = arith.constant 1.000000e+00 : f32
      %460 = vector.broadcast %cst_138 : f32 to vector<8x128xf32>
      %461 = arith.addf %460, %459 : vector<8x128xf32>
      %462 = arith.divf %460, %461 : vector<8x128xf32>
      %463 = vector.extract_strided_slice %454 {offsets = [0, 128], sizes = [8, 128], strides = [1, 1]} : vector<8x384xf32> to vector<8x128xf32>
      %464 = vector.extract_strided_slice %451 {offsets = [0, 128], sizes = [8, 128], strides = [1, 1]} : vector<8x384xf32> to vector<8x128xf32>
      %465 = arith.addf %463, %464 : vector<8x128xf32>
      %466 = arith.negf %465 : vector<8x128xf32>
      %467 = math.exp %466 : vector<8x128xf32>
      %cst_139 = arith.constant 1.000000e+00 : f32
      %468 = vector.broadcast %cst_139 : f32 to vector<8x128xf32>
      %469 = arith.addf %468, %467 : vector<8x128xf32>
      %470 = arith.divf %468, %469 : vector<8x128xf32>
      %471 = vector.extract_strided_slice %454 {offsets = [0, 256], sizes = [8, 128], strides = [1, 1]} : vector<8x384xf32> to vector<8x128xf32>
      %472 = vector.extract_strided_slice %451 {offsets = [0, 256], sizes = [8, 128], strides = [1, 1]} : vector<8x384xf32> to vector<8x128xf32>
      %473 = arith.addf %472, %285 : vector<8x128xf32>
      %474 = arith.mulf %462, %473 : vector<8x128xf32>
      %475 = arith.addf %471, %474 : vector<8x128xf32>
      %476 = math.tanh %475 : vector<8x128xf32>
      %cst_140 = arith.constant 1.000000e+00 : f32
      %477 = vector.broadcast %cst_140 : f32 to vector<8x128xf32>
      %478 = arith.subf %477, %470 : vector<8x128xf32>
      %479 = arith.mulf %478, %476 : vector<8x128xf32>
      %480 = arith.mulf %470, %450 : vector<8x128xf32>
      %481 = arith.addf %479, %480 : vector<8x128xf32>
      %c6_i32_141 = arith.constant 6 : i32
      %cst_142 = arith.constant dense<0.000000e+00> : vector<8x384xf32>
      %482 = tpu.matmul %481, %282, %cst_142 {dimension_numbers = #tpu.dot_dimension_numbers<[1], [0], [0], [1], [0, 0, 1, 1], [], []>} : vector<8x128xf32>, vector<128x384xf32>, vector<8x384xf32> -> vector<8x384xf32>
      %483 = arith.index_cast %c6_i32_141 : i32 to index
      %c0_143 = arith.constant 0 : index
      %c0_144 = arith.constant 0 : index
      %484 = vector.load %arg14[%483, %c0_143, %c0_144] : memref<8x8x384xf32, #tpu.memory_space<vmem>>, vector<1x8x384xf32>
      %485 = vector.shape_cast %484 : vector<1x8x384xf32> to vector<8x384xf32>
      %486 = vector.extract_strided_slice %485 {offsets = [0, 0], sizes = [8, 128], strides = [1, 1]} : vector<8x384xf32> to vector<8x128xf32>
      %487 = vector.extract_strided_slice %482 {offsets = [0, 0], sizes = [8, 128], strides = [1, 1]} : vector<8x384xf32> to vector<8x128xf32>
      %488 = arith.addf %486, %487 : vector<8x128xf32>
      %489 = arith.negf %488 : vector<8x128xf32>
      %490 = math.exp %489 : vector<8x128xf32>
      %cst_145 = arith.constant 1.000000e+00 : f32
      %491 = vector.broadcast %cst_145 : f32 to vector<8x128xf32>
      %492 = arith.addf %491, %490 : vector<8x128xf32>
      %493 = arith.divf %491, %492 : vector<8x128xf32>
      %494 = vector.extract_strided_slice %485 {offsets = [0, 128], sizes = [8, 128], strides = [1, 1]} : vector<8x384xf32> to vector<8x128xf32>
      %495 = vector.extract_strided_slice %482 {offsets = [0, 128], sizes = [8, 128], strides = [1, 1]} : vector<8x384xf32> to vector<8x128xf32>
      %496 = arith.addf %494, %495 : vector<8x128xf32>
      %497 = arith.negf %496 : vector<8x128xf32>
      %498 = math.exp %497 : vector<8x128xf32>
      %cst_146 = arith.constant 1.000000e+00 : f32
      %499 = vector.broadcast %cst_146 : f32 to vector<8x128xf32>
      %500 = arith.addf %499, %498 : vector<8x128xf32>
      %501 = arith.divf %499, %500 : vector<8x128xf32>
      %502 = vector.extract_strided_slice %485 {offsets = [0, 256], sizes = [8, 128], strides = [1, 1]} : vector<8x384xf32> to vector<8x128xf32>
      %503 = vector.extract_strided_slice %482 {offsets = [0, 256], sizes = [8, 128], strides = [1, 1]} : vector<8x384xf32> to vector<8x128xf32>
      %504 = arith.addf %503, %285 : vector<8x128xf32>
      %505 = arith.mulf %493, %504 : vector<8x128xf32>
      %506 = arith.addf %502, %505 : vector<8x128xf32>
      %507 = math.tanh %506 : vector<8x128xf32>
      %cst_147 = arith.constant 1.000000e+00 : f32
      %508 = vector.broadcast %cst_147 : f32 to vector<8x128xf32>
      %509 = arith.subf %508, %501 : vector<8x128xf32>
      %510 = arith.mulf %509, %507 : vector<8x128xf32>
      %511 = arith.mulf %501, %481 : vector<8x128xf32>
      %512 = arith.addf %510, %511 : vector<8x128xf32>
      %c7_i32_148 = arith.constant 7 : i32
      %cst_149 = arith.constant dense<0.000000e+00> : vector<8x384xf32>
      %513 = tpu.matmul %512, %282, %cst_149 {dimension_numbers = #tpu.dot_dimension_numbers<[1], [0], [0], [1], [0, 0, 1, 1], [], []>} : vector<8x128xf32>, vector<128x384xf32>, vector<8x384xf32> -> vector<8x384xf32>
      %514 = arith.index_cast %c7_i32_148 : i32 to index
      %c0_150 = arith.constant 0 : index
      %c0_151 = arith.constant 0 : index
      %515 = vector.load %arg14[%514, %c0_150, %c0_151] : memref<8x8x384xf32, #tpu.memory_space<vmem>>, vector<1x8x384xf32>
      %516 = vector.shape_cast %515 : vector<1x8x384xf32> to vector<8x384xf32>
      %517 = vector.extract_strided_slice %516 {offsets = [0, 0], sizes = [8, 128], strides = [1, 1]} : vector<8x384xf32> to vector<8x128xf32>
      %518 = vector.extract_strided_slice %513 {offsets = [0, 0], sizes = [8, 128], strides = [1, 1]} : vector<8x384xf32> to vector<8x128xf32>
      %519 = arith.addf %517, %518 : vector<8x128xf32>
      %520 = arith.negf %519 : vector<8x128xf32>
      %521 = math.exp %520 : vector<8x128xf32>
      %cst_152 = arith.constant 1.000000e+00 : f32
      %522 = vector.broadcast %cst_152 : f32 to vector<8x128xf32>
      %523 = arith.addf %522, %521 : vector<8x128xf32>
      %524 = arith.divf %522, %523 : vector<8x128xf32>
      %525 = vector.extract_strided_slice %516 {offsets = [0, 128], sizes = [8, 128], strides = [1, 1]} : vector<8x384xf32> to vector<8x128xf32>
      %526 = vector.extract_strided_slice %513 {offsets = [0, 128], sizes = [8, 128], strides = [1, 1]} : vector<8x384xf32> to vector<8x128xf32>
      %527 = arith.addf %525, %526 : vector<8x128xf32>
      %528 = arith.negf %527 : vector<8x128xf32>
      %529 = math.exp %528 : vector<8x128xf32>
      %cst_153 = arith.constant 1.000000e+00 : f32
      %530 = vector.broadcast %cst_153 : f32 to vector<8x128xf32>
      %531 = arith.addf %530, %529 : vector<8x128xf32>
      %532 = arith.divf %530, %531 : vector<8x128xf32>
      %533 = vector.extract_strided_slice %516 {offsets = [0, 256], sizes = [8, 128], strides = [1, 1]} : vector<8x384xf32> to vector<8x128xf32>
      %534 = vector.extract_strided_slice %513 {offsets = [0, 256], sizes = [8, 128], strides = [1, 1]} : vector<8x384xf32> to vector<8x128xf32>
      %535 = arith.addf %534, %285 : vector<8x128xf32>
      %536 = arith.mulf %524, %535 : vector<8x128xf32>
      %537 = arith.addf %533, %536 : vector<8x128xf32>
      %538 = math.tanh %537 : vector<8x128xf32>
      %cst_154 = arith.constant 1.000000e+00 : f32
      %539 = vector.broadcast %cst_154 : f32 to vector<8x128xf32>
      %540 = arith.subf %539, %532 : vector<8x128xf32>
      %541 = arith.mulf %540, %538 : vector<8x128xf32>
      %542 = arith.mulf %532, %512 : vector<8x128xf32>
      %543 = arith.addf %541, %542 : vector<8x128xf32>
      %c8_i32_155 = arith.constant 8 : i32
      %c0_156 = arith.constant 0 : index
      %c0_157 = arith.constant 0 : index
      %544 = vector.load %arg7[%c0_156, %c0_157] : memref<128x384xf32, #tpu.memory_space<vmem>>, vector<128x384xf32>
      %cst_158 = arith.constant dense<0.000000e+00> : vector<8x384xf32>
      %545 = tpu.matmul %543, %544, %cst_158 {dimension_numbers = #tpu.dot_dimension_numbers<[1], [0], [0], [1], [0, 0, 1, 1], [], []>} : vector<8x128xf32>, vector<128x384xf32>, vector<8x384xf32> -> vector<8x384xf32>
      %c0_159 = arith.constant 0 : index
      %c0_160 = arith.constant 0 : index
      %546 = vector.load %arg9[%c0_159, %c0_160] : memref<1x384xf32, #tpu.memory_space<vmem>>, vector<1x384xf32>
      %547 = vector.broadcast %546 : vector<1x384xf32> to vector<8x384xf32>
      %548 = arith.addf %545, %547 : vector<8x384xf32>
      %c0_161 = arith.constant 0 : index
      %c0_162 = arith.constant 0 : index
      %549 = vector.load %arg15[%c0_161, %c0_162] : memref<8x384xf32, #tpu.memory_space<vmem>>, vector<8x384xf32>
      tpu.vector_store %arg15[%c0_161, %c0_162], %548 {strides = array<i32>} : memref<8x384xf32, #tpu.memory_space<vmem>>, vector<8x384xf32>,
      %cst_163 = arith.constant 0.000000e+00 : f32
      %550 = vector.broadcast %cst_163 : f32 to vector<8x128xf32>
      %c0_164 = arith.constant 0 : index
      %c0_165 = arith.constant 0 : index
      %551 = vector.load %arg16[%c0_164, %c0_165] : memref<8x128xf32, #tpu.memory_space<vmem>>, vector<8x128xf32>
      tpu.vector_store %arg16[%c0_164, %c0_165], %550 {strides = array<i32>} : memref<8x128xf32, #tpu.memory_space<vmem>>, vector<8x128xf32>,
    } else {
    }
    %c0 = arith.constant 0 : index
    %c0_1 = arith.constant 0 : index
    %3 = vector.load %arg8[%c0, %c0_1] : memref<128x384xf32, #tpu.memory_space<vmem>>, vector<128x384xf32>
    %c0_2 = arith.constant 0 : index
    %c0_3 = arith.constant 0 : index
    %4 = vector.load %arg10[%c0_2, %c0_3] : memref<1x128xf32, #tpu.memory_space<vmem>>, vector<1x128xf32>
    %5 = vector.shape_cast %4 : vector<1x128xf32> to vector<1x128xf32>
    %6 = vector.broadcast %5 : vector<1x128xf32> to vector<8x128xf32>
    %c0_4 = arith.constant 0 : index
    %c0_5 = arith.constant 0 : index
    %7 = vector.load %arg16[%c0_4, %c0_5] : memref<8x128xf32, #tpu.memory_space<vmem>>, vector<8x128xf32>
    %c0_i32_6 = arith.constant 0 : i32
    %cst = arith.constant dense<0.000000e+00> : vector<8x384xf32>
    %8 = tpu.matmul %7, %3, %cst {dimension_numbers = #tpu.dot_dimension_numbers<[1], [0], [0], [1], [0, 0, 1, 1], [], []>} : vector<8x128xf32>, vector<128x384xf32>, vector<8x384xf32> -> vector<8x384xf32>
    %c0_7 = arith.constant 0 : index
    %c0_8 = arith.constant 0 : index
    %9 = vector.load %arg15[%c0_7, %c0_8] : memref<8x384xf32, #tpu.memory_space<vmem>>, vector<8x384xf32>
    %10 = vector.extract_strided_slice %9 {offsets = [0, 0], sizes = [8, 128], strides = [1, 1]} : vector<8x384xf32> to vector<8x128xf32>
    %11 = vector.extract_strided_slice %8 {offsets = [0, 0], sizes = [8, 128], strides = [1, 1]} : vector<8x384xf32> to vector<8x128xf32>
    %12 = arith.addf %10, %11 : vector<8x128xf32>
    %13 = arith.negf %12 : vector<8x128xf32>
    %14 = math.exp %13 : vector<8x128xf32>
    %cst_9 = arith.constant 1.000000e+00 : f32
    %15 = vector.broadcast %cst_9 : f32 to vector<8x128xf32>
    %16 = arith.addf %15, %14 : vector<8x128xf32>
    %17 = arith.divf %15, %16 : vector<8x128xf32>
    %18 = vector.extract_strided_slice %9 {offsets = [0, 128], sizes = [8, 128], strides = [1, 1]} : vector<8x384xf32> to vector<8x128xf32>
    %19 = vector.extract_strided_slice %8 {offsets = [0, 128], sizes = [8, 128], strides = [1, 1]} : vector<8x384xf32> to vector<8x128xf32>
    %20 = arith.addf %18, %19 : vector<8x128xf32>
    %21 = arith.negf %20 : vector<8x128xf32>
    %22 = math.exp %21 : vector<8x128xf32>
    %cst_10 = arith.constant 1.000000e+00 : f32
    %23 = vector.broadcast %cst_10 : f32 to vector<8x128xf32>
    %24 = arith.addf %23, %22 : vector<8x128xf32>
    %25 = arith.divf %23, %24 : vector<8x128xf32>
    %26 = vector.extract_strided_slice %9 {offsets = [0, 256], sizes = [8, 128], strides = [1, 1]} : vector<8x384xf32> to vector<8x128xf32>
    %27 = vector.extract_strided_slice %8 {offsets = [0, 256], sizes = [8, 128], strides = [1, 1]} : vector<8x384xf32> to vector<8x128xf32>
    %28 = arith.addf %27, %6 : vector<8x128xf32>
    %29 = arith.mulf %17, %28 : vector<8x128xf32>
    %30 = arith.addf %26, %29 : vector<8x128xf32>
    %31 = math.tanh %30 : vector<8x128xf32>
    %cst_11 = arith.constant 1.000000e+00 : f32
    %32 = vector.broadcast %cst_11 : f32 to vector<8x128xf32>
    %33 = arith.subf %32, %25 : vector<8x128xf32>
    %34 = arith.mulf %33, %31 : vector<8x128xf32>
    %35 = arith.mulf %25, %7 : vector<8x128xf32>
    %36 = arith.addf %34, %35 : vector<8x128xf32>
    %37 = arith.index_cast %c0_i32_6 : i32 to index
    %c0_12 = arith.constant 0 : index
    %c0_13 = arith.constant 0 : index
    %38 = vector.load %arg17[%37, %c0_12, %c0_13] : memref<8x8x128xf32, #tpu.memory_space<vmem>>, vector<1x8x128xf32>
    %39 = vector.shape_cast %38 : vector<1x8x128xf32> to vector<8x128xf32>
    %40 = vector.shape_cast %36 : vector<8x128xf32> to vector<1x8x128xf32>
    tpu.vector_store %arg17[%37, %c0_12, %c0_13], %40 {strides = array<i32>} : memref<8x8x128xf32, #tpu.memory_space<vmem>>, vector<1x8x128xf32>,
    %c1_i32 = arith.constant 1 : i32
    %cst_14 = arith.constant dense<0.000000e+00> : vector<8x384xf32>
    %41 = tpu.matmul %36, %3, %cst_14 {dimension_numbers = #tpu.dot_dimension_numbers<[1], [0], [0], [1], [0, 0, 1, 1], [], []>} : vector<8x128xf32>, vector<128x384xf32>, vector<8x384xf32> -> vector<8x384xf32>
    %c0_15 = arith.constant 0 : index
    %c0_16 = arith.constant 0 : index
    %42 = vector.load %arg15[%c0_15, %c0_16] : memref<8x384xf32, #tpu.memory_space<vmem>>, vector<8x384xf32>
    %43 = vector.extract_strided_slice %42 {offsets = [0, 0], sizes = [8, 128], strides = [1, 1]} : vector<8x384xf32> to vector<8x128xf32>
    %44 = vector.extract_strided_slice %41 {offsets = [0, 0], sizes = [8, 128], strides = [1, 1]} : vector<8x384xf32> to vector<8x128xf32>
    %45 = arith.addf %43, %44 : vector<8x128xf32>
    %46 = arith.negf %45 : vector<8x128xf32>
    %47 = math.exp %46 : vector<8x128xf32>
    %cst_17 = arith.constant 1.000000e+00 : f32
    %48 = vector.broadcast %cst_17 : f32 to vector<8x128xf32>
    %49 = arith.addf %48, %47 : vector<8x128xf32>
    %50 = arith.divf %48, %49 : vector<8x128xf32>
    %51 = vector.extract_strided_slice %42 {offsets = [0, 128], sizes = [8, 128], strides = [1, 1]} : vector<8x384xf32> to vector<8x128xf32>
    %52 = vector.extract_strided_slice %41 {offsets = [0, 128], sizes = [8, 128], strides = [1, 1]} : vector<8x384xf32> to vector<8x128xf32>
    %53 = arith.addf %51, %52 : vector<8x128xf32>
    %54 = arith.negf %53 : vector<8x128xf32>
    %55 = math.exp %54 : vector<8x128xf32>
    %cst_18 = arith.constant 1.000000e+00 : f32
    %56 = vector.broadcast %cst_18 : f32 to vector<8x128xf32>
    %57 = arith.addf %56, %55 : vector<8x128xf32>
    %58 = arith.divf %56, %57 : vector<8x128xf32>
    %59 = vector.extract_strided_slice %42 {offsets = [0, 256], sizes = [8, 128], strides = [1, 1]} : vector<8x384xf32> to vector<8x128xf32>
    %60 = vector.extract_strided_slice %41 {offsets = [0, 256], sizes = [8, 128], strides = [1, 1]} : vector<8x384xf32> to vector<8x128xf32>
    %61 = arith.addf %60, %6 : vector<8x128xf32>
    %62 = arith.mulf %50, %61 : vector<8x128xf32>
    %63 = arith.addf %59, %62 : vector<8x128xf32>
    %64 = math.tanh %63 : vector<8x128xf32>
    %cst_19 = arith.constant 1.000000e+00 : f32
    %65 = vector.broadcast %cst_19 : f32 to vector<8x128xf32>
    %66 = arith.subf %65, %58 : vector<8x128xf32>
    %67 = arith.mulf %66, %64 : vector<8x128xf32>
    %68 = arith.mulf %58, %36 : vector<8x128xf32>
    %69 = arith.addf %67, %68 : vector<8x128xf32>
    %70 = arith.index_cast %c1_i32 : i32 to index
    %c0_20 = arith.constant 0 : index
    %c0_21 = arith.constant 0 : index
    %71 = vector.load %arg17[%70, %c0_20, %c0_21] : memref<8x8x128xf32, #tpu.memory_space<vmem>>, vector<1x8x128xf32>
    %72 = vector.shape_cast %71 : vector<1x8x128xf32> to vector<8x128xf32>
    %73 = vector.shape_cast %69 : vector<8x128xf32> to vector<1x8x128xf32>
    tpu.vector_store %arg17[%70, %c0_20, %c0_21], %73 {strides = array<i32>} : memref<8x8x128xf32, #tpu.memory_space<vmem>>, vector<1x8x128xf32>,
    %c2_i32 = arith.constant 2 : i32
    %cst_22 = arith.constant dense<0.000000e+00> : vector<8x384xf32>
    %74 = tpu.matmul %69, %3, %cst_22 {dimension_numbers = #tpu.dot_dimension_numbers<[1], [0], [0], [1], [0, 0, 1, 1], [], []>} : vector<8x128xf32>, vector<128x384xf32>, vector<8x384xf32> -> vector<8x384xf32>
    %c0_23 = arith.constant 0 : index
    %c0_24 = arith.constant 0 : index
    %75 = vector.load %arg15[%c0_23, %c0_24] : memref<8x384xf32, #tpu.memory_space<vmem>>, vector<8x384xf32>
    %76 = vector.extract_strided_slice %75 {offsets = [0, 0], sizes = [8, 128], strides = [1, 1]} : vector<8x384xf32> to vector<8x128xf32>
    %77 = vector.extract_strided_slice %74 {offsets = [0, 0], sizes = [8, 128], strides = [1, 1]} : vector<8x384xf32> to vector<8x128xf32>
    %78 = arith.addf %76, %77 : vector<8x128xf32>
    %79 = arith.negf %78 : vector<8x128xf32>
    %80 = math.exp %79 : vector<8x128xf32>
    %cst_25 = arith.constant 1.000000e+00 : f32
    %81 = vector.broadcast %cst_25 : f32 to vector<8x128xf32>
    %82 = arith.addf %81, %80 : vector<8x128xf32>
    %83 = arith.divf %81, %82 : vector<8x128xf32>
    %84 = vector.extract_strided_slice %75 {offsets = [0, 128], sizes = [8, 128], strides = [1, 1]} : vector<8x384xf32> to vector<8x128xf32>
    %85 = vector.extract_strided_slice %74 {offsets = [0, 128], sizes = [8, 128], strides = [1, 1]} : vector<8x384xf32> to vector<8x128xf32>
    %86 = arith.addf %84, %85 : vector<8x128xf32>
    %87 = arith.negf %86 : vector<8x128xf32>
    %88 = math.exp %87 : vector<8x128xf32>
    %cst_26 = arith.constant 1.000000e+00 : f32
    %89 = vector.broadcast %cst_26 : f32 to vector<8x128xf32>
    %90 = arith.addf %89, %88 : vector<8x128xf32>
    %91 = arith.divf %89, %90 : vector<8x128xf32>
    %92 = vector.extract_strided_slice %75 {offsets = [0, 256], sizes = [8, 128], strides = [1, 1]} : vector<8x384xf32> to vector<8x128xf32>
    %93 = vector.extract_strided_slice %74 {offsets = [0, 256], sizes = [8, 128], strides = [1, 1]} : vector<8x384xf32> to vector<8x128xf32>
    %94 = arith.addf %93, %6 : vector<8x128xf32>
    %95 = arith.mulf %83, %94 : vector<8x128xf32>
    %96 = arith.addf %92, %95 : vector<8x128xf32>
    %97 = math.tanh %96 : vector<8x128xf32>
    %cst_27 = arith.constant 1.000000e+00 : f32
    %98 = vector.broadcast %cst_27 : f32 to vector<8x128xf32>
    %99 = arith.subf %98, %91 : vector<8x128xf32>
    %100 = arith.mulf %99, %97 : vector<8x128xf32>
    %101 = arith.mulf %91, %69 : vector<8x128xf32>
    %102 = arith.addf %100, %101 : vector<8x128xf32>
    %103 = arith.index_cast %c2_i32 : i32 to index
    %c0_28 = arith.constant 0 : index
    %c0_29 = arith.constant 0 : index
    %104 = vector.load %arg17[%103, %c0_28, %c0_29] : memref<8x8x128xf32, #tpu.memory_space<vmem>>, vector<1x8x128xf32>
    %105 = vector.shape_cast %104 : vector<1x8x128xf32> to vector<8x128xf32>
    %106 = vector.shape_cast %102 : vector<8x128xf32> to vector<1x8x128xf32>
    tpu.vector_store %arg17[%103, %c0_28, %c0_29], %106 {strides = array<i32>} : memref<8x8x128xf32, #tpu.memory_space<vmem>>, vector<1x8x128xf32>,
    %c3_i32 = arith.constant 3 : i32
    %cst_30 = arith.constant dense<0.000000e+00> : vector<8x384xf32>
    %107 = tpu.matmul %102, %3, %cst_30 {dimension_numbers = #tpu.dot_dimension_numbers<[1], [0], [0], [1], [0, 0, 1, 1], [], []>} : vector<8x128xf32>, vector<128x384xf32>, vector<8x384xf32> -> vector<8x384xf32>
    %c0_31 = arith.constant 0 : index
    %c0_32 = arith.constant 0 : index
    %108 = vector.load %arg15[%c0_31, %c0_32] : memref<8x384xf32, #tpu.memory_space<vmem>>, vector<8x384xf32>
    %109 = vector.extract_strided_slice %108 {offsets = [0, 0], sizes = [8, 128], strides = [1, 1]} : vector<8x384xf32> to vector<8x128xf32>
    %110 = vector.extract_strided_slice %107 {offsets = [0, 0], sizes = [8, 128], strides = [1, 1]} : vector<8x384xf32> to vector<8x128xf32>
    %111 = arith.addf %109, %110 : vector<8x128xf32>
    %112 = arith.negf %111 : vector<8x128xf32>
    %113 = math.exp %112 : vector<8x128xf32>
    %cst_33 = arith.constant 1.000000e+00 : f32
    %114 = vector.broadcast %cst_33 : f32 to vector<8x128xf32>
    %115 = arith.addf %114, %113 : vector<8x128xf32>
    %116 = arith.divf %114, %115 : vector<8x128xf32>
    %117 = vector.extract_strided_slice %108 {offsets = [0, 128], sizes = [8, 128], strides = [1, 1]} : vector<8x384xf32> to vector<8x128xf32>
    %118 = vector.extract_strided_slice %107 {offsets = [0, 128], sizes = [8, 128], strides = [1, 1]} : vector<8x384xf32> to vector<8x128xf32>
    %119 = arith.addf %117, %118 : vector<8x128xf32>
    %120 = arith.negf %119 : vector<8x128xf32>
    %121 = math.exp %120 : vector<8x128xf32>
    %cst_34 = arith.constant 1.000000e+00 : f32
    %122 = vector.broadcast %cst_34 : f32 to vector<8x128xf32>
    %123 = arith.addf %122, %121 : vector<8x128xf32>
    %124 = arith.divf %122, %123 : vector<8x128xf32>
    %125 = vector.extract_strided_slice %108 {offsets = [0, 256], sizes = [8, 128], strides = [1, 1]} : vector<8x384xf32> to vector<8x128xf32>
    %126 = vector.extract_strided_slice %107 {offsets = [0, 256], sizes = [8, 128], strides = [1, 1]} : vector<8x384xf32> to vector<8x128xf32>
    %127 = arith.addf %126, %6 : vector<8x128xf32>
    %128 = arith.mulf %116, %127 : vector<8x128xf32>
    %129 = arith.addf %125, %128 : vector<8x128xf32>
    %130 = math.tanh %129 : vector<8x128xf32>
    %cst_35 = arith.constant 1.000000e+00 : f32
    %131 = vector.broadcast %cst_35 : f32 to vector<8x128xf32>
    %132 = arith.subf %131, %124 : vector<8x128xf32>
    %133 = arith.mulf %132, %130 : vector<8x128xf32>
    %134 = arith.mulf %124, %102 : vector<8x128xf32>
    %135 = arith.addf %133, %134 : vector<8x128xf32>
    %136 = arith.index_cast %c3_i32 : i32 to index
    %c0_36 = arith.constant 0 : index
    %c0_37 = arith.constant 0 : index
    %137 = vector.load %arg17[%136, %c0_36, %c0_37] : memref<8x8x128xf32, #tpu.memory_space<vmem>>, vector<1x8x128xf32>
    %138 = vector.shape_cast %137 : vector<1x8x128xf32> to vector<8x128xf32>
    %139 = vector.shape_cast %135 : vector<8x128xf32> to vector<1x8x128xf32>
    tpu.vector_store %arg17[%136, %c0_36, %c0_37], %139 {strides = array<i32>} : memref<8x8x128xf32, #tpu.memory_space<vmem>>, vector<1x8x128xf32>,
    %c4_i32 = arith.constant 4 : i32
    %cst_38 = arith.constant dense<0.000000e+00> : vector<8x384xf32>
    %140 = tpu.matmul %135, %3, %cst_38 {dimension_numbers = #tpu.dot_dimension_numbers<[1], [0], [0], [1], [0, 0, 1, 1], [], []>} : vector<8x128xf32>, vector<128x384xf32>, vector<8x384xf32> -> vector<8x384xf32>
    %c0_39 = arith.constant 0 : index
    %c0_40 = arith.constant 0 : index
    %141 = vector.load %arg15[%c0_39, %c0_40] : memref<8x384xf32, #tpu.memory_space<vmem>>, vector<8x384xf32>
    %142 = vector.extract_strided_slice %141 {offsets = [0, 0], sizes = [8, 128], strides = [1, 1]} : vector<8x384xf32> to vector<8x128xf32>
    %143 = vector.extract_strided_slice %140 {offsets = [0, 0], sizes = [8, 128], strides = [1, 1]} : vector<8x384xf32> to vector<8x128xf32>
    %144 = arith.addf %142, %143 : vector<8x128xf32>
    %145 = arith.negf %144 : vector<8x128xf32>
    %146 = math.exp %145 : vector<8x128xf32>
    %cst_41 = arith.constant 1.000000e+00 : f32
    %147 = vector.broadcast %cst_41 : f32 to vector<8x128xf32>
    %148 = arith.addf %147, %146 : vector<8x128xf32>
    %149 = arith.divf %147, %148 : vector<8x128xf32>
    %150 = vector.extract_strided_slice %141 {offsets = [0, 128], sizes = [8, 128], strides = [1, 1]} : vector<8x384xf32> to vector<8x128xf32>
    %151 = vector.extract_strided_slice %140 {offsets = [0, 128], sizes = [8, 128], strides = [1, 1]} : vector<8x384xf32> to vector<8x128xf32>
    %152 = arith.addf %150, %151 : vector<8x128xf32>
    %153 = arith.negf %152 : vector<8x128xf32>
    %154 = math.exp %153 : vector<8x128xf32>
    %cst_42 = arith.constant 1.000000e+00 : f32
    %155 = vector.broadcast %cst_42 : f32 to vector<8x128xf32>
    %156 = arith.addf %155, %154 : vector<8x128xf32>
    %157 = arith.divf %155, %156 : vector<8x128xf32>
    %158 = vector.extract_strided_slice %141 {offsets = [0, 256], sizes = [8, 128], strides = [1, 1]} : vector<8x384xf32> to vector<8x128xf32>
    %159 = vector.extract_strided_slice %140 {offsets = [0, 256], sizes = [8, 128], strides = [1, 1]} : vector<8x384xf32> to vector<8x128xf32>
    %160 = arith.addf %159, %6 : vector<8x128xf32>
    %161 = arith.mulf %149, %160 : vector<8x128xf32>
    %162 = arith.addf %158, %161 : vector<8x128xf32>
    %163 = math.tanh %162 : vector<8x128xf32>
    %cst_43 = arith.constant 1.000000e+00 : f32
    %164 = vector.broadcast %cst_43 : f32 to vector<8x128xf32>
    %165 = arith.subf %164, %157 : vector<8x128xf32>
    %166 = arith.mulf %165, %163 : vector<8x128xf32>
    %167 = arith.mulf %157, %135 : vector<8x128xf32>
    %168 = arith.addf %166, %167 : vector<8x128xf32>
    %169 = arith.index_cast %c4_i32 : i32 to index
    %c0_44 = arith.constant 0 : index
    %c0_45 = arith.constant 0 : index
    %170 = vector.load %arg17[%169, %c0_44, %c0_45] : memref<8x8x128xf32, #tpu.memory_space<vmem>>, vector<1x8x128xf32>
    %171 = vector.shape_cast %170 : vector<1x8x128xf32> to vector<8x128xf32>
    %172 = vector.shape_cast %168 : vector<8x128xf32> to vector<1x8x128xf32>
    tpu.vector_store %arg17[%169, %c0_44, %c0_45], %172 {strides = array<i32>} : memref<8x8x128xf32, #tpu.memory_space<vmem>>, vector<1x8x128xf32>,
    %c5_i32 = arith.constant 5 : i32
    %cst_46 = arith.constant dense<0.000000e+00> : vector<8x384xf32>
    %173 = tpu.matmul %168, %3, %cst_46 {dimension_numbers = #tpu.dot_dimension_numbers<[1], [0], [0], [1], [0, 0, 1, 1], [], []>} : vector<8x128xf32>, vector<128x384xf32>, vector<8x384xf32> -> vector<8x384xf32>
    %c0_47 = arith.constant 0 : index
    %c0_48 = arith.constant 0 : index
    %174 = vector.load %arg15[%c0_47, %c0_48] : memref<8x384xf32, #tpu.memory_space<vmem>>, vector<8x384xf32>
    %175 = vector.extract_strided_slice %174 {offsets = [0, 0], sizes = [8, 128], strides = [1, 1]} : vector<8x384xf32> to vector<8x128xf32>
    %176 = vector.extract_strided_slice %173 {offsets = [0, 0], sizes = [8, 128], strides = [1, 1]} : vector<8x384xf32> to vector<8x128xf32>
    %177 = arith.addf %175, %176 : vector<8x128xf32>
    %178 = arith.negf %177 : vector<8x128xf32>
    %179 = math.exp %178 : vector<8x128xf32>
    %cst_49 = arith.constant 1.000000e+00 : f32
    %180 = vector.broadcast %cst_49 : f32 to vector<8x128xf32>
    %181 = arith.addf %180, %179 : vector<8x128xf32>
    %182 = arith.divf %180, %181 : vector<8x128xf32>
    %183 = vector.extract_strided_slice %174 {offsets = [0, 128], sizes = [8, 128], strides = [1, 1]} : vector<8x384xf32> to vector<8x128xf32>
    %184 = vector.extract_strided_slice %173 {offsets = [0, 128], sizes = [8, 128], strides = [1, 1]} : vector<8x384xf32> to vector<8x128xf32>
    %185 = arith.addf %183, %184 : vector<8x128xf32>
    %186 = arith.negf %185 : vector<8x128xf32>
    %187 = math.exp %186 : vector<8x128xf32>
    %cst_50 = arith.constant 1.000000e+00 : f32
    %188 = vector.broadcast %cst_50 : f32 to vector<8x128xf32>
    %189 = arith.addf %188, %187 : vector<8x128xf32>
    %190 = arith.divf %188, %189 : vector<8x128xf32>
    %191 = vector.extract_strided_slice %174 {offsets = [0, 256], sizes = [8, 128], strides = [1, 1]} : vector<8x384xf32> to vector<8x128xf32>
    %192 = vector.extract_strided_slice %173 {offsets = [0, 256], sizes = [8, 128], strides = [1, 1]} : vector<8x384xf32> to vector<8x128xf32>
    %193 = arith.addf %192, %6 : vector<8x128xf32>
    %194 = arith.mulf %182, %193 : vector<8x128xf32>
    %195 = arith.addf %191, %194 : vector<8x128xf32>
    %196 = math.tanh %195 : vector<8x128xf32>
    %cst_51 = arith.constant 1.000000e+00 : f32
    %197 = vector.broadcast %cst_51 : f32 to vector<8x128xf32>
    %198 = arith.subf %197, %190 : vector<8x128xf32>
    %199 = arith.mulf %198, %196 : vector<8x128xf32>
    %200 = arith.mulf %190, %168 : vector<8x128xf32>
    %201 = arith.addf %199, %200 : vector<8x128xf32>
    %202 = arith.index_cast %c5_i32 : i32 to index
    %c0_52 = arith.constant 0 : index
    %c0_53 = arith.constant 0 : index
    %203 = vector.load %arg17[%202, %c0_52, %c0_53] : memref<8x8x128xf32, #tpu.memory_space<vmem>>, vector<1x8x128xf32>
    %204 = vector.shape_cast %203 : vector<1x8x128xf32> to vector<8x128xf32>
    %205 = vector.shape_cast %201 : vector<8x128xf32> to vector<1x8x128xf32>
    tpu.vector_store %arg17[%202, %c0_52, %c0_53], %205 {strides = array<i32>} : memref<8x8x128xf32, #tpu.memory_space<vmem>>, vector<1x8x128xf32>,
    %c6_i32 = arith.constant 6 : i32
    %cst_54 = arith.constant dense<0.000000e+00> : vector<8x384xf32>
    %206 = tpu.matmul %201, %3, %cst_54 {dimension_numbers = #tpu.dot_dimension_numbers<[1], [0], [0], [1], [0, 0, 1, 1], [], []>} : vector<8x128xf32>, vector<128x384xf32>, vector<8x384xf32> -> vector<8x384xf32>
    %c0_55 = arith.constant 0 : index
    %c0_56 = arith.constant 0 : index
    %207 = vector.load %arg15[%c0_55, %c0_56] : memref<8x384xf32, #tpu.memory_space<vmem>>, vector<8x384xf32>
    %208 = vector.extract_strided_slice %207 {offsets = [0, 0], sizes = [8, 128], strides = [1, 1]} : vector<8x384xf32> to vector<8x128xf32>
    %209 = vector.extract_strided_slice %206 {offsets = [0, 0], sizes = [8, 128], strides = [1, 1]} : vector<8x384xf32> to vector<8x128xf32>
    %210 = arith.addf %208, %209 : vector<8x128xf32>
    %211 = arith.negf %210 : vector<8x128xf32>
    %212 = math.exp %211 : vector<8x128xf32>
    %cst_57 = arith.constant 1.000000e+00 : f32
    %213 = vector.broadcast %cst_57 : f32 to vector<8x128xf32>
    %214 = arith.addf %213, %212 : vector<8x128xf32>
    %215 = arith.divf %213, %214 : vector<8x128xf32>
    %216 = vector.extract_strided_slice %207 {offsets = [0, 128], sizes = [8, 128], strides = [1, 1]} : vector<8x384xf32> to vector<8x128xf32>
    %217 = vector.extract_strided_slice %206 {offsets = [0, 128], sizes = [8, 128], strides = [1, 1]} : vector<8x384xf32> to vector<8x128xf32>
    %218 = arith.addf %216, %217 : vector<8x128xf32>
    %219 = arith.negf %218 : vector<8x128xf32>
    %220 = math.exp %219 : vector<8x128xf32>
    %cst_58 = arith.constant 1.000000e+00 : f32
    %221 = vector.broadcast %cst_58 : f32 to vector<8x128xf32>
    %222 = arith.addf %221, %220 : vector<8x128xf32>
    %223 = arith.divf %221, %222 : vector<8x128xf32>
    %224 = vector.extract_strided_slice %207 {offsets = [0, 256], sizes = [8, 128], strides = [1, 1]} : vector<8x384xf32> to vector<8x128xf32>
    %225 = vector.extract_strided_slice %206 {offsets = [0, 256], sizes = [8, 128], strides = [1, 1]} : vector<8x384xf32> to vector<8x128xf32>
    %226 = arith.addf %225, %6 : vector<8x128xf32>
    %227 = arith.mulf %215, %226 : vector<8x128xf32>
    %228 = arith.addf %224, %227 : vector<8x128xf32>
    %229 = math.tanh %228 : vector<8x128xf32>
    %cst_59 = arith.constant 1.000000e+00 : f32
    %230 = vector.broadcast %cst_59 : f32 to vector<8x128xf32>
    %231 = arith.subf %230, %223 : vector<8x128xf32>
    %232 = arith.mulf %231, %229 : vector<8x128xf32>
    %233 = arith.mulf %223, %201 : vector<8x128xf32>
    %234 = arith.addf %232, %233 : vector<8x128xf32>
    %235 = arith.index_cast %c6_i32 : i32 to index
    %c0_60 = arith.constant 0 : index
    %c0_61 = arith.constant 0 : index
    %236 = vector.load %arg17[%235, %c0_60, %c0_61] : memref<8x8x128xf32, #tpu.memory_space<vmem>>, vector<1x8x128xf32>
    %237 = vector.shape_cast %236 : vector<1x8x128xf32> to vector<8x128xf32>
    %238 = vector.shape_cast %234 : vector<8x128xf32> to vector<1x8x128xf32>
    tpu.vector_store %arg17[%235, %c0_60, %c0_61], %238 {strides = array<i32>} : memref<8x8x128xf32, #tpu.memory_space<vmem>>, vector<1x8x128xf32>,
    %c7_i32 = arith.constant 7 : i32
    %cst_62 = arith.constant dense<0.000000e+00> : vector<8x384xf32>
    %239 = tpu.matmul %234, %3, %cst_62 {dimension_numbers = #tpu.dot_dimension_numbers<[1], [0], [0], [1], [0, 0, 1, 1], [], []>} : vector<8x128xf32>, vector<128x384xf32>, vector<8x384xf32> -> vector<8x384xf32>
    %c0_63 = arith.constant 0 : index
    %c0_64 = arith.constant 0 : index
    %240 = vector.load %arg15[%c0_63, %c0_64] : memref<8x384xf32, #tpu.memory_space<vmem>>, vector<8x384xf32>
    %241 = vector.extract_strided_slice %240 {offsets = [0, 0], sizes = [8, 128], strides = [1, 1]} : vector<8x384xf32> to vector<8x128xf32>
    %242 = vector.extract_strided_slice %239 {offsets = [0, 0], sizes = [8, 128], strides = [1, 1]} : vector<8x384xf32> to vector<8x128xf32>
    %243 = arith.addf %241, %242 : vector<8x128xf32>
    %244 = arith.negf %243 : vector<8x128xf32>
    %245 = math.exp %244 : vector<8x128xf32>
    %cst_65 = arith.constant 1.000000e+00 : f32
    %246 = vector.broadcast %cst_65 : f32 to vector<8x128xf32>
    %247 = arith.addf %246, %245 : vector<8x128xf32>
    %248 = arith.divf %246, %247 : vector<8x128xf32>
    %249 = vector.extract_strided_slice %240 {offsets = [0, 128], sizes = [8, 128], strides = [1, 1]} : vector<8x384xf32> to vector<8x128xf32>
    %250 = vector.extract_strided_slice %239 {offsets = [0, 128], sizes = [8, 128], strides = [1, 1]} : vector<8x384xf32> to vector<8x128xf32>
    %251 = arith.addf %249, %250 : vector<8x128xf32>
    %252 = arith.negf %251 : vector<8x128xf32>
    %253 = math.exp %252 : vector<8x128xf32>
    %cst_66 = arith.constant 1.000000e+00 : f32
    %254 = vector.broadcast %cst_66 : f32 to vector<8x128xf32>
    %255 = arith.addf %254, %253 : vector<8x128xf32>
    %256 = arith.divf %254, %255 : vector<8x128xf32>
    %257 = vector.extract_strided_slice %240 {offsets = [0, 256], sizes = [8, 128], strides = [1, 1]} : vector<8x384xf32> to vector<8x128xf32>
    %258 = vector.extract_strided_slice %239 {offsets = [0, 256], sizes = [8, 128], strides = [1, 1]} : vector<8x384xf32> to vector<8x128xf32>
    %259 = arith.addf %258, %6 : vector<8x128xf32>
    %260 = arith.mulf %248, %259 : vector<8x128xf32>
    %261 = arith.addf %257, %260 : vector<8x128xf32>
    %262 = math.tanh %261 : vector<8x128xf32>
    %cst_67 = arith.constant 1.000000e+00 : f32
    %263 = vector.broadcast %cst_67 : f32 to vector<8x128xf32>
    %264 = arith.subf %263, %256 : vector<8x128xf32>
    %265 = arith.mulf %264, %262 : vector<8x128xf32>
    %266 = arith.mulf %256, %234 : vector<8x128xf32>
    %267 = arith.addf %265, %266 : vector<8x128xf32>
    %268 = arith.index_cast %c7_i32 : i32 to index
    %c0_68 = arith.constant 0 : index
    %c0_69 = arith.constant 0 : index
    %269 = vector.load %arg17[%268, %c0_68, %c0_69] : memref<8x8x128xf32, #tpu.memory_space<vmem>>, vector<1x8x128xf32>
    %270 = vector.shape_cast %269 : vector<1x8x128xf32> to vector<8x128xf32>
    %271 = vector.shape_cast %267 : vector<8x128xf32> to vector<1x8x128xf32>
    tpu.vector_store %arg17[%268, %c0_68, %c0_69], %271 {strides = array<i32>} : memref<8x8x128xf32, #tpu.memory_space<vmem>>, vector<1x8x128xf32>,
    %c8_i32 = arith.constant 8 : i32
    %c0_70 = arith.constant 0 : index
    %c0_71 = arith.constant 0 : index
    %272 = vector.load %arg16[%c0_70, %c0_71] : memref<8x128xf32, #tpu.memory_space<vmem>>, vector<8x128xf32>
    tpu.vector_store %arg16[%c0_70, %c0_71], %267 {strides = array<i32>} : memref<8x128xf32, #tpu.memory_space<vmem>>, vector<8x128xf32>,
    %c0_72 = arith.constant 0 : index
    %c0_73 = arith.constant 0 : index
    %c0_74 = arith.constant 0 : index
    %273 = vector.load %arg17[%c0_72, %c0_73, %c0_74] : memref<8x8x128xf32, #tpu.memory_space<vmem>>, vector<8x8x128xf32>
    %274 = vector.shape_cast %273 : vector<8x8x128xf32> to vector<64x128xf32>
    %c0_75 = arith.constant 0 : index
    %c0_76 = arith.constant 0 : index
    %275 = vector.load %arg11[%c0_75, %c0_76] : memref<128x128xf32, #tpu.memory_space<vmem>>, vector<128x128xf32>
    %cst_77 = arith.constant dense<0.000000e+00> : vector<64x128xf32>
    %276 = tpu.matmul %274, %275, %cst_77 {dimension_numbers = #tpu.dot_dimension_numbers<[1], [0], [0], [1], [0, 0, 1, 1], [], []>} : vector<64x128xf32>, vector<128x128xf32>, vector<64x128xf32> -> vector<64x128xf32>
    %c0_78 = arith.constant 0 : index
    %c0_79 = arith.constant 0 : index
    %277 = vector.load %arg12[%c0_78, %c0_79] : memref<1x128xf32, #tpu.memory_space<vmem>>, vector<1x128xf32>
    %278 = vector.broadcast %277 : vector<1x128xf32> to vector<64x128xf32>
    %279 = arith.addf %276, %278 : vector<64x128xf32>
    %280 = vector.shape_cast %279 : vector<64x128xf32> to vector<8x8x128xf32>
    %c0_80 = arith.constant 0 : index
    %c0_81 = arith.constant 0 : index
    %c0_82 = arith.constant 0 : index
    %281 = vector.load %arg13[%c0_80, %c0_81, %c0_82] : memref<8x8x128xf32, #tpu.memory_space<vmem>>, vector<8x8x128xf32>
    tpu.vector_store %arg13[%c0_80, %c0_81, %c0_82], %280 {strides = array<i32>} : memref<8x8x128xf32, #tpu.memory_space<vmem>>, vector<8x8x128xf32>,
    return
  }
  func.func @transform_0(%arg0: i32, %arg1: i32) -> (i32, i32, i32) {
    %c0_i32 = arith.constant 0 : i32
    %c0_i32_0 = arith.constant 0 : i32
    %c0_i32_1 = arith.constant 0 : i32
    return %c0_i32, %arg0, %c0_i32_0 : i32, i32, i32
  }
  func.func @transform_1(%arg0: i32, %arg1: i32) -> (i32, i32) {
    %c0_i32 = arith.constant 0 : i32
    %c0_i32_0 = arith.constant 0 : i32
    %c0_i32_1 = arith.constant 0 : i32
    return %c0_i32, %c0_i32_0 : i32, i32
  }
  func.func @transform_2(%arg0: i32, %arg1: i32) -> (i32, i32) {
    %c0_i32 = arith.constant 0 : i32
    %c0_i32_0 = arith.constant 0 : i32
    %c0_i32_1 = arith.constant 0 : i32
    return %c0_i32, %c0_i32_0 : i32, i32
  }
  func.func @transform_3(%arg0: i32, %arg1: i32) -> (i32, i32) {
    %c0_i32 = arith.constant 0 : i32
    %c0_i32_0 = arith.constant 0 : i32
    %c0_i32_1 = arith.constant 0 : i32
    return %c0_i32, %c0_i32_0 : i32, i32
  }
  func.func @transform_4(%arg0: i32, %arg1: i32) -> (i32, i32) {
    %c0_i32 = arith.constant 0 : i32
    %c0_i32_0 = arith.constant 0 : i32
    %c0_i32_1 = arith.constant 0 : i32
    return %c0_i32, %c0_i32_0 : i32, i32
  }
  func.func @transform_5(%arg0: i32, %arg1: i32) -> (i32, i32) {
    %c0_i32 = arith.constant 0 : i32
    %c0_i32_0 = arith.constant 0 : i32
    %c0_i32_1 = arith.constant 0 : i32
    return %c0_i32, %c0_i32_0 : i32, i32
  }
  func.func @transform_6(%arg0: i32, %arg1: i32) -> (i32, i32) {
    %c0_i32 = arith.constant 0 : i32
    %c0_i32_0 = arith.constant 0 : i32
    %c0_i32_1 = arith.constant 0 : i32
    return %c0_i32, %c0_i32_0 : i32, i32
  }
  func.func @transform_7(%arg0: i32, %arg1: i32) -> (i32, i32) {
    %c0_i32 = arith.constant 0 : i32
    %c0_i32_0 = arith.constant 0 : i32
    %c0_i32_1 = arith.constant 0 : i32
    return %c0_i32, %c0_i32_0 : i32, i32
  }
  func.func @transform_8(%arg0: i32, %arg1: i32) -> (i32, i32) {
    %c0_i32 = arith.constant 0 : i32
    %c0_i32_0 = arith.constant 0 : i32
    %c0_i32_1 = arith.constant 0 : i32
    return %c0_i32, %c0_i32_0 : i32, i32
  }
  func.func @transform_9(%arg0: i32, %arg1: i32) -> (i32, i32) {
    %c0_i32 = arith.constant 0 : i32
    %c0_i32_0 = arith.constant 0 : i32
    %c0_i32_1 = arith.constant 0 : i32
    return %c0_i32, %c0_i32_0 : i32, i32
  }
  func.func @transform_10(%arg0: i32, %arg1: i32) -> (i32, i32) {
    %c0_i32 = arith.constant 0 : i32
    %c0_i32_0 = arith.constant 0 : i32
    %c0_i32_1 = arith.constant 0 : i32
    return %c0_i32, %c0_i32_0 : i32, i32
  }
  func.func @transform_11(%arg0: i32, %arg1: i32) -> (i32, i32, i32) {
    %c0_i32 = arith.constant 0 : i32
    %c0_i32_0 = arith.constant 0 : i32
    return %arg1, %arg0, %c0_i32 : i32, i32, i32
  }
}

</mosaic_0001>

<llo_original>
// kernel: tpu_custom_call.1
$region0: #{tpu_custom_call.1}
  #allocation0 [shape = 'u32[]', space=smem, size = 0x4, offset = 0x4, fixed_abs, tag = 'smem constant byte address 0x4 - core index']
  #allocation1 [shape = 'u32[144,128]{1,0:T(1,128)}', space=vmem, size = 0x12000, scoped, tag = 'internal scratch']
  #allocation2 [shape = 'f32[8,8,384]{2,1,0:T(8,128)}', space=vmem, size = 0x18000, scoped, tag = 'scratch operand']
  #allocation3 [shape = 'f32[8,384]{1,0:T(8,128)}', space=vmem, size = 0x3000, scoped, tag = 'scratch operand']
  #allocation4 [shape = 'f32[8,128]{1,0:T(8,128)}', space=vmem, size = 0x1000, scoped, tag = 'scratch operand']
  #allocation5 [shape = 'f32[8,8,128]{2,1,0:T(8,128)}', space=vmem, size = 0x8000, scoped, tag = 'scratch operand']
  %s0 = inlined_call_operand.hbm [shape: f32[8,8,128], index: 0, kind: input, shape index: {}]
  %s1 = inlined_call_operand.hbm [shape: f32[128,384], index: 1, kind: input, shape index: {}]
  %s2 = inlined_call_operand.hbm [shape: f32[128,384], index: 2, kind: input, shape index: {}]
  %s3 = inlined_call_operand.vmem [shape: f32[1,384], index: 3, kind: input, shape index: {}]
  %s4 = inlined_call_operand.vmem [shape: f32[1,128], index: 4, kind: input, shape index: {}]
  %s5 = inlined_call_operand.hbm [shape: f32[128,384], index: 5, kind: input, shape index: {}]
  %s6 = inlined_call_operand.hbm [shape: f32[128,384], index: 6, kind: input, shape index: {}]
  %s7 = inlined_call_operand.vmem [shape: f32[1,384], index: 7, kind: input, shape index: {}]
  %s8 = inlined_call_operand.vmem [shape: f32[1,128], index: 8, kind: input, shape index: {}]
  %s9 = inlined_call_operand.hbm [shape: f32[128,128], index: 9, kind: input, shape index: {}]
  %s10 = inlined_call_operand.vmem [shape: f32[1,128], index: 10, kind: input, shape index: {}]
  %s11 = inlined_call_operand.hbm [shape: f32[8,8,128], index: 11, kind: output, shape index: {}]
  %s12 = sld [smem:[#allocation0]]
  $region82: #{tpu_custom_call.1} parent=0
    _
  %s14 = ssub.s32 1, %s12
  %s15 = scalar_select 0, %s14, %s12
  $region1: #{tpu_custom_call.1} parent=0
    #allocation6 [shape = 'u8[32768]{0}', space=vmem, size = 0x8000, scoped, tag = 'input window, operand 0, single buffered']
    #allocation7 [shape = 's32[1]{0}', space=sflag, size = 0x4, scoped, tag = 'scoped memory for tpu_custom_call.1']
    #allocation8 [shape = 's32[1]{0}', space=sflag, size = 0x4, scoped, tag = 'scoped memory for tpu_custom_call.1']
    #allocation9 [shape = 'u8[196608]{0}', space=vmem, size = 0x30000, scoped, tag = 'input window, operand 1, single buffered']
    #allocation10 [shape = 's32[1]{0}', space=sflag, size = 0x4, scoped, tag = 'scoped memory for tpu_custom_call.1']
    #allocation11 [shape = 'u8[196608]{0}', space=vmem, size = 0x30000, scoped, tag = 'input window, operand 2, single buffered']
    #allocation12 [shape = 'u8[196608]{0}', space=vmem, size = 0x30000, scoped, tag = 'input window, operand 5, single buffered']
    #allocation13 [shape = 's32[1]{0}', space=sflag, size = 0x4, scoped, tag = 'scoped memory for tpu_custom_call.1']
    #allocation14 [shape = 'u8[196608]{0}', space=vmem, size = 0x30000, scoped, tag = 'input window, operand 6, single buffered']
    #allocation15 [shape = 'u8[65536]{0}', space=vmem, size = 0x10000, scoped, tag = 'input window, operand 9, single buffered']
    #allocation16 [shape = 's32[1]{0}', space=sflag, size = 0x4, scoped, tag = 'scoped memory for tpu_custom_call.1']
    #allocation17 [shape = 'u8[32768]{0}', space=vmem, size = 0x8000, scoped, tag = 'output window, operand 0, single buffered']
    %16 = vsyncpa [#allocation7], 0
    %17 = vsyncpa [#allocation10], 0
    %18 = vsyncpa [#allocation13], 0
    %19 = vsyncpa [#allocation16], 0
    %20 = vsyncpa [#allocation8], 0
    // Predicated region
    $region2: #{tpu_custom_call.1} parent=1 // pred_check
      _
    $region3: #{tpu_custom_call.1} parent=1 // pred_check_branch
      %22 = sbr.rel (0) target = $region5
    $region4: #{tpu_custom_call.1} parent=1 // pred_region
      %s24 = ssub.s32 1024, 1024
      %25 = vsyncadd [#allocation7], %s24
      %s26 = sshll.u32 [#allocation6], 4
      %s27 = int_to_ptr.vmem [resolvable:$true] %s26
      %32 = dma.hbm_to_vmem [thread:$0]  %s0, 1024, %s27, [#allocation7], 128, 128, 8
    $region5: #{tpu_custom_call.1} parent=1 // pred_fallthru
      _
    // Predicated region
    $region6: #{tpu_custom_call.1} parent=1 // pred_check
      _
    $region7: #{tpu_custom_call.1} parent=1 // pred_check_branch
      %34 = sbr.rel (0) target = $region9
    $region8: #{tpu_custom_call.1} parent=1 // pred_region
      %s36 = ssub.s32 6144, 6144
      %37 = vsyncadd [#allocation10], %s36
      %s38 = sshll.u32 [#allocation9], 4
      %s39 = int_to_ptr.vmem [resolvable:$true] %s38
      %44 = dma.hbm_to_vmem [thread:$0]  %s1, 6144, %s39, [#allocation10], 384, 384, 24
    $region9: #{tpu_custom_call.1} parent=1 // pred_fallthru
      _
    // Predicated region
    $region10: #{tpu_custom_call.1} parent=1 // pred_check
      _
    $region11: #{tpu_custom_call.1} parent=1 // pred_check_branch
      %46 = sbr.rel (0) target = $region13
    $region12: #{tpu_custom_call.1} parent=1 // pred_region
      %s48 = ssub.s32 6144, 6144
      %49 = vsyncadd [#allocation10], %s48
      %s50 = sshll.u32 [#allocation11], 4
      %s51 = int_to_ptr.vmem [resolvable:$true] %s50
      %56 = dma.hbm_to_vmem [thread:$0]  %s2, 6144, %s51, [#allocation10], 384, 384, 24
    $region13: #{tpu_custom_call.1} parent=1 // pred_fallthru
      _
    // Predicated region
    $region14: #{tpu_custom_call.1} parent=1 // pred_check
      _
    $region15: #{tpu_custom_call.1} parent=1 // pred_check_branch
      %58 = sbr.rel (0) target = $region17
    $region16: #{tpu_custom_call.1} parent=1 // pred_region
      _
    $region17: #{tpu_custom_call.1} parent=1 // pred_fallthru
      _
    // Predicated region
    $region18: #{tpu_custom_call.1} parent=1 // pred_check
      _
    $region19: #{tpu_custom_call.1} parent=1 // pred_check_branch
      %60 = sbr.rel (0) target = $region21
    $region20: #{tpu_custom_call.1} parent=1 // pred_region
      _
    $region21: #{tpu_custom_call.1} parent=1 // pred_fallthru
      _
    // Predicated region
    $region22: #{tpu_custom_call.1} parent=1 // pred_check
      _
    $region23: #{tpu_custom_call.1} parent=1 // pred_check_branch
      %62 = sbr.rel (0) target = $region25
    $region24: #{tpu_custom_call.1} parent=1 // pred_region
      %s64 = ssub.s32 6144, 6144
      %65 = vsyncadd [#allocation13], %s64
      %s66 = sshll.u32 [#allocation12], 4
      %s67 = int_to_ptr.vmem [resolvable:$true] %s66
      %72 = dma.hbm_to_vmem [thread:$0]  %s5, 6144, %s67, [#allocation13], 384, 384, 24
    $region25: #{tpu_custom_call.1} parent=1 // pred_fallthru
      _
    // Predicated region
    $region26: #{tpu_custom_call.1} parent=1 // pred_check
      _
    $region27: #{tpu_custom_call.1} parent=1 // pred_check_branch
      %74 = sbr.rel (0) target = $region29
    $region28: #{tpu_custom_call.1} parent=1 // pred_region
      %s76 = ssub.s32 6144, 6144
      %77 = vsyncadd [#allocation13], %s76
      %s78 = sshll.u32 [#allocation14], 4
      %s79 = int_to_ptr.vmem [resolvable:$true] %s78
      %84 = dma.hbm_to_vmem [thread:$0]  %s6, 6144, %s79, [#allocation13], 384, 384, 24
    $region29: #{tpu_custom_call.1} parent=1 // pred_fallthru
      _
    // Predicated region
    $region30: #{tpu_custom_call.1} parent=1 // pred_check
      _
    $region31: #{tpu_custom_call.1} parent=1 // pred_check_branch
      %86 = sbr.rel (0) target = $region33
    $region32: #{tpu_custom_call.1} parent=1 // pred_region
      _
    $region33: #{tpu_custom_call.1} parent=1 // pred_fallthru
      _
    // Predicated region
    $region34: #{tpu_custom_call.1} parent=1 // pred_check
      _
    $region35: #{tpu_custom_call.1} parent=1 // pred_check_branch
      %88 = sbr.rel (0) target = $region37
    $region36: #{tpu_custom_call.1} parent=1 // pred_region
      _
    $region37: #{tpu_custom_call.1} parent=1 // pred_fallthru
      _
    // Predicated region
    $region38: #{tpu_custom_call.1} parent=1 // pred_check
      _
    $region39: #{tpu_custom_call.1} parent=1 // pred_check_branch
      %90 = sbr.rel (0) target = $region41
    $region40: #{tpu_custom_call.1} parent=1 // pred_region
      %s92 = ssub.s32 2048, 2048
      %93 = vsyncadd [#allocation16], %s92
      %s94 = sshll.u32 [#allocation15], 4
      %s95 = int_to_ptr.vmem [resolvable:$true] %s94
      %100 = dma.hbm_to_vmem [thread:$0]  %s9, 2048, %s95, [#allocation16], 128, 128, 8
    $region41: #{tpu_custom_call.1} parent=1 // pred_fallthru
      _
    // Predicated region
    $region42: #{tpu_custom_call.1} parent=1 // pred_check
      _
    $region43: #{tpu_custom_call.1} parent=1 // pred_check_branch
      %102 = sbr.rel (0) target = $region45
    $region44: #{tpu_custom_call.1} parent=1 // pred_region
      _
    $region45: #{tpu_custom_call.1} parent=1 // pred_fallthru
      _
    // Predicated region
    $region46: #{tpu_custom_call.1} parent=1 // pred_check
      _
    $region47: #{tpu_custom_call.1} parent=1 // pred_check_branch
      %104 = sbr.rel (0) target = $region49
    $region48: #{tpu_custom_call.1} parent=1 // pred_region
      %105 = dma.done [#allocation7], 1024
    $region49: #{tpu_custom_call.1} parent=1 // pred_fallthru
      _
    // Predicated region
    $region50: #{tpu_custom_call.1} parent=1 // pred_check
      _
    $region51: #{tpu_custom_call.1} parent=1 // pred_check_branch
      %107 = sbr.rel (0) target = $region53
    $region52: #{tpu_custom_call.1} parent=1 // pred_region
      %108 = dma.done [#allocation10], 6144
    $region53: #{tpu_custom_call.1} parent=1 // pred_fallthru
      _
    // Predicated region
    $region54: #{tpu_custom_call.1} parent=1 // pred_check
      _
    $region55: #{tpu_custom_call.1} parent=1 // pred_check_branch
      %110 = sbr.rel (0) target = $region57
    $region56: #{tpu_custom_call.1} parent=1 // pred_region
      %111 = dma.done [#allocation10], 6144
    $region57: #{tpu_custom_call.1} parent=1 // pred_fallthru
      _
    // Predicated region
    $region58: #{tpu_custom_call.1} parent=1 // pred_check
      _
    $region59: #{tpu_custom_call.1} parent=1 // pred_check_branch
      %113 = sbr.rel (0) target = $region61
    $region60: #{tpu_custom_call.1} parent=1 // pred_region
      %114 = dma.done [#allocation13], 6144
    $region61: #{tpu_custom_call.1} parent=1 // pred_fallthru
      _
    // Predicated region
    $region62: #{tpu_custom_call.1} parent=1 // pred_check
      _
    $region63: #{tpu_custom_call.1} parent=1 // pred_check_branch
      %116 = sbr.rel (0) target = $region65
    $region64: #{tpu_custom_call.1} parent=1 // pred_region
      %117 = dma.done [#allocation13], 6144
    $region65: #{tpu_custom_call.1} parent=1 // pred_fallthru
      _
    // Predicated region
    $region66: #{tpu_custom_call.1} parent=1 // pred_check
      _
    $region67: #{tpu_custom_call.1} parent=1 // pred_check_branch
      %119 = sbr.rel (0) target = $region69
    $region68: #{tpu_custom_call.1} parent=1 // pred_region
      %120 = dma.done [#allocation16], 2048
    $region69: #{tpu_custom_call.1} parent=1 // pred_fallthru
      _
    %p121 = scmp.eq.s32.totalorder 0, 0
    // Predicated region
    $region70: #{tpu_custom_call.1} parent=1 // pred_check
      %p122 = pneg %p121
    $region71: #{tpu_custom_call.1} parent=1 // pred_check_branch
      %124 = sbr.rel (%p122) target = $region73
    $region72: #{tpu_custom_call.1} parent=1 // pred_region
      %v125 = vld [vmem:[#allocation11] sm:$0xff]
      %v126 = vld [vmem:[#allocation11 + $0x8] sm:$0xff]
      %v127 = vld [vmem:[#allocation11 + $0x10] sm:$0xff]
      %v128 = vld [vmem:[#allocation11 + $0x18] sm:$0xff]
      %v129 = vld [vmem:[#allocation11 + $0x20] sm:$0xff]
      %v130 = vld [vmem:[#allocation11 + $0x28] sm:$0xff]
      %v131 = vld [vmem:[#allocation11 + $0x30] sm:$0xff]
      %v132 = vld [vmem:[#allocation11 + $0x38] sm:$0xff]
      %v133 = vld [vmem:[#allocation11 + $0x40] sm:$0xff]
      %v134 = vld [vmem:[#allocation11 + $0x48] sm:$0xff]
      %v135 = vld [vmem:[#allocation11 + $0x50] sm:$0xff]
      %v136 = vld [vmem:[#allocation11 + $0x58] sm:$0xff]
      %v137 = vld [vmem:[#allocation11 + $0x60] sm:$0xff]
      %v138 = vld [vmem:[#allocation11 + $0x68] sm:$0xff]
      %v139 = vld [vmem:[#allocation11 + $0x70] sm:$0xff]
      %v140 = vld [vmem:[#allocation11 + $0x78] sm:$0xff]
      %v141 = vld [vmem:[#allocation11 + $0x80] sm:$0xff]
      %v142 = vld [vmem:[#allocation11 + $0x88] sm:$0xff]
      %v143 = vld [vmem:[#allocation11 + $0x90] sm:$0xff]
      %v144 = vld [vmem:[#allocation11 + $0x98] sm:$0xff]
      %v145 = vld [vmem:[#allocation11 + $0xa0] sm:$0xff]
      %v146 = vld [vmem:[#allocation11 + $0xa8] sm:$0xff]
      %v147 = vld [vmem:[#allocation11 + $0xb0] sm:$0xff]
      %v148 = vld [vmem:[#allocation11 + $0xb8] sm:$0xff]
      %v149 = vld [vmem:[#allocation11 + $0xc0] sm:$0xff]
      %v150 = vld [vmem:[#allocation11 + $0xc8] sm:$0xff]
      %v151 = vld [vmem:[#allocation11 + $0xd0] sm:$0xff]
      %v152 = vld [vmem:[#allocation11 + $0xd8] sm:$0xff]
      %v153 = vld [vmem:[#allocation11 + $0xe0] sm:$0xff]
      %v154 = vld [vmem:[#allocation11 + $0xe8] sm:$0xff]
      %v155 = vld [vmem:[#allocation11 + $0xf0] sm:$0xff]
      %v156 = vld [vmem:[#allocation11 + $0xf8] sm:$0xff]
      %v157 = vld [vmem:[#allocation11 + $0x100] sm:$0xff]
      %v158 = vld [vmem:[#allocation11 + $0x108] sm:$0xff]
      %v159 = vld [vmem:[#allocation11 + $0x110] sm:$0xff]
      %v160 = vld [vmem:[#allocation11 + $0x118] sm:$0xff]
      %v161 = vld [vmem:[#allocation11 + $0x120] sm:$0xff]
      %v162 = vld [vmem:[#allocation11 + $0x128] sm:$0xff]
      %v163 = vld [vmem:[#allocation11 + $0x130] sm:$0xff]
      %v164 = vld [vmem:[#allocation11 + $0x138] sm:$0xff]
      %v165 = vld [vmem:[#allocation11 + $0x140] sm:$0xff]
      %v166 = vld [vmem:[#allocation11 + $0x148] sm:$0xff]
      %v167 = vld [vmem:[#allocation11 + $0x150] sm:$0xff]
      %v168 = vld [vmem:[#allocation11 + $0x158] sm:$0xff]
      %v169 = vld [vmem:[#allocation11 + $0x160] sm:$0xff]
      %v170 = vld [vmem:[#allocation11 + $0x168] sm:$0xff]
      %v171 = vld [vmem:[#allocation11 + $0x170] sm:$0xff]
      %v172 = vld [vmem:[#allocation11 + $0x178] sm:$0xff]
      %v173 = vld [vmem:[%s4] sm:$0x1]
      %v175 = vlaneseq
      %v176 = vshrl.u32 %v175, 7
      %v177 = vsub.s32 0, %v176
      %v178 = vrot.slane %v173, %v177
      %v180 = vld [vmem:[#allocation6] sm:$0xff]
      %v181 = vld [vmem:[#allocation6 + $0x8] sm:$0xff]
      %v182 = vld [vmem:[#allocation6 + $0x10] sm:$0xff]
      %v183 = vld [vmem:[#allocation6 + $0x18] sm:$0xff]
      %v184 = vld [vmem:[#allocation6 + $0x20] sm:$0xff]
      %v185 = vld [vmem:[#allocation6 + $0x28] sm:$0xff]
      %v186 = vld [vmem:[#allocation6 + $0x30] sm:$0xff]
      %v187 = vld [vmem:[#allocation6 + $0x38] sm:$0xff]
      %v188 = vld [vmem:[#allocation9] sm:$0xff]
      %v189 = vld [vmem:[#allocation9 + $0x8] sm:$0xff]
      %v190 = vld [vmem:[#allocation9 + $0x10] sm:$0xff]
      %v191 = vld [vmem:[#allocation9 + $0x18] sm:$0xff]
      %v192 = vld [vmem:[#allocation9 + $0x20] sm:$0xff]
      %v193 = vld [vmem:[#allocation9 + $0x28] sm:$0xff]
      %v194 = vld [vmem:[#allocation9 + $0x30] sm:$0xff]
      %v195 = vld [vmem:[#allocation9 + $0x38] sm:$0xff]
      %v196 = vld [vmem:[#allocation9 + $0x40] sm:$0xff]
      %v197 = vld [vmem:[#allocation9 + $0x48] sm:$0xff]
      %v198 = vld [vmem:[#allocation9 + $0x50] sm:$0xff]
      %v199 = vld [vmem:[#allocation9 + $0x58] sm:$0xff]
      %v200 = vld [vmem:[#allocation9 + $0x60] sm:$0xff]
      %v201 = vld [vmem:[#allocation9 + $0x68] sm:$0xff]
      %v202 = vld [vmem:[#allocation9 + $0x70] sm:$0xff]
      %v203 = vld [vmem:[#allocation9 + $0x78] sm:$0xff]
      %v204 = vld [vmem:[#allocation9 + $0x80] sm:$0xff]
      %v205 = vld [vmem:[#allocation9 + $0x88] sm:$0xff]
      %v206 = vld [vmem:[#allocation9 + $0x90] sm:$0xff]
      %v207 = vld [vmem:[#allocation9 + $0x98] sm:$0xff]
      %v208 = vld [vmem:[#allocation9 + $0xa0] sm:$0xff]
      %v209 = vld [vmem:[#allocation9 + $0xa8] sm:$0xff]
      %v210 = vld [vmem:[#allocation9 + $0xb0] sm:$0xff]
      %v211 = vld [vmem:[#allocation9 + $0xb8] sm:$0xff]
      %v212 = vld [vmem:[#allocation9 + $0xc0] sm:$0xff]
      %v213 = vld [vmem:[#allocation9 + $0xc8] sm:$0xff]
      %v214 = vld [vmem:[#allocation9 + $0xd0] sm:$0xff]
      %v215 = vld [vmem:[#allocation9 + $0xd8] sm:$0xff]
      %v216 = vld [vmem:[#allocation9 + $0xe0] sm:$0xff]
      %v217 = vld [vmem:[#allocation9 + $0xe8] sm:$0xff]
      %v218 = vld [vmem:[#allocation9 + $0xf0] sm:$0xff]
      %v219 = vld [vmem:[#allocation9 + $0xf8] sm:$0xff]
      %v220 = vld [vmem:[#allocation9 + $0x100] sm:$0xff]
      %v221 = vld [vmem:[#allocation9 + $0x108] sm:$0xff]
      %v222 = vld [vmem:[#allocation9 + $0x110] sm:$0xff]
      %v223 = vld [vmem:[#allocation9 + $0x118] sm:$0xff]
      %v224 = vld [vmem:[#allocation9 + $0x120] sm:$0xff]
      %v225 = vld [vmem:[#allocation9 + $0x128] sm:$0xff]
      %v226 = vld [vmem:[#allocation9 + $0x130] sm:$0xff]
      %v227 = vld [vmem:[#allocation9 + $0x138] sm:$0xff]
      %v228 = vld [vmem:[#allocation9 + $0x140] sm:$0xff]
      %v229 = vld [vmem:[#allocation9 + $0x148] sm:$0xff]
      %v230 = vld [vmem:[#allocation9 + $0x150] sm:$0xff]
      %v231 = vld [vmem:[#allocation9 + $0x158] sm:$0xff]
      %v232 = vld [vmem:[#allocation9 + $0x160] sm:$0xff]
      %v233 = vld [vmem:[#allocation9 + $0x168] sm:$0xff]
      %v234 = vld [vmem:[#allocation9 + $0x170] sm:$0xff]
      %v235 = vld [vmem:[#allocation9 + $0x178] sm:$0xff]
      %v236 = vld [vmem:[%s3] sm:$0x7]
      %v238 = vlaneseq
      %v239 = vshrl.u32 %v238, 7
      %v240 = vsub.s32 0, %v239
      %v241 = vrot.slane %v236, %v240
      %v242 = vlaneseq
      %v243 = vshrl.u32 %v242, 7
      %v244 = vsub.s32 1, %v243
      %v245 = vrot.slane %v236, %v244
      %v246 = vlaneseq
      %v247 = vshrl.u32 %v246, 7
      %v248 = vsub.s32 2, %v247
      %v249 = vrot.slane %v236, %v248
      %253 = vmatprep.subr.mxu0 %v189
      %254 = vmatpush1.msra.mxu0 %v188
      %255 = vmatprep.subr.mxu0 %v192
      %256 = vmatpush1.msra.mxu0 %v191
      %257 = vmatprep.subr.mxu0 %v195
      %258 = vmatpush1.msra.mxu0 %v194
      %259 = vmatprep.subr.mxu0 %v198
      %260 = vmatpush1.msra.mxu0 %v197
      %261 = vmatprep.subr.mxu0 %v201
      %262 = vmatpush1.msra.mxu0 %v200
      %263 = vmatprep.subr.mxu0 %v204
      %264 = vmatpush1.msra.mxu0 %v203
      %265 = vmatprep.subr.mxu0 %v207
      %266 = vmatpush1.msra.mxu0 %v206
      %267 = vmatprep.subr.mxu0 %v210
      %268 = vmatpush1.msra.mxu0 %v209
      %269 = vmatprep.subr.mxu0 %v213
      %270 = vmatpush1.msra.mxu0 %v212
      %271 = vmatprep.subr.mxu0 %v216
      %272 = vmatpush1.msra.mxu0 %v215
      %273 = vmatprep.subr.mxu0 %v219
      %274 = vmatpush1.msra.mxu0 %v218
      %275 = vmatprep.subr.mxu0 %v222
      %276 = vmatpush1.msra.mxu0 %v221
      %277 = vmatprep.subr.mxu0 %v225
      %278 = vmatpush1.msra.mxu0 %v224
      %279 = vmatprep.subr.mxu0 %v228
      %280 = vmatpush1.msra.mxu0 %v227
      %281 = vmatprep.subr.mxu0 %v231
      %282 = vmatpush1.msra.mxu0 %v230
      %283 = vmatprep.subr.mxu0 %v234
      %284 = vmatpush1.msra.mxu0 %v233
      %285 = vmatprep.subr.mxu0 0.0
      %286 = vmatpush1.msra.mxu0 0.0
      %287 = vmatprep.subr.mxu0 0.0
      %288 = vmatpush1.msra.mxu0 0.0
      %289 = vmatprep.subr.mxu0 0.0
      %290 = vmatpush1.msra.mxu0 0.0
      %291 = vmatprep.subr.mxu0 0.0
      %292 = vmatpush1.msra.mxu0 0.0
      %293 = vmatprep.subr.mxu0 0.0
      %294 = vmatpush1.msra.mxu0 0.0
      %295 = vmatprep.subr.mxu0 0.0
      %296 = vmatpush1.msra.mxu0 0.0
      %297 = vmatprep.subr.mxu0 0.0
      %298 = vmatpush1.msra.mxu0 0.0
      %299 = vmatprep.subr.mxu0 0.0
      %300 = vmatpush1.msra.mxu0 0.0
      %301 = vmatprep.subr.mxu0 0.0
      %302 = vmatpush1.msra.mxu0 0.0
      %303 = vmatprep.subr.mxu0 0.0
      %304 = vmatpush1.msra.mxu0 0.0
      %305 = vmatprep.subr.mxu0 0.0
      %306 = vmatpush1.msra.mxu0 0.0
      %307 = vmatprep.subr.mxu0 0.0
      %308 = vmatpush1.msra.mxu0 0.0
      %309 = vmatprep.subr.mxu0 0.0
      %310 = vmatpush1.msra.mxu0 0.0
      %311 = vmatprep.subr.mxu0 0.0
      %312 = vmatpush1.msra.mxu0 0.0
      %313 = vmatprep.subr.mxu0 0.0
      %314 = vmatpush1.msra.mxu0 0.0
      %315 = vmatprep.subr.mxu0 0.0
      %316 = vmatpush1.msra.mxu0 0.0
      %317 = vmatprep.mubr.f32.mxu0 0.0
      %318 = vmatmul.mubr.f32.gmra.mrb[0].mxu0 %v180
      %v319 = vpop.f32.mrb[0].mxu0
      %v320 = vadd.f32 %v241, %v319
      %v321 = vpop.f32.mrb[0].mxu0
      %v322 = vadd.f32 %v245, %v321
      %323 = vmatprep.mubr.f32.mxu0 0.0
      %324 = vmatmul.mubr.f32.gmra.mrb[0].mxu0 %v181
      %v325 = vpop.f32.mrb[0].mxu0
      %v326 = vadd.f32 %v241, %v325
      %v327 = vpop.f32.mrb[0].mxu0
      %v328 = vadd.f32 %v245, %v327
      %329 = vmatprep.mubr.f32.mxu0 0.0
      %330 = vmatmul.mubr.f32.gmra.mrb[0].mxu0 %v182
      %v331 = vpop.f32.mrb[0].mxu0
      %v332 = vadd.f32 %v241, %v331
      %v333 = vpop.f32.mrb[0].mxu0
      %v334 = vadd.f32 %v245, %v333
      %335 = vmatprep.mubr.f32.mxu0 0.0
      %336 = vmatmul.mubr.f32.gmra.mrb[0].mxu0 %v183
      %v337 = vpop.f32.mrb[0].mxu0
      %v338 = vadd.f32 %v241, %v337
      %v339 = vpop.f32.mrb[0].mxu0
      %v340 = vadd.f32 %v245, %v339
      %341 = vmatprep.mubr.f32.mxu0 0.0
      %342 = vmatmul.mubr.f32.gmra.mrb[0].mxu0 %v184
      %v343 = vpop.f32.mrb[0].mxu0
      %v344 = vadd.f32 %v241, %v343
      %v345 = vpop.f32.mrb[0].mxu0
      %v346 = vadd.f32 %v245, %v345
      %347 = vmatprep.mubr.f32.mxu0 0.0
      %348 = vmatmul.mubr.f32.gmra.mrb[0].mxu0 %v185
      %v349 = vpop.f32.mrb[0].mxu0
      %v350 = vadd.f32 %v241, %v349
      %v351 = vpop.f32.mrb[0].mxu0
      %v352 = vadd.f32 %v245, %v351
      %353 = vmatprep.mubr.f32.mxu0 0.0
      %354 = vmatmul.mubr.f32.gmra.mrb[0].mxu0 %v186
      %v355 = vpop.f32.mrb[0].mxu0
      %v356 = vadd.f32 %v241, %v355
      %v357 = vpop.f32.mrb[0].mxu0
      %v358 = vadd.f32 %v245, %v357
      %359 = vmatprep.mubr.f32.mxu0 0.0
      %360 = vmatmul.mubr.f32.gmra.mrb[0].mxu0 %v187
      %v361 = vpop.f32.mrb[0].mxu0
      %v362 = vadd.f32 %v241, %v361
      %v363 = vpop.f32.mrb[0].mxu0
      %v364 = vadd.f32 %v245, %v363
      %365 = vdwg.mxu0
      %366 = vmatprep.subr.mxu0 0.0
      %367 = vmatpush1.msra.mxu0 %v190
      %368 = vmatprep.subr.mxu0 0.0
      %369 = vmatpush1.msra.mxu0 %v193
      %370 = vmatprep.subr.mxu0 0.0
      %371 = vmatpush1.msra.mxu0 %v196
      %372 = vmatprep.subr.mxu0 0.0
      %373 = vmatpush1.msra.mxu0 %v199
      %374 = vmatprep.subr.mxu0 0.0
      %375 = vmatpush1.msra.mxu0 %v202
      %376 = vmatprep.subr.mxu0 0.0
      %377 = vmatpush1.msra.mxu0 %v205
      %378 = vmatprep.subr.mxu0 0.0
      %379 = vmatpush1.msra.mxu0 %v208
      %380 = vmatprep.subr.mxu0 0.0
      %381 = vmatpush1.msra.mxu0 %v211
      %382 = vmatprep.subr.mxu0 0.0
      %383 = vmatpush1.msra.mxu0 %v214
      %384 = vmatprep.subr.mxu0 0.0
      %385 = vmatpush1.msra.mxu0 %v217
      %386 = vmatprep.subr.mxu0 0.0
      %387 = vmatpush1.msra.mxu0 %v220
      %388 = vmatprep.subr.mxu0 0.0
      %389 = vmatpush1.msra.mxu0 %v223
      %390 = vmatprep.subr.mxu0 0.0
      %391 = vmatpush1.msra.mxu0 %v226
      %392 = vmatprep.subr.mxu0 0.0
      %393 = vmatpush1.msra.mxu0 %v229
      %394 = vmatprep.subr.mxu0 0.0
      %395 = vmatpush1.msra.mxu0 %v232
      %396 = vmatprep.subr.mxu0 0.0
      %397 = vmatpush1.msra.mxu0 %v235
      %398 = vmatprep.subr.mxu0 0.0
      %399 = vmatpush1.msra.mxu0 0.0
      %400 = vmatprep.subr.mxu0 0.0
      %401 = vmatpush1.msra.mxu0 0.0
      %402 = vmatprep.subr.mxu0 0.0
      %403 = vmatpush1.msra.mxu0 0.0
      %404 = vmatprep.subr.mxu0 0.0
      %405 = vmatpush1.msra.mxu0 0.0
      %406 = vmatprep.subr.mxu0 0.0
      %407 = vmatpush1.msra.mxu0 0.0
      %408 = vmatprep.subr.mxu0 0.0
      %409 = vmatpush1.msra.mxu0 0.0
      %410 = vmatprep.subr.mxu0 0.0
      %411 = vmatpush1.msra.mxu0 0.0
      %412 = vmatprep.subr.mxu0 0.0
      %413 = vmatpush1.msra.mxu0 0.0
      %414 = vmatprep.subr.mxu0 0.0
      %415 = vmatpush1.msra.mxu0 0.0
      %416 = vmatprep.subr.mxu0 0.0
      %417 = vmatpush1.msra.mxu0 0.0
      %418 = vmatprep.subr.mxu0 0.0
      %419 = vmatpush1.msra.mxu0 0.0
      %420 = vmatprep.subr.mxu0 0.0
      %421 = vmatpush1.msra.mxu0 0.0
      %422 = vmatprep.subr.mxu0 0.0
      %423 = vmatpush1.msra.mxu0 0.0
      %424 = vmatprep.subr.mxu0 0.0
      %425 = vmatpush1.msra.mxu0 0.0
      %426 = vmatprep.subr.mxu0 0.0
      %427 = vmatpush1.msra.mxu0 0.0
      %428 = vmatprep.subr.mxu0 0.0
      %429 = vmatpush1.msra.mxu0 0.0
      %430 = vmatprep.mubr.f32.mxu0 0.0
      %431 = vmatmul.mubr.f32.gmra.mrb[0].mxu0 %v180
      %v432 = vpop.f32.mrb[0].mxu0
      %v433 = vadd.f32 %v249, %v432
      %v434 = vpop.f32.mrb[0].mxu0
      %435 = vmatprep.mubr.f32.mxu0 0.0
      %436 = vmatmul.mubr.f32.gmra.mrb[0].mxu0 %v181
      %v437 = vpop.f32.mrb[0].mxu0
      %v438 = vadd.f32 %v249, %v437
      %v439 = vpop.f32.mrb[0].mxu0
      %440 = vmatprep.mubr.f32.mxu0 0.0
      %441 = vmatmul.mubr.f32.gmra.mrb[0].mxu0 %v182
      %v442 = vpop.f32.mrb[0].mxu0
      %v443 = vadd.f32 %v249, %v442
      %v444 = vpop.f32.mrb[0].mxu0
      %445 = vmatprep.mubr.f32.mxu0 0.0
      %446 = vmatmul.mubr.f32.gmra.mrb[0].mxu0 %v183
      %v447 = vpop.f32.mrb[0].mxu0
      %v448 = vadd.f32 %v249, %v447
      %v449 = vpop.f32.mrb[0].mxu0
      %450 = vmatprep.mubr.f32.mxu0 0.0
      %451 = vmatmul.mubr.f32.gmra.mrb[0].mxu0 %v184
      %v452 = vpop.f32.mrb[0].mxu0
      %v453 = vadd.f32 %v249, %v452
      %v454 = vpop.f32.mrb[0].mxu0
      %455 = vmatprep.mubr.f32.mxu0 0.0
      %456 = vmatmul.mubr.f32.gmra.mrb[0].mxu0 %v185
      %v457 = vpop.f32.mrb[0].mxu0
      %v458 = vadd.f32 %v249, %v457
      %v459 = vpop.f32.mrb[0].mxu0
      %460 = vmatprep.mubr.f32.mxu0 0.0
      %461 = vmatmul.mubr.f32.gmra.mrb[0].mxu0 %v186
      %v462 = vpop.f32.mrb[0].mxu0
      %v463 = vadd.f32 %v249, %v462
      %v464 = vpop.f32.mrb[0].mxu0
      %465 = vmatprep.mubr.f32.mxu0 0.0
      %466 = vmatmul.mubr.f32.gmra.mrb[0].mxu0 %v187
      %v467 = vpop.f32.mrb[0].mxu0
      %v468 = vadd.f32 %v249, %v467
      %v469 = vpop.f32.mrb[0].mxu0
      %470 = vdwg.mxu0
      %471 = vst [vmem:[#allocation2] sm:$0xff] %v320
      %472 = vst [vmem:[#allocation2 + $0x8] sm:$0xff] %v322
      %473 = vst [vmem:[#allocation2 + $0x10] sm:$0xff] %v433
      %474 = vst [vmem:[#allocation2 + $0x18] sm:$0xff] %v326
      %475 = vst [vmem:[#allocation2 + $0x20] sm:$0xff] %v328
      %476 = vst [vmem:[#allocation2 + $0x28] sm:$0xff] %v438
      %477 = vst [vmem:[#allocation2 + $0x30] sm:$0xff] %v332
      %478 = vst [vmem:[#allocation2 + $0x38] sm:$0xff] %v334
      %479 = vst [vmem:[#allocation2 + $0x40] sm:$0xff] %v443
      %480 = vst [vmem:[#allocation2 + $0x48] sm:$0xff] %v338
      %481 = vst [vmem:[#allocation2 + $0x50] sm:$0xff] %v340
      %482 = vst [vmem:[#allocation2 + $0x58] sm:$0xff] %v448
      %483 = vst [vmem:[#allocation2 + $0x60] sm:$0xff] %v344
      %484 = vst [vmem:[#allocation2 + $0x68] sm:$0xff] %v346
      %485 = vst [vmem:[#allocation2 + $0x70] sm:$0xff] %v453
      %486 = vst [vmem:[#allocation2 + $0x78] sm:$0xff] %v350
      %487 = vst [vmem:[#allocation2 + $0x80] sm:$0xff] %v352
      %488 = vst [vmem:[#allocation2 + $0x88] sm:$0xff] %v458
      %489 = vst [vmem:[#allocation2 + $0x90] sm:$0xff] %v356
      %490 = vst [vmem:[#allocation2 + $0x98] sm:$0xff] %v358
      %491 = vst [vmem:[#allocation2 + $0xa0] sm:$0xff] %v463
      %492 = vst [vmem:[#allocation2 + $0xa8] sm:$0xff] %v362
      %493 = vst [vmem:[#allocation2 + $0xb0] sm:$0xff] %v364
      %494 = vst [vmem:[#allocation2 + $0xb8] sm:$0xff] %v468
      %495 = vmatprep.subr.mxu0 %v126
      %496 = vmatpush1.msra.mxu0 %v125
      %497 = vmatprep.subr.mxu0 %v129
      %498 = vmatpush1.msra.mxu0 %v128
      %499 = vmatprep.subr.mxu0 %v132
      %500 = vmatpush1.msra.mxu0 %v131
      %501 = vmatprep.subr.mxu0 %v135
      %502 = vmatpush1.msra.mxu0 %v134
      %503 = vmatprep.subr.mxu0 %v138
      %504 = vmatpush1.msra.mxu0 %v137
      %505 = vmatprep.subr.mxu0 %v141
      %506 = vmatpush1.msra.mxu0 %v140
      %507 = vmatprep.subr.mxu0 %v144
      %508 = vmatpush1.msra.mxu0 %v143
      %509 = vmatprep.subr.mxu0 %v147
      %510 = vmatpush1.msra.mxu0 %v146
      %511 = vmatprep.subr.mxu0 %v150
      %512 = vmatpush1.msra.mxu0 %v149
      %513 = vmatprep.subr.mxu0 %v153
      %514 = vmatpush1.msra.mxu0 %v152
      %515 = vmatprep.subr.mxu0 %v156
      %516 = vmatpush1.msra.mxu0 %v155
      %517 = vmatprep.subr.mxu0 %v159
      %518 = vmatpush1.msra.mxu0 %v158
      %519 = vmatprep.subr.mxu0 %v162
      %520 = vmatpush1.msra.mxu0 %v161
      %521 = vmatprep.subr.mxu0 %v165
      %522 = vmatpush1.msra.mxu0 %v164
      %523 = vmatprep.subr.mxu0 %v168
      %524 = vmatpush1.msra.mxu0 %v167
      %525 = vmatprep.subr.mxu0 %v171
      %526 = vmatpush1.msra.mxu0 %v170
      %527 = vmatprep.subr.mxu0 0.0
      %528 = vmatpush1.msra.mxu0 0.0
      %529 = vmatprep.subr.mxu0 0.0
      %530 = vmatpush1.msra.mxu0 0.0
      %531 = vmatprep.subr.mxu0 0.0
      %532 = vmatpush1.msra.mxu0 0.0
      %533 = vmatprep.subr.mxu0 0.0
      %534 = vmatpush1.msra.mxu0 0.0
      %535 = vmatprep.subr.mxu0 0.0
      %536 = vmatpush1.msra.mxu0 0.0
      %537 = vmatprep.subr.mxu0 0.0
      %538 = vmatpush1.msra.mxu0 0.0
      %539 = vmatprep.subr.mxu0 0.0
      %540 = vmatpush1.msra.mxu0 0.0
      %541 = vmatprep.subr.mxu0 0.0
      %542 = vmatpush1.msra.mxu0 0.0
      %543 = vmatprep.subr.mxu0 0.0
      %544 = vmatpush1.msra.mxu0 0.0
      %545 = vmatprep.subr.mxu0 0.0
      %546 = vmatpush1.msra.mxu0 0.0
      %547 = vmatprep.subr.mxu0 0.0
      %548 = vmatpush1.msra.mxu0 0.0
      %549 = vmatprep.subr.mxu0 0.0
      %550 = vmatpush1.msra.mxu0 0.0
      %551 = vmatprep.subr.mxu0 0.0
      %552 = vmatpush1.msra.mxu0 0.0
      %553 = vmatprep.subr.mxu0 0.0
      %554 = vmatpush1.msra.mxu0 0.0
      %555 = vmatprep.subr.mxu0 0.0
      %556 = vmatpush1.msra.mxu0 0.0
      %557 = vmatprep.subr.mxu0 0.0
      %558 = vmatpush1.msra.mxu0 0.0
      %559 = vmatprep.mubr.f32.mxu0 0.0
      %560 = vmatmul.mubr.f32.gmra.mrb[0].mxu0 0.0
      %v561 = vpop.f32.mrb[0].mxu0
      %v562 = vadd.f32 0.0, %v561
      %v563 = vpop.f32.mrb[0].mxu0
      %v564 = vadd.f32 0.0, %v563
      %565 = vdwg.mxu0
      %566 = vmatprep.subr.mxu0 0.0
      %567 = vmatpush1.msra.mxu0 %v127
      %568 = vmatprep.subr.mxu0 0.0
      %569 = vmatpush1.msra.mxu0 %v130
      %570 = vmatprep.subr.mxu0 0.0
      %571 = vmatpush1.msra.mxu0 %v133
      %572 = vmatprep.subr.mxu0 0.0
      %573 = vmatpush1.msra.mxu0 %v136
      %574 = vmatprep.subr.mxu0 0.0
      %575 = vmatpush1.msra.mxu0 %v139
      %576 = vmatprep.subr.mxu0 0.0
      %577 = vmatpush1.msra.mxu0 %v142
      %578 = vmatprep.subr.mxu0 0.0
      %579 = vmatpush1.msra.mxu0 %v145
      %580 = vmatprep.subr.mxu0 0.0
      %581 = vmatpush1.msra.mxu0 %v148
      %582 = vmatprep.subr.mxu0 0.0
      %583 = vmatpush1.msra.mxu0 %v151
      %584 = vmatprep.subr.mxu0 0.0
      %585 = vmatpush1.msra.mxu0 %v154
      %586 = vmatprep.subr.mxu0 0.0
      %587 = vmatpush1.msra.mxu0 %v157
      %588 = vmatprep.subr.mxu0 0.0
      %589 = vmatpush1.msra.mxu0 %v160
      %590 = vmatprep.subr.mxu0 0.0
      %591 = vmatpush1.msra.mxu0 %v163
      %592 = vmatprep.subr.mxu0 0.0
      %593 = vmatpush1.msra.mxu0 %v166
      %594 = vmatprep.subr.mxu0 0.0
      %595 = vmatpush1.msra.mxu0 %v169
      %596 = vmatprep.subr.mxu0 0.0
      %597 = vmatpush1.msra.mxu0 %v172
      %598 = vmatprep.subr.mxu0 0.0
      %599 = vmatpush1.msra.mxu0 0.0
      %600 = vmatprep.subr.mxu0 0.0
      %601 = vmatpush1.msra.mxu0 0.0
      %602 = vmatprep.subr.mxu0 0.0
      %603 = vmatpush1.msra.mxu0 0.0
      %604 = vmatprep.subr.mxu0 0.0
      %605 = vmatpush1.msra.mxu0 0.0
      %606 = vmatprep.subr.mxu0 0.0
      %607 = vmatpush1.msra.mxu0 0.0
      %608 = vmatprep.subr.mxu0 0.0
      %609 = vmatpush1.msra.mxu0 0.0
      %610 = vmatprep.subr.mxu0 0.0
      %611 = vmatpush1.msra.mxu0 0.0
      %612 = vmatprep.subr.mxu0 0.0
      %613 = vmatpush1.msra.mxu0 0.0
      %614 = vmatprep.subr.mxu0 0.0
      %615 = vmatpush1.msra.mxu0 0.0
      %616 = vmatprep.subr.mxu0 0.0
      %617 = vmatpush1.msra.mxu0 0.0
      %618 = vmatprep.subr.mxu0 0.0
      %619 = vmatpush1.msra.mxu0 0.0
      %620 = vmatprep.subr.mxu0 0.0
      %621 = vmatpush1.msra.mxu0 0.0
      %622 = vmatprep.subr.mxu0 0.0
      %623 = vmatpush1.msra.mxu0 0.0
      %624 = vmatprep.subr.mxu0 0.0
      %625 = vmatpush1.msra.mxu0 0.0
      %626 = vmatprep.subr.mxu0 0.0
      %627 = vmatpush1.msra.mxu0 0.0
      %628 = vmatprep.subr.mxu0 0.0
      %629 = vmatpush1.msra.mxu0 0.0
      %630 = vmatprep.mubr.f32.mxu0 0.0
      %631 = vmatmul.mubr.f32.gmra.mrb[0].mxu0 0.0
      %v632 = vpop.f32.mrb[0].mxu0
      %v633 = vadd.f32 0.0, %v632
      %v634 = vpop.f32.mrb[0].mxu0
      %635 = vdwg.mxu0
      %v636 = vld [vmem:[#allocation2] sm:$0xff]
      %v637 = vld [vmem:[#allocation2 + $0x8] sm:$0xff]
      %v638 = vld [vmem:[#allocation2 + $0x10] sm:$0xff]
      %v639 = vadd.f32 %v636, %v562
      %v640 = vxor.u32 %v639, 2147483648
      %v641 = vmul.f32 %v640, 1.442695
      %v642 = vpow.pop %v641
      %v643 = vadd.f32 %v642, 1.0
      %v644 = vrcp.pop %v643
      %v645 = vmul.f32 1.0, %v644
      %v646 = vadd.f32 %v637, %v564
      %v647 = vxor.u32 %v646, 2147483648
      %v648 = vmul.f32 %v647, 1.442695
      %v649 = vpow.pop %v648
      %v650 = vadd.f32 %v649, 1.0
      %v651 = vrcp.pop %v650
      %v652 = vmul.f32 1.0, %v651
      %v653 = vadd.f32 %v633, %v178
      %v654 = vmul.f32 %v645, %v653
      %v655 = vadd.f32 %v638, %v654
      %v656 = vtanh.pop %v655
      %v657 = vsub.f32 1.0, %v652
      %v658 = vmul.f32 %v657, %v656
      %v659 = vmul.f32 %v652, 0.0
      %v660 = vadd.f32 %v658, %v659
      %661 = vmatprep.subr.mxu0 %v126
      %662 = vmatpush1.msra.mxu0 %v125
      %663 = vmatprep.subr.mxu0 %v129
      %664 = vmatpush1.msra.mxu0 %v128
      %665 = vmatprep.subr.mxu0 %v132
      %666 = vmatpush1.msra.mxu0 %v131
      %667 = vmatprep.subr.mxu0 %v135
      %668 = vmatpush1.msra.mxu0 %v134
      %669 = vmatprep.subr.mxu0 %v138
      %670 = vmatpush1.msra.mxu0 %v137
      %671 = vmatprep.subr.mxu0 %v141
      %672 = vmatpush1.msra.mxu0 %v140
      %673 = vmatprep.subr.mxu0 %v144
      %674 = vmatpush1.msra.mxu0 %v143
      %675 = vmatprep.subr.mxu0 %v147
      %676 = vmatpush1.msra.mxu0 %v146
      %677 = vmatprep.subr.mxu0 %v150
      %678 = vmatpush1.msra.mxu0 %v149
      %679 = vmatprep.subr.mxu0 %v153
      %680 = vmatpush1.msra.mxu0 %v152
      %681 = vmatprep.subr.mxu0 %v156
      %682 = vmatpush1.msra.mxu0 %v155
      %683 = vmatprep.subr.mxu0 %v159
      %684 = vmatpush1.msra.mxu0 %v158
      %685 = vmatprep.subr.mxu0 %v162
      %686 = vmatpush1.msra.mxu0 %v161
      %687 = vmatprep.subr.mxu0 %v165
      %688 = vmatpush1.msra.mxu0 %v164
      %689 = vmatprep.subr.mxu0 %v168
      %690 = vmatpush1.msra.mxu0 %v167
      %691 = vmatprep.subr.mxu0 %v171
      %692 = vmatpush1.msra.mxu0 %v170
      %693 = vmatprep.subr.mxu0 0.0
      %694 = vmatpush1.msra.mxu0 0.0
      %695 = vmatprep.subr.mxu0 0.0
      %696 = vmatpush1.msra.mxu0 0.0
      %697 = vmatprep.subr.mxu0 0.0
      %698 = vmatpush1.msra.mxu0 0.0
      %699 = vmatprep.subr.mxu0 0.0
      %700 = vmatpush1.msra.mxu0 0.0
      %701 = vmatprep.subr.mxu0 0.0
      %702 = vmatpush1.msra.mxu0 0.0
      %703 = vmatprep.subr.mxu0 0.0
      %704 = vmatpush1.msra.mxu0 0.0
      %705 = vmatprep.subr.mxu0 0.0
      %706 = vmatpush1.msra.mxu0 0.0
      %707 = vmatprep.subr.mxu0 0.0
      %708 = vmatpush1.msra.mxu0 0.0
      %709 = vmatprep.subr.mxu0 0.0
      %710 = vmatpush1.msra.mxu0 0.0
      %711 = vmatprep.subr.mxu0 0.0
      %712 = vmatpush1.msra.mxu0 0.0
      %713 = vmatprep.subr.mxu0 0.0
      %714 = vmatpush1.msra.mxu0 0.0
      %715 = vmatprep.subr.mxu0 0.0
      %716 = vmatpush1.msra.mxu0 0.0
      %717 = vmatprep.subr.mxu0 0.0
      %718 = vmatpush1.msra.mxu0 0.0
      %719 = vmatprep.subr.mxu0 0.0
      %720 = vmatpush1.msra.mxu0 0.0
      %721 = vmatprep.subr.mxu0 0.0
      %722 = vmatpush1.msra.mxu0 0.0
      %723 = vmatprep.subr.mxu0 0.0
      %724 = vmatpush1.msra.mxu0 0.0
      %725 = vmatprep.mubr.f32.mxu0 0.0
      %726 = vmatmul.mubr.f32.gmra.mrb[0].mxu0 %v660
      %v727 = vpop.f32.mrb[0].mxu0
      %v728 = vadd.f32 0.0, %v727
      %v729 = vpop.f32.mrb[0].mxu0
      %v730 = vadd.f32 0.0, %v729
      %731 = vdwg.mxu0
      %732 = vmatprep.subr.mxu0 0.0
      %733 = vmatpush1.msra.mxu0 %v127
      %734 = vmatprep.subr.mxu0 0.0
      %735 = vmatpush1.msra.mxu0 %v130
      %736 = vmatprep.subr.mxu0 0.0
      %737 = vmatpush1.msra.mxu0 %v133
      %738 = vmatprep.subr.mxu0 0.0
      %739 = vmatpush1.msra.mxu0 %v136
      %740 = vmatprep.subr.mxu0 0.0
      %741 = vmatpush1.msra.mxu0 %v139
      %742 = vmatprep.subr.mxu0 0.0
      %743 = vmatpush1.msra.mxu0 %v142
      %744 = vmatprep.subr.mxu0 0.0
      %745 = vmatpush1.msra.mxu0 %v145
      %746 = vmatprep.subr.mxu0 0.0
      %747 = vmatpush1.msra.mxu0 %v148
      %748 = vmatprep.subr.mxu0 0.0
      %749 = vmatpush1.msra.mxu0 %v151
      %750 = vmatprep.subr.mxu0 0.0
      %751 = vmatpush1.msra.mxu0 %v154
      %752 = vmatprep.subr.mxu0 0.0
      %753 = vmatpush1.msra.mxu0 %v157
      %754 = vmatprep.subr.mxu0 0.0
      %755 = vmatpush1.msra.mxu0 %v160
      %756 = vmatprep.subr.mxu0 0.0
      %757 = vmatpush1.msra.mxu0 %v163
      %758 = vmatprep.subr.mxu0 0.0
      %759 = vmatpush1.msra.mxu0 %v166
      %760 = vmatprep.subr.mxu0 0.0
      %761 = vmatpush1.msra.mxu0 %v169
      %762 = vmatprep.subr.mxu0 0.0
      %763 = vmatpush1.msra.mxu0 %v172
      %764 = vmatprep.subr.mxu0 0.0
      %765 = vmatpush1.msra.mxu0 0.0
      %766 = vmatprep.subr.mxu0 0.0
      %767 = vmatpush1.msra.mxu0 0.0
      %768 = vmatprep.subr.mxu0 0.0
      %769 = vmatpush1.msra.mxu0 0.0
      %770 = vmatprep.subr.mxu0 0.0
      %771 = vmatpush1.msra.mxu0 0.0
      %772 = vmatprep.subr.mxu0 0.0
      %773 = vmatpush1.msra.mxu0 0.0
      %774 = vmatprep.subr.mxu0 0.0
      %775 = vmatpush1.msra.mxu0 0.0
      %776 = vmatprep.subr.mxu0 0.0
      %777 = vmatpush1.msra.mxu0 0.0
      %778 = vmatprep.subr.mxu0 0.0
      %779 = vmatpush1.msra.mxu0 0.0
      %780 = vmatprep.subr.mxu0 0.0
      %781 = vmatpush1.msra.mxu0 0.0
      %782 = vmatprep.subr.mxu0 0.0
      %783 = vmatpush1.msra.mxu0 0.0
      %784 = vmatprep.subr.mxu0 0.0
      %785 = vmatpush1.msra.mxu0 0.0
      %786 = vmatprep.subr.mxu0 0.0
      %787 = vmatpush1.msra.mxu0 0.0
      %788 = vmatprep.subr.mxu0 0.0
      %789 = vmatpush1.msra.mxu0 0.0
      %790 = vmatprep.subr.mxu0 0.0
      %791 = vmatpush1.msra.mxu0 0.0
      %792 = vmatprep.subr.mxu0 0.0
      %793 = vmatpush1.msra.mxu0 0.0
      %794 = vmatprep.subr.mxu0 0.0
      %795 = vmatpush1.msra.mxu0 0.0
      %796 = vmatprep.mubr.f32.mxu0 0.0
      %797 = vmatmul.mubr.f32.gmra.mrb[0].mxu0 %v660
      %v798 = vpop.f32.mrb[0].mxu0
      %v799 = vadd.f32 0.0, %v798
      %v800 = vpop.f32.mrb[0].mxu0
      %801 = vdwg.mxu0
      %s802 = scalar_lea.vmem [#allocation2], 24
      %v803 = vld [vmem:[%s802] sm:$0xff]
      %v804 = vld [vmem:[%s802 + $0x8] sm:$0xff]
      %v805 = vld [vmem:[%s802 + $0x10] sm:$0xff]
      %v806 = vadd.f32 %v803, %v728
      %v807 = vxor.u32 %v806, 2147483648
      %v808 = vmul.f32 %v807, 1.442695
      %v809 = vpow.pop %v808
      %v810 = vadd.f32 %v809, 1.0
      %v811 = vrcp.pop %v810
      %v812 = vmul.f32 1.0, %v811
      %v813 = vadd.f32 %v804, %v730
      %v814 = vxor.u32 %v813, 2147483648
      %v815 = vmul.f32 %v814, 1.442695
      %v816 = vpow.pop %v815
      %v817 = vadd.f32 %v816, 1.0
      %v818 = vrcp.pop %v817
      %v819 = vmul.f32 1.0, %v818
      %v820 = vadd.f32 %v799, %v178
      %v821 = vmul.f32 %v812, %v820
      %v822 = vadd.f32 %v805, %v821
      %v823 = vtanh.pop %v822
      %v824 = vsub.f32 1.0, %v819
      %v825 = vmul.f32 %v824, %v823
      %v826 = vmul.f32 %v819, %v660
      %v827 = vadd.f32 %v825, %v826
      %828 = vmatprep.subr.mxu0 %v126
      %829 = vmatpush1.msra.mxu0 %v125
      %830 = vmatprep.subr.mxu0 %v129
      %831 = vmatpush1.msra.mxu0 %v128
      %832 = vmatprep.subr.mxu0 %v132
      %833 = vmatpush1.msra.mxu0 %v131
      %834 = vmatprep.subr.mxu0 %v135
      %835 = vmatpush1.msra.mxu0 %v134
      %836 = vmatprep.subr.mxu0 %v138
      %837 = vmatpush1.msra.mxu0 %v137
      %838 = vmatprep.subr.mxu0 %v141
      %839 = vmatpush1.msra.mxu0 %v140
      %840 = vmatprep.subr.mxu0 %v144
      %841 = vmatpush1.msra.mxu0 %v143
      %842 = vmatprep.subr.mxu0 %v147
      %843 = vmatpush1.msra.mxu0 %v146
      %844 = vmatprep.subr.mxu0 %v150
      %845 = vmatpush1.msra.mxu0 %v149
      %846 = vmatprep.subr.mxu0 %v153
      %847 = vmatpush1.msra.mxu0 %v152
      %848 = vmatprep.subr.mxu0 %v156
      %849 = vmatpush1.msra.mxu0 %v155
      %850 = vmatprep.subr.mxu0 %v159
      %851 = vmatpush1.msra.mxu0 %v158
      %852 = vmatprep.subr.mxu0 %v162
      %853 = vmatpush1.msra.mxu0 %v161
      %854 = vmatprep.subr.mxu0 %v165
      %855 = vmatpush1.msra.mxu0 %v164
      %856 = vmatprep.subr.mxu0 %v168
      %857 = vmatpush1.msra.mxu0 %v167
      %858 = vmatprep.subr.mxu0 %v171
      %859 = vmatpush1.msra.mxu0 %v170
      %860 = vmatprep.subr.mxu0 0.0
      %861 = vmatpush1.msra.mxu0 0.0
      %862 = vmatprep.subr.mxu0 0.0
      %863 = vmatpush1.msra.mxu0 0.0
      %864 = vmatprep.subr.mxu0 0.0
      %865 = vmatpush1.msra.mxu0 0.0
      %866 = vmatprep.subr.mxu0 0.0
      %867 = vmatpush1.msra.mxu0 0.0
      %868 = vmatprep.subr.mxu0 0.0
      %869 = vmatpush1.msra.mxu0 0.0
      %870 = vmatprep.subr.mxu0 0.0
      %871 = vmatpush1.msra.mxu0 0.0
      %872 = vmatprep.subr.mxu0 0.0
      %873 = vmatpush1.msra.mxu0 0.0
      %874 = vmatprep.subr.mxu0 0.0
      %875 = vmatpush1.msra.mxu0 0.0
      %876 = vmatprep.subr.mxu0 0.0
      %877 = vmatpush1.msra.mxu0 0.0
      %878 = vmatprep.subr.mxu0 0.0
      %879 = vmatpush1.msra.mxu0 0.0
      %880 = vmatprep.subr.mxu0 0.0
      %881 = vmatpush1.msra.mxu0 0.0
      %882 = vmatprep.subr.mxu0 0.0
      %883 = vmatpush1.msra.mxu0 0.0
      %884 = vmatprep.subr.mxu0 0.0
      %885 = vmatpush1.msra.mxu0 0.0
      %886 = vmatprep.subr.mxu0 0.0
      %887 = vmatpush1.msra.mxu0 0.0
      %888 = vmatprep.subr.mxu0 0.0
      %889 = vmatpush1.msra.mxu0 0.0
      %890 = vmatprep.subr.mxu0 0.0
      %891 = vmatpush1.msra.mxu0 0.0
      %892 = vmatprep.mubr.f32.mxu0 0.0
      %893 = vmatmul.mubr.f32.gmra.mrb[0].mxu0 %v827
      %v894 = vpop.f32.mrb[0].mxu0
      %v895 = vadd.f32 0.0, %v894
      %v896 = vpop.f32.mrb[0].mxu0
      %v897 = vadd.f32 0.0, %v896
      %898 = vdwg.mxu0
      %899 = vmatprep.subr.mxu0 0.0
      %900 = vmatpush1.msra.mxu0 %v127
      %901 = vmatprep.subr.mxu0 0.0
      %902 = vmatpush1.msra.mxu0 %v130
      %903 = vmatprep.subr.mxu0 0.0
      %904 = vmatpush1.msra.mxu0 %v133
      %905 = vmatprep.subr.mxu0 0.0
      %906 = vmatpush1.msra.mxu0 %v136
      %907 = vmatprep.subr.mxu0 0.0
      %908 = vmatpush1.msra.mxu0 %v139
      %909 = vmatprep.subr.mxu0 0.0
      %910 = vmatpush1.msra.mxu0 %v142
      %911 = vmatprep.subr.mxu0 0.0
      %912 = vmatpush1.msra.mxu0 %v145
      %913 = vmatprep.subr.mxu0 0.0
      %914 = vmatpush1.msra.mxu0 %v148
      %915 = vmatprep.subr.mxu0 0.0
      %916 = vmatpush1.msra.mxu0 %v151
      %917 = vmatprep.subr.mxu0 0.0
      %918 = vmatpush1.msra.mxu0 %v154
      %919 = vmatprep.subr.mxu0 0.0
      %920 = vmatpush1.msra.mxu0 %v157
      %921 = vmatprep.subr.mxu0 0.0
      %922 = vmatpush1.msra.mxu0 %v160
      %923 = vmatprep.subr.mxu0 0.0
      %924 = vmatpush1.msra.mxu0 %v163
      %925 = vmatprep.subr.mxu0 0.0
      %926 = vmatpush1.msra.mxu0 %v166
      %927 = vmatprep.subr.mxu0 0.0
      %928 = vmatpush1.msra.mxu0 %v169
      %929 = vmatprep.subr.mxu0 0.0
      %930 = vmatpush1.msra.mxu0 %v172
      %931 = vmatprep.subr.mxu0 0.0
      %932 = vmatpush1.msra.mxu0 0.0
      %933 = vmatprep.subr.mxu0 0.0
      %934 = vmatpush1.msra.mxu0 0.0
      %935 = vmatprep.subr.mxu0 0.0
      %936 = vmatpush1.msra.mxu0 0.0
      %937 = vmatprep.subr.mxu0 0.0
      %938 = vmatpush1.msra.mxu0 0.0
      %939 = vmatprep.subr.mxu0 0.0
      %940 = vmatpush1.msra.mxu0 0.0
      %941 = vmatprep.subr.mxu0 0.0
      %942 = vmatpush1.msra.mxu0 0.0
      %943 = vmatprep.subr.mxu0 0.0
      %944 = vmatpush1.msra.mxu0 0.0
      %945 = vmatprep.subr.mxu0 0.0
      %946 = vmatpush1.msra.mxu0 0.0
      %947 = vmatprep.subr.mxu0 0.0
      %948 = vmatpush1.msra.mxu0 0.0
      %949 = vmatprep.subr.mxu0 0.0
      %950 = vmatpush1.msra.mxu0 0.0
      %951 = vmatprep.subr.mxu0 0.0
      %952 = vmatpush1.msra.mxu0 0.0
      %953 = vmatprep.subr.mxu0 0.0
      %954 = vmatpush1.msra.mxu0 0.0
      %955 = vmatprep.subr.mxu0 0.0
      %956 = vmatpush1.msra.mxu0 0.0
      %957 = vmatprep.subr.mxu0 0.0
      %958 = vmatpush1.msra.mxu0 0.0
      %959 = vmatprep.subr.mxu0 0.0
      %960 = vmatpush1.msra.mxu0 0.0
      %961 = vmatprep.subr.mxu0 0.0
      %962 = vmatpush1.msra.mxu0 0.0
      %963 = vmatprep.mubr.f32.mxu0 0.0
      %964 = vmatmul.mubr.f32.gmra.mrb[0].mxu0 %v827
      %v965 = vpop.f32.mrb[0].mxu0
      %v966 = vadd.f32 0.0, %v965
      %v967 = vpop.f32.mrb[0].mxu0
      %968 = vdwg.mxu0
      %s969 = scalar_lea.vmem [#allocation2], 48
      %v970 = vld [vmem:[%s969] sm:$0xff]
      %v971 = vld [vmem:[%s969 + $0x8] sm:$0xff]
      %v972 = vld [vmem:[%s969 + $0x10] sm:$0xff]
      %v973 = vadd.f32 %v970, %v895
      %v974 = vxor.u32 %v973, 2147483648
      %v975 = vmul.f32 %v974, 1.442695
      %v976 = vpow.pop %v975
      %v977 = vadd.f32 %v976, 1.0
      %v978 = vrcp.pop %v977
      %v979 = vmul.f32 1.0, %v978
      %v980 = vadd.f32 %v971, %v897
      %v981 = vxor.u32 %v980, 2147483648
      %v982 = vmul.f32 %v981, 1.442695
      %v983 = vpow.pop %v982
      %v984 = vadd.f32 %v983, 1.0
      %v985 = vrcp.pop %v984
      %v986 = vmul.f32 1.0, %v985
      %v987 = vadd.f32 %v966, %v178
      %v988 = vmul.f32 %v979, %v987
      %v989 = vadd.f32 %v972, %v988
      %v990 = vtanh.pop %v989
      %v991 = vsub.f32 1.0, %v986
      %v992 = vmul.f32 %v991, %v990
      %v993 = vmul.f32 %v986, %v827
      %v994 = vadd.f32 %v992, %v993
      %995 = vmatprep.subr.mxu0 %v126
      %996 = vmatpush1.msra.mxu0 %v125
      %997 = vmatprep.subr.mxu0 %v129
      %998 = vmatpush1.msra.mxu0 %v128
      %999 = vmatprep.subr.mxu0 %v132
      %1000 = vmatpush1.msra.mxu0 %v131
      %1001 = vmatprep.subr.mxu0 %v135
      %1002 = vmatpush1.msra.mxu0 %v134
      %1003 = vmatprep.subr.mxu0 %v138
      %1004 = vmatpush1.msra.mxu0 %v137
      %1005 = vmatprep.subr.mxu0 %v141
      %1006 = vmatpush1.msra.mxu0 %v140
      %1007 = vmatprep.subr.mxu0 %v144
      %1008 = vmatpush1.msra.mxu0 %v143
      %1009 = vmatprep.subr.mxu0 %v147
      %1010 = vmatpush1.msra.mxu0 %v146
      %1011 = vmatprep.subr.mxu0 %v150
      %1012 = vmatpush1.msra.mxu0 %v149
      %1013 = vmatprep.subr.mxu0 %v153
      %1014 = vmatpush1.msra.mxu0 %v152
      %1015 = vmatprep.subr.mxu0 %v156
      %1016 = vmatpush1.msra.mxu0 %v155
      %1017 = vmatprep.subr.mxu0 %v159
      %1018 = vmatpush1.msra.mxu0 %v158
      %1019 = vmatprep.subr.mxu0 %v162
      %1020 = vmatpush1.msra.mxu0 %v161
      %1021 = vmatprep.subr.mxu0 %v165
      %1022 = vmatpush1.msra.mxu0 %v164
      %1023 = vmatprep.subr.mxu0 %v168
      %1024 = vmatpush1.msra.mxu0 %v167
      %1025 = vmatprep.subr.mxu0 %v171
      %1026 = vmatpush1.msra.mxu0 %v170
      %1027 = vmatprep.subr.mxu0 0.0
      %1028 = vmatpush1.msra.mxu0 0.0
      %1029 = vmatprep.subr.mxu0 0.0
      %1030 = vmatpush1.msra.mxu0 0.0
      %1031 = vmatprep.subr.mxu0 0.0
      %1032 = vmatpush1.msra.mxu0 0.0
      %1033 = vmatprep.subr.mxu0 0.0
      %1034 = vmatpush1.msra.mxu0 0.0
      %1035 = vmatprep.subr.mxu0 0.0
      %1036 = vmatpush1.msra.mxu0 0.0
      %1037 = vmatprep.subr.mxu0 0.0
      %1038 = vmatpush1.msra.mxu0 0.0
      %1039 = vmatprep.subr.mxu0 0.0
      %1040 = vmatpush1.msra.mxu0 0.0
      %1041 = vmatprep.subr.mxu0 0.0
      %1042 = vmatpush1.msra.mxu0 0.0
      %1043 = vmatprep.subr.mxu0 0.0
      %1044 = vmatpush1.msra.mxu0 0.0
      %1045 = vmatprep.subr.mxu0 0.0
      %1046 = vmatpush1.msra.mxu0 0.0
      %1047 = vmatprep.subr.mxu0 0.0
      %1048 = vmatpush1.msra.mxu0 0.0
      %1049 = vmatprep.subr.mxu0 0.0
      %1050 = vmatpush1.msra.mxu0 0.0
      %1051 = vmatprep.subr.mxu0 0.0
      %1052 = vmatpush1.msra.mxu0 0.0
      %1053 = vmatprep.subr.mxu0 0.0
      %1054 = vmatpush1.msra.mxu0 0.0
      %1055 = vmatprep.subr.mxu0 0.0
      %1056 = vmatpush1.msra.mxu0 0.0
      %1057 = vmatprep.subr.mxu0 0.0
      %1058 = vmatpush1.msra.mxu0 0.0
      %1059 = vmatprep.mubr.f32.mxu0 0.0
      %1060 = vmatmul.mubr.f32.gmra.mrb[0].mxu0 %v994
      %v1061 = vpop.f32.mrb[0].mxu0
      %v1062 = vadd.f32 0.0, %v1061
      %v1063 = vpop.f32.mrb[0].mxu0
      %v1064 = vadd.f32 0.0, %v1063
      %1065 = vdwg.mxu0
      %1066 = vmatprep.subr.mxu0 0.0
      %1067 = vmatpush1.msra.mxu0 %v127
      %1068 = vmatprep.subr.mxu0 0.0
      %1069 = vmatpush1.msra.mxu0 %v130
      %1070 = vmatprep.subr.mxu0 0.0
      %1071 = vmatpush1.msra.mxu0 %v133
      %1072 = vmatprep.subr.mxu0 0.0
      %1073 = vmatpush1.msra.mxu0 %v136
      %1074 = vmatprep.subr.mxu0 0.0
      %1075 = vmatpush1.msra.mxu0 %v139
      %1076 = vmatprep.subr.mxu0 0.0
      %1077 = vmatpush1.msra.mxu0 %v142
      %1078 = vmatprep.subr.mxu0 0.0
      %1079 = vmatpush1.msra.mxu0 %v145
      %1080 = vmatprep.subr.mxu0 0.0
      %1081 = vmatpush1.msra.mxu0 %v148
      %1082 = vmatprep.subr.mxu0 0.0
      %1083 = vmatpush1.msra.mxu0 %v151
      %1084 = vmatprep.subr.mxu0 0.0
      %1085 = vmatpush1.msra.mxu0 %v154
      %1086 = vmatprep.subr.mxu0 0.0
      %1087 = vmatpush1.msra.mxu0 %v157
      %1088 = vmatprep.subr.mxu0 0.0
      %1089 = vmatpush1.msra.mxu0 %v160
      %1090 = vmatprep.subr.mxu0 0.0
      %1091 = vmatpush1.msra.mxu0 %v163
      %1092 = vmatprep.subr.mxu0 0.0
      %1093 = vmatpush1.msra.mxu0 %v166
      %1094 = vmatprep.subr.mxu0 0.0
      %1095 = vmatpush1.msra.mxu0 %v169
      %1096 = vmatprep.subr.mxu0 0.0
      %1097 = vmatpush1.msra.mxu0 %v172
      %1098 = vmatprep.subr.mxu0 0.0
      %1099 = vmatpush1.msra.mxu0 0.0
      %1100 = vmatprep.subr.mxu0 0.0
      %1101 = vmatpush1.msra.mxu0 0.0
      %1102 = vmatprep.subr.mxu0 0.0
      %1103 = vmatpush1.msra.mxu0 0.0
      %1104 = vmatprep.subr.mxu0 0.0
      %1105 = vmatpush1.msra.mxu0 0.0
      %1106 = vmatprep.subr.mxu0 0.0
      %1107 = vmatpush1.msra.mxu0 0.0
      %1108 = vmatprep.subr.mxu0 0.0
      %1109 = vmatpush1.msra.mxu0 0.0
      %1110 = vmatprep.subr.mxu0 0.0
      %1111 = vmatpush1.msra.mxu0 0.0
      %1112 = vmatprep.subr.mxu0 0.0
      %1113 = vmatpush1.msra.mxu0 0.0
      %1114 = vmatprep.subr.mxu0 0.0
      %1115 = vmatpush1.msra.mxu0 0.0
      %1116 = vmatprep.subr.mxu0 0.0
      %1117 = vmatpush1.msra.mxu0 0.0
      %1118 = vmatprep.subr.mxu0 0.0
      %1119 = vmatpush1.msra.mxu0 0.0
      %1120 = vmatprep.subr.mxu0 0.0
      %1121 = vmatpush1.msra.mxu0 0.0
      %1122 = vmatprep.subr.mxu0 0.0
      %1123 = vmatpush1.msra.mxu0 0.0
      %1124 = vmatprep.subr.mxu0 0.0
      %1125 = vmatpush1.msra.mxu0 0.0
      %1126 = vmatprep.subr.mxu0 0.0
      %1127 = vmatpush1.msra.mxu0 0.0
      %1128 = vmatprep.subr.mxu0 0.0
      %1129 = vmatpush1.msra.mxu0 0.0
      %1130 = vmatprep.mubr.f32.mxu0 0.0
      %1131 = vmatmul.mubr.f32.gmra.mrb[0].mxu0 %v994
      %v1132 = vpop.f32.mrb[0].mxu0
      %v1133 = vadd.f32 0.0, %v1132
      %v1134 = vpop.f32.mrb[0].mxu0
      %1135 = vdwg.mxu0
      %s1136 = scalar_lea.vmem [#allocation2], 72
      %v1137 = vld [vmem:[%s1136] sm:$0xff]
      %v1138 = vld [vmem:[%s1136 + $0x8] sm:$0xff]
      %v1139 = vld [vmem:[%s1136 + $0x10] sm:$0xff]
      %v1140 = vadd.f32 %v1137, %v1062
      %v1141 = vxor.u32 %v1140, 2147483648
      %v1142 = vmul.f32 %v1141, 1.442695
      %v1143 = vpow.pop %v1142
      %v1144 = vadd.f32 %v1143, 1.0
      %v1145 = vrcp.pop %v1144
      %v1146 = vmul.f32 1.0, %v1145
      %v1147 = vadd.f32 %v1138, %v1064
      %v1148 = vxor.u32 %v1147, 2147483648
      %v1149 = vmul.f32 %v1148, 1.442695
      %v1150 = vpow.pop %v1149
      %v1151 = vadd.f32 %v1150, 1.0
      %v1152 = vrcp.pop %v1151
      %v1153 = vmul.f32 1.0, %v1152
      %v1154 = vadd.f32 %v1133, %v178
      %v1155 = vmul.f32 %v1146, %v1154
      %v1156 = vadd.f32 %v1139, %v1155
      %v1157 = vtanh.pop %v1156
      %v1158 = vsub.f32 1.0, %v1153
      %v1159 = vmul.f32 %v1158, %v1157
      %v1160 = vmul.f32 %v1153, %v994
      %v1161 = vadd.f32 %v1159, %v1160
      %1162 = vmatprep.subr.mxu0 %v126
      %1163 = vmatpush1.msra.mxu0 %v125
      %1164 = vmatprep.subr.mxu0 %v129
      %1165 = vmatpush1.msra.mxu0 %v128
      %1166 = vmatprep.subr.mxu0 %v132
      %1167 = vmatpush1.msra.mxu0 %v131
      %1168 = vmatprep.subr.mxu0 %v135
      %1169 = vmatpush1.msra.mxu0 %v134
      %1170 = vmatprep.subr.mxu0 %v138
      %1171 = vmatpush1.msra.mxu0 %v137
      %1172 = vmatprep.subr.mxu0 %v141
      %1173 = vmatpush1.msra.mxu0 %v140
      %1174 = vmatprep.subr.mxu0 %v144
      %1175 = vmatpush1.msra.mxu0 %v143
      %1176 = vmatprep.subr.mxu0 %v147
      %1177 = vmatpush1.msra.mxu0 %v146
      %1178 = vmatprep.subr.mxu0 %v150
      %1179 = vmatpush1.msra.mxu0 %v149
      %1180 = vmatprep.subr.mxu0 %v153
      %1181 = vmatpush1.msra.mxu0 %v152
      %1182 = vmatprep.subr.mxu0 %v156
      %1183 = vmatpush1.msra.mxu0 %v155
      %1184 = vmatprep.subr.mxu0 %v159
      %1185 = vmatpush1.msra.mxu0 %v158
      %1186 = vmatprep.subr.mxu0 %v162
      %1187 = vmatpush1.msra.mxu0 %v161
      %1188 = vmatprep.subr.mxu0 %v165
      %1189 = vmatpush1.msra.mxu0 %v164
      %1190 = vmatprep.subr.mxu0 %v168
      %1191 = vmatpush1.msra.mxu0 %v167
      %1192 = vmatprep.subr.mxu0 %v171
      %1193 = vmatpush1.msra.mxu0 %v170
      %1194 = vmatprep.subr.mxu0 0.0
      %1195 = vmatpush1.msra.mxu0 0.0
      %1196 = vmatprep.subr.mxu0 0.0
      %1197 = vmatpush1.msra.mxu0 0.0
      %1198 = vmatprep.subr.mxu0 0.0
      %1199 = vmatpush1.msra.mxu0 0.0
      %1200 = vmatprep.subr.mxu0 0.0
      %1201 = vmatpush1.msra.mxu0 0.0
      %1202 = vmatprep.subr.mxu0 0.0
      %1203 = vmatpush1.msra.mxu0 0.0
      %1204 = vmatprep.subr.mxu0 0.0
      %1205 = vmatpush1.msra.mxu0 0.0
      %1206 = vmatprep.subr.mxu0 0.0
      %1207 = vmatpush1.msra.mxu0 0.0
      %1208 = vmatprep.subr.mxu0 0.0
      %1209 = vmatpush1.msra.mxu0 0.0
      %1210 = vmatprep.subr.mxu0 0.0
      %1211 = vmatpush1.msra.mxu0 0.0
      %1212 = vmatprep.subr.mxu0 0.0
      %1213 = vmatpush1.msra.mxu0 0.0
      %1214 = vmatprep.subr.mxu0 0.0
      %1215 = vmatpush1.msra.mxu0 0.0
      %1216 = vmatprep.subr.mxu0 0.0
      %1217 = vmatpush1.msra.mxu0 0.0
      %1218 = vmatprep.subr.mxu0 0.0
      %1219 = vmatpush1.msra.mxu0 0.0
      %1220 = vmatprep.subr.mxu0 0.0
      %1221 = vmatpush1.msra.mxu0 0.0
      %1222 = vmatprep.subr.mxu0 0.0
      %1223 = vmatpush1.msra.mxu0 0.0
      %1224 = vmatprep.subr.mxu0 0.0
      %1225 = vmatpush1.msra.mxu0 0.0
      %1226 = vmatprep.mubr.f32.mxu0 0.0
      %1227 = vmatmul.mubr.f32.gmra.mrb[0].mxu0 %v1161
      %v1228 = vpop.f32.mrb[0].mxu0
      %v1229 = vadd.f32 0.0, %v1228
      %v1230 = vpop.f32.mrb[0].mxu0
      %v1231 = vadd.f32 0.0, %v1230
      %1232 = vdwg.mxu0
      %1233 = vmatprep.subr.mxu0 0.0
      %1234 = vmatpush1.msra.mxu0 %v127
      %1235 = vmatprep.subr.mxu0 0.0
      %1236 = vmatpush1.msra.mxu0 %v130
      %1237 = vmatprep.subr.mxu0 0.0
      %1238 = vmatpush1.msra.mxu0 %v133
      %1239 = vmatprep.subr.mxu0 0.0
      %1240 = vmatpush1.msra.mxu0 %v136
      %1241 = vmatprep.subr.mxu0 0.0
      %1242 = vmatpush1.msra.mxu0 %v139
      %1243 = vmatprep.subr.mxu0 0.0
      %1244 = vmatpush1.msra.mxu0 %v142
      %1245 = vmatprep.subr.mxu0 0.0
      %1246 = vmatpush1.msra.mxu0 %v145
      %1247 = vmatprep.subr.mxu0 0.0
      %1248 = vmatpush1.msra.mxu0 %v148
      %1249 = vmatprep.subr.mxu0 0.0
      %1250 = vmatpush1.msra.mxu0 %v151
      %1251 = vmatprep.subr.mxu0 0.0
      %1252 = vmatpush1.msra.mxu0 %v154
      %1253 = vmatprep.subr.mxu0 0.0
      %1254 = vmatpush1.msra.mxu0 %v157
      %1255 = vmatprep.subr.mxu0 0.0
      %1256 = vmatpush1.msra.mxu0 %v160
      %1257 = vmatprep.subr.mxu0 0.0
      %1258 = vmatpush1.msra.mxu0 %v163
      %1259 = vmatprep.subr.mxu0 0.0
      %1260 = vmatpush1.msra.mxu0 %v166
      %1261 = vmatprep.subr.mxu0 0.0
      %1262 = vmatpush1.msra.mxu0 %v169
      %1263 = vmatprep.subr.mxu0 0.0
      %1264 = vmatpush1.msra.mxu0 %v172
      %1265 = vmatprep.subr.mxu0 0.0
      %1266 = vmatpush1.msra.mxu0 0.0
      %1267 = vmatprep.subr.mxu0 0.0
      %1268 = vmatpush1.msra.mxu0 0.0
      %1269 = vmatprep.subr.mxu0 0.0
      %1270 = vmatpush1.msra.mxu0 0.0
      %1271 = vmatprep.subr.mxu0 0.0
      %1272 = vmatpush1.msra.mxu0 0.0
      %1273 = vmatprep.subr.mxu0 0.0
      %1274 = vmatpush1.msra.mxu0 0.0
      %1275 = vmatprep.subr.mxu0 0.0
      %1276 = vmatpush1.msra.mxu0 0.0
      %1277 = vmatprep.subr.mxu0 0.0
      %1278 = vmatpush1.msra.mxu0 0.0
      %1279 = vmatprep.subr.mxu0 0.0
      %1280 = vmatpush1.msra.mxu0 0.0
      %1281 = vmatprep.subr.mxu0 0.0
      %1282 = vmatpush1.msra.mxu0 0.0
      %1283 = vmatprep.subr.mxu0 0.0
      %1284 = vmatpush1.msra.mxu0 0.0
      %1285 = vmatprep.subr.mxu0 0.0
      %1286 = vmatpush1.msra.mxu0 0.0
      %1287 = vmatprep.subr.mxu0 0.0
      %1288 = vmatpush1.msra.mxu0 0.0
      %1289 = vmatprep.subr.mxu0 0.0
      %1290 = vmatpush1.msra.mxu0 0.0
      %1291 = vmatprep.subr.mxu0 0.0
      %1292 = vmatpush1.msra.mxu0 0.0
      %1293 = vmatprep.subr.mxu0 0.0
      %1294 = vmatpush1.msra.mxu0 0.0
      %1295 = vmatprep.subr.mxu0 0.0
      %1296 = vmatpush1.msra.mxu0 0.0
      %1297 = vmatprep.mubr.f32.mxu0 0.0
      %1298 = vmatmul.mubr.f32.gmra.mrb[0].mxu0 %v1161
      %v1299 = vpop.f32.mrb[0].mxu0
      %v1300 = vadd.f32 0.0, %v1299
      %v1301 = vpop.f32.mrb[0].mxu0
      %1302 = vdwg.mxu0
      %s1303 = scalar_lea.vmem [#allocation2], 96
      %v1304 = vld [vmem:[%s1303] sm:$0xff]
      %v1305 = vld [vmem:[%s1303 + $0x8] sm:$0xff]
      %v1306 = vld [vmem:[%s1303 + $0x10] sm:$0xff]
      %v1307 = vadd.f32 %v1304, %v1229
      %v1308 = vxor.u32 %v1307, 2147483648
      %v1309 = vmul.f32 %v1308, 1.442695
      %v1310 = vpow.pop %v1309
      %v1311 = vadd.f32 %v1310, 1.0
      %v1312 = vrcp.pop %v1311
      %v1313 = vmul.f32 1.0, %v1312
      %v1314 = vadd.f32 %v1305, %v1231
      %v1315 = vxor.u32 %v1314, 2147483648
      %v1316 = vmul.f32 %v1315, 1.442695
      %v1317 = vpow.pop %v1316
      %v1318 = vadd.f32 %v1317, 1.0
      %v1319 = vrcp.pop %v1318
      %v1320 = vmul.f32 1.0, %v1319
      %v1321 = vadd.f32 %v1300, %v178
      %v1322 = vmul.f32 %v1313, %v1321
      %v1323 = vadd.f32 %v1306, %v1322
      %v1324 = vtanh.pop %v1323
      %v1325 = vsub.f32 1.0, %v1320
      %v1326 = vmul.f32 %v1325, %v1324
      %v1327 = vmul.f32 %v1320, %v1161
      %v1328 = vadd.f32 %v1326, %v1327
      %1329 = vmatprep.subr.mxu0 %v126
      %1330 = vmatpush1.msra.mxu0 %v125
      %1331 = vmatprep.subr.mxu0 %v129
      %1332 = vmatpush1.msra.mxu0 %v128
      %1333 = vmatprep.subr.mxu0 %v132
      %1334 = vmatpush1.msra.mxu0 %v131
      %1335 = vmatprep.subr.mxu0 %v135
      %1336 = vmatpush1.msra.mxu0 %v134
      %1337 = vmatprep.subr.mxu0 %v138
      %1338 = vmatpush1.msra.mxu0 %v137
      %1339 = vmatprep.subr.mxu0 %v141
      %1340 = vmatpush1.msra.mxu0 %v140
      %1341 = vmatprep.subr.mxu0 %v144
      %1342 = vmatpush1.msra.mxu0 %v143
      %1343 = vmatprep.subr.mxu0 %v147
      %1344 = vmatpush1.msra.mxu0 %v146
      %1345 = vmatprep.subr.mxu0 %v150
      %1346 = vmatpush1.msra.mxu0 %v149
      %1347 = vmatprep.subr.mxu0 %v153
      %1348 = vmatpush1.msra.mxu0 %v152
      %1349 = vmatprep.subr.mxu0 %v156
      %1350 = vmatpush1.msra.mxu0 %v155
      %1351 = vmatprep.subr.mxu0 %v159
      %1352 = vmatpush1.msra.mxu0 %v158
      %1353 = vmatprep.subr.mxu0 %v162
      %1354 = vmatpush1.msra.mxu0 %v161
      %1355 = vmatprep.subr.mxu0 %v165
      %1356 = vmatpush1.msra.mxu0 %v164
      %1357 = vmatprep.subr.mxu0 %v168
      %1358 = vmatpush1.msra.mxu0 %v167
      %1359 = vmatprep.subr.mxu0 %v171
      %1360 = vmatpush1.msra.mxu0 %v170
      %1361 = vmatprep.subr.mxu0 0.0
      %1362 = vmatpush1.msra.mxu0 0.0
      %1363 = vmatprep.subr.mxu0 0.0
      %1364 = vmatpush1.msra.mxu0 0.0
      %1365 = vmatprep.subr.mxu0 0.0
      %1366 = vmatpush1.msra.mxu0 0.0
      %1367 = vmatprep.subr.mxu0 0.0
      %1368 = vmatpush1.msra.mxu0 0.0
      %1369 = vmatprep.subr.mxu0 0.0
      %1370 = vmatpush1.msra.mxu0 0.0
      %1371 = vmatprep.subr.mxu0 0.0
      %1372 = vmatpush1.msra.mxu0 0.0
      %1373 = vmatprep.subr.mxu0 0.0
      %1374 = vmatpush1.msra.mxu0 0.0
      %1375 = vmatprep.subr.mxu0 0.0
      %1376 = vmatpush1.msra.mxu0 0.0
      %1377 = vmatprep.subr.mxu0 0.0
      %1378 = vmatpush1.msra.mxu0 0.0
      %1379 = vmatprep.subr.mxu0 0.0
      %1380 = vmatpush1.msra.mxu0 0.0
      %1381 = vmatprep.subr.mxu0 0.0
      %1382 = vmatpush1.msra.mxu0 0.0
      %1383 = vmatprep.subr.mxu0 0.0
      %1384 = vmatpush1.msra.mxu0 0.0
      %1385 = vmatprep.subr.mxu0 0.0
      %1386 = vmatpush1.msra.mxu0 0.0
      %1387 = vmatprep.subr.mxu0 0.0
      %1388 = vmatpush1.msra.mxu0 0.0
      %1389 = vmatprep.subr.mxu0 0.0
      %1390 = vmatpush1.msra.mxu0 0.0
      %1391 = vmatprep.subr.mxu0 0.0
      %1392 = vmatpush1.msra.mxu0 0.0
      %1393 = vmatprep.mubr.f32.mxu0 0.0
      %1394 = vmatmul.mubr.f32.gmra.mrb[0].mxu0 %v1328
      %v1395 = vpop.f32.mrb[0].mxu0
      %v1396 = vadd.f32 0.0, %v1395
      %v1397 = vpop.f32.mrb[0].mxu0
      %v1398 = vadd.f32 0.0, %v1397
      %1399 = vdwg.mxu0
      %1400 = vmatprep.subr.mxu0 0.0
      %1401 = vmatpush1.msra.mxu0 %v127
      %1402 = vmatprep.subr.mxu0 0.0
      %1403 = vmatpush1.msra.mxu0 %v130
      %1404 = vmatprep.subr.mxu0 0.0
      %1405 = vmatpush1.msra.mxu0 %v133
      %1406 = vmatprep.subr.mxu0 0.0
      %1407 = vmatpush1.msra.mxu0 %v136
      %1408 = vmatprep.subr.mxu0 0.0
      %1409 = vmatpush1.msra.mxu0 %v139
      %1410 = vmatprep.subr.mxu0 0.0
      %1411 = vmatpush1.msra.mxu0 %v142
      %1412 = vmatprep.subr.mxu0 0.0
      %1413 = vmatpush1.msra.mxu0 %v145
      %1414 = vmatprep.subr.mxu0 0.0
      %1415 = vmatpush1.msra.mxu0 %v148
      %1416 = vmatprep.subr.mxu0 0.0
      %1417 = vmatpush1.msra.mxu0 %v151
      %1418 = vmatprep.subr.mxu0 0.0
      %1419 = vmatpush1.msra.mxu0 %v154
      %1420 = vmatprep.subr.mxu0 0.0
      %1421 = vmatpush1.msra.mxu0 %v157
      %1422 = vmatprep.subr.mxu0 0.0
      %1423 = vmatpush1.msra.mxu0 %v160
      %1424 = vmatprep.subr.mxu0 0.0
      %1425 = vmatpush1.msra.mxu0 %v163
      %1426 = vmatprep.subr.mxu0 0.0
      %1427 = vmatpush1.msra.mxu0 %v166
      %1428 = vmatprep.subr.mxu0 0.0
      %1429 = vmatpush1.msra.mxu0 %v169
      %1430 = vmatprep.subr.mxu0 0.0
      %1431 = vmatpush1.msra.mxu0 %v172
      %1432 = vmatprep.subr.mxu0 0.0
      %1433 = vmatpush1.msra.mxu0 0.0
      %1434 = vmatprep.subr.mxu0 0.0
      %1435 = vmatpush1.msra.mxu0 0.0
      %1436 = vmatprep.subr.mxu0 0.0
      %1437 = vmatpush1.msra.mxu0 0.0
      %1438 = vmatprep.subr.mxu0 0.0
      %1439 = vmatpush1.msra.mxu0 0.0
      %1440 = vmatprep.subr.mxu0 0.0
      %1441 = vmatpush1.msra.mxu0 0.0
      %1442 = vmatprep.subr.mxu0 0.0
      %1443 = vmatpush1.msra.mxu0 0.0
      %1444 = vmatprep.subr.mxu0 0.0
      %1445 = vmatpush1.msra.mxu0 0.0
      %1446 = vmatprep.subr.mxu0 0.0
      %1447 = vmatpush1.msra.mxu0 0.0
      %1448 = vmatprep.subr.mxu0 0.0
      %1449 = vmatpush1.msra.mxu0 0.0
      %1450 = vmatprep.subr.mxu0 0.0
      %1451 = vmatpush1.msra.mxu0 0.0
      %1452 = vmatprep.subr.mxu0 0.0
      %1453 = vmatpush1.msra.mxu0 0.0
      %1454 = vmatprep.subr.mxu0 0.0
      %1455 = vmatpush1.msra.mxu0 0.0
      %1456 = vmatprep.subr.mxu0 0.0
      %1457 = vmatpush1.msra.mxu0 0.0
      %1458 = vmatprep.subr.mxu0 0.0
      %1459 = vmatpush1.msra.mxu0 0.0
      %1460 = vmatprep.subr.mxu0 0.0
      %1461 = vmatpush1.msra.mxu0 0.0
      %1462 = vmatprep.subr.mxu0 0.0
      %1463 = vmatpush1.msra.mxu0 0.0
      %1464 = vmatprep.mubr.f32.mxu0 0.0
      %1465 = vmatmul.mubr.f32.gmra.mrb[0].mxu0 %v1328
      %v1466 = vpop.f32.mrb[0].mxu0
      %v1467 = vadd.f32 0.0, %v1466
      %v1468 = vpop.f32.mrb[0].mxu0
      %1469 = vdwg.mxu0
      %s1470 = scalar_lea.vmem [#allocation2], 120
      %v1471 = vld [vmem:[%s1470] sm:$0xff]
      %v1472 = vld [vmem:[%s1470 + $0x8] sm:$0xff]
      %v1473 = vld [vmem:[%s1470 + $0x10] sm:$0xff]
      %v1474 = vadd.f32 %v1471, %v1396
      %v1475 = vxor.u32 %v1474, 2147483648
      %v1476 = vmul.f32 %v1475, 1.442695
      %v1477 = vpow.pop %v1476
      %v1478 = vadd.f32 %v1477, 1.0
      %v1479 = vrcp.pop %v1478
      %v1480 = vmul.f32 1.0, %v1479
      %v1481 = vadd.f32 %v1472, %v1398
      %v1482 = vxor.u32 %v1481, 2147483648
      %v1483 = vmul.f32 %v1482, 1.442695
      %v1484 = vpow.pop %v1483
      %v1485 = vadd.f32 %v1484, 1.0
      %v1486 = vrcp.pop %v1485
      %v1487 = vmul.f32 1.0, %v1486
      %v1488 = vadd.f32 %v1467, %v178
      %v1489 = vmul.f32 %v1480, %v1488
      %v1490 = vadd.f32 %v1473, %v1489
      %v1491 = vtanh.pop %v1490
      %v1492 = vsub.f32 1.0, %v1487
      %v1493 = vmul.f32 %v1492, %v1491
      %v1494 = vmul.f32 %v1487, %v1328
      %v1495 = vadd.f32 %v1493, %v1494
      %1496 = vmatprep.subr.mxu0 %v126
      %1497 = vmatpush1.msra.mxu0 %v125
      %1498 = vmatprep.subr.mxu0 %v129
      %1499 = vmatpush1.msra.mxu0 %v128
      %1500 = vmatprep.subr.mxu0 %v132
      %1501 = vmatpush1.msra.mxu0 %v131
      %1502 = vmatprep.subr.mxu0 %v135
      %1503 = vmatpush1.msra.mxu0 %v134
      %1504 = vmatprep.subr.mxu0 %v138
      %1505 = vmatpush1.msra.mxu0 %v137
      %1506 = vmatprep.subr.mxu0 %v141
      %1507 = vmatpush1.msra.mxu0 %v140
      %1508 = vmatprep.subr.mxu0 %v144
      %1509 = vmatpush1.msra.mxu0 %v143
      %1510 = vmatprep.subr.mxu0 %v147
      %1511 = vmatpush1.msra.mxu0 %v146
      %1512 = vmatprep.subr.mxu0 %v150
      %1513 = vmatpush1.msra.mxu0 %v149
      %1514 = vmatprep.subr.mxu0 %v153
      %1515 = vmatpush1.msra.mxu0 %v152
      %1516 = vmatprep.subr.mxu0 %v156
      %1517 = vmatpush1.msra.mxu0 %v155
      %1518 = vmatprep.subr.mxu0 %v159
      %1519 = vmatpush1.msra.mxu0 %v158
      %1520 = vmatprep.subr.mxu0 %v162
      %1521 = vmatpush1.msra.mxu0 %v161
      %1522 = vmatprep.subr.mxu0 %v165
      %1523 = vmatpush1.msra.mxu0 %v164
      %1524 = vmatprep.subr.mxu0 %v168
      %1525 = vmatpush1.msra.mxu0 %v167
      %1526 = vmatprep.subr.mxu0 %v171
      %1527 = vmatpush1.msra.mxu0 %v170
      %1528 = vmatprep.subr.mxu0 0.0
      %1529 = vmatpush1.msra.mxu0 0.0
      %1530 = vmatprep.subr.mxu0 0.0
      %1531 = vmatpush1.msra.mxu0 0.0
      %1532 = vmatprep.subr.mxu0 0.0
      %1533 = vmatpush1.msra.mxu0 0.0
      %1534 = vmatprep.subr.mxu0 0.0
      %1535 = vmatpush1.msra.mxu0 0.0
      %1536 = vmatprep.subr.mxu0 0.0
      %1537 = vmatpush1.msra.mxu0 0.0
      %1538 = vmatprep.subr.mxu0 0.0
      %1539 = vmatpush1.msra.mxu0 0.0
      %1540 = vmatprep.subr.mxu0 0.0
      %1541 = vmatpush1.msra.mxu0 0.0
      %1542 = vmatprep.subr.mxu0 0.0
      %1543 = vmatpush1.msra.mxu0 0.0
      %1544 = vmatprep.subr.mxu0 0.0
      %1545 = vmatpush1.msra.mxu0 0.0
      %1546 = vmatprep.subr.mxu0 0.0
      %1547 = vmatpush1.msra.mxu0 0.0
      %1548 = vmatprep.subr.mxu0 0.0
      %1549 = vmatpush1.msra.mxu0 0.0
      %1550 = vmatprep.subr.mxu0 0.0
      %1551 = vmatpush1.msra.mxu0 0.0
      %1552 = vmatprep.subr.mxu0 0.0
      %1553 = vmatpush1.msra.mxu0 0.0
      %1554 = vmatprep.subr.mxu0 0.0
      %1555 = vmatpush1.msra.mxu0 0.0
      %1556 = vmatprep.subr.mxu0 0.0
      %1557 = vmatpush1.msra.mxu0 0.0
      %1558 = vmatprep.subr.mxu0 0.0
      %1559 = vmatpush1.msra.mxu0 0.0
      %1560 = vmatprep.mubr.f32.mxu0 0.0
      %1561 = vmatmul.mubr.f32.gmra.mrb[0].mxu0 %v1495
      %v1562 = vpop.f32.mrb[0].mxu0
      %v1563 = vadd.f32 0.0, %v1562
      %v1564 = vpop.f32.mrb[0].mxu0
      %v1565 = vadd.f32 0.0, %v1564
      %1566 = vdwg.mxu0
      %1567 = vmatprep.subr.mxu0 0.0
      %1568 = vmatpush1.msra.mxu0 %v127
      %1569 = vmatprep.subr.mxu0 0.0
      %1570 = vmatpush1.msra.mxu0 %v130
      %1571 = vmatprep.subr.mxu0 0.0
      %1572 = vmatpush1.msra.mxu0 %v133
      %1573 = vmatprep.subr.mxu0 0.0
      %1574 = vmatpush1.msra.mxu0 %v136
      %1575 = vmatprep.subr.mxu0 0.0
      %1576 = vmatpush1.msra.mxu0 %v139
      %1577 = vmatprep.subr.mxu0 0.0
      %1578 = vmatpush1.msra.mxu0 %v142
      %1579 = vmatprep.subr.mxu0 0.0
      %1580 = vmatpush1.msra.mxu0 %v145
      %1581 = vmatprep.subr.mxu0 0.0
      %1582 = vmatpush1.msra.mxu0 %v148
      %1583 = vmatprep.subr.mxu0 0.0
      %1584 = vmatpush1.msra.mxu0 %v151
      %1585 = vmatprep.subr.mxu0 0.0
      %1586 = vmatpush1.msra.mxu0 %v154
      %1587 = vmatprep.subr.mxu0 0.0
      %1588 = vmatpush1.msra.mxu0 %v157
      %1589 = vmatprep.subr.mxu0 0.0
      %1590 = vmatpush1.msra.mxu0 %v160
      %1591 = vmatprep.subr.mxu0 0.0
      %1592 = vmatpush1.msra.mxu0 %v163
      %1593 = vmatprep.subr.mxu0 0.0
      %1594 = vmatpush1.msra.mxu0 %v166
      %1595 = vmatprep.subr.mxu0 0.0
      %1596 = vmatpush1.msra.mxu0 %v169
      %1597 = vmatprep.subr.mxu0 0.0
      %1598 = vmatpush1.msra.mxu0 %v172
      %1599 = vmatprep.subr.mxu0 0.0
      %1600 = vmatpush1.msra.mxu0 0.0
      %1601 = vmatprep.subr.mxu0 0.0
      %1602 = vmatpush1.msra.mxu0 0.0
      %1603 = vmatprep.subr.mxu0 0.0
      %1604 = vmatpush1.msra.mxu0 0.0
      %1605 = vmatprep.subr.mxu0 0.0
      %1606 = vmatpush1.msra.mxu0 0.0
      %1607 = vmatprep.subr.mxu0 0.0
      %1608 = vmatpush1.msra.mxu0 0.0
      %1609 = vmatprep.subr.mxu0 0.0
      %1610 = vmatpush1.msra.mxu0 0.0
      %1611 = vmatprep.subr.mxu0 0.0
      %1612 = vmatpush1.msra.mxu0 0.0
      %1613 = vmatprep.subr.mxu0 0.0
      %1614 = vmatpush1.msra.mxu0 0.0
      %1615 = vmatprep.subr.mxu0 0.0
      %1616 = vmatpush1.msra.mxu0 0.0
      %1617 = vmatprep.subr.mxu0 0.0
      %1618 = vmatpush1.msra.mxu0 0.0
      %1619 = vmatprep.subr.mxu0 0.0
      %1620 = vmatpush1.msra.mxu0 0.0
      %1621 = vmatprep.subr.mxu0 0.0
      %1622 = vmatpush1.msra.mxu0 0.0
      %1623 = vmatprep.subr.mxu0 0.0
      %1624 = vmatpush1.msra.mxu0 0.0
      %1625 = vmatprep.subr.mxu0 0.0
      %1626 = vmatpush1.msra.mxu0 0.0
      %1627 = vmatprep.subr.mxu0 0.0
      %1628 = vmatpush1.msra.mxu0 0.0
      %1629 = vmatprep.subr.mxu0 0.0
      %1630 = vmatpush1.msra.mxu0 0.0
      %1631 = vmatprep.mubr.f32.mxu0 0.0
      %1632 = vmatmul.mubr.f32.gmra.mrb[0].mxu0 %v1495
      %v1633 = vpop.f32.mrb[0].mxu0
      %v1634 = vadd.f32 0.0, %v1633
      %v1635 = vpop.f32.mrb[0].mxu0
      %1636 = vdwg.mxu0
      %s1637 = scalar_lea.vmem [#allocation2], 144
      %v1638 = vld [vmem:[%s1637] sm:$0xff]
      %v1639 = vld [vmem:[%s1637 + $0x8] sm:$0xff]
      %v1640 = vld [vmem:[%s1637 + $0x10] sm:$0xff]
      %v1641 = vadd.f32 %v1638, %v1563
      %v1642 = vxor.u32 %v1641, 2147483648
      %v1643 = vmul.f32 %v1642, 1.442695
      %v1644 = vpow.pop %v1643
      %v1645 = vadd.f32 %v1644, 1.0
      %v1646 = vrcp.pop %v1645
      %v1647 = vmul.f32 1.0, %v1646
      %v1648 = vadd.f32 %v1639, %v1565
      %v1649 = vxor.u32 %v1648, 2147483648
      %v1650 = vmul.f32 %v1649, 1.442695
      %v1651 = vpow.pop %v1650
      %v1652 = vadd.f32 %v1651, 1.0
      %v1653 = vrcp.pop %v1652
      %v1654 = vmul.f32 1.0, %v1653
      %v1655 = vadd.f32 %v1634, %v178
      %v1656 = vmul.f32 %v1647, %v1655
      %v1657 = vadd.f32 %v1640, %v1656
      %v1658 = vtanh.pop %v1657
      %v1659 = vsub.f32 1.0, %v1654
      %v1660 = vmul.f32 %v1659, %v1658
      %v1661 = vmul.f32 %v1654, %v1495
      %v1662 = vadd.f32 %v1660, %v1661
      %1663 = vmatprep.subr.mxu0 %v126
      %1664 = vmatpush1.msra.mxu0 %v125
      %1665 = vmatprep.subr.mxu0 %v129
      %1666 = vmatpush1.msra.mxu0 %v128
      %1667 = vmatprep.subr.mxu0 %v132
      %1668 = vmatpush1.msra.mxu0 %v131
      %1669 = vmatprep.subr.mxu0 %v135
      %1670 = vmatpush1.msra.mxu0 %v134
      %1671 = vmatprep.subr.mxu0 %v138
      %1672 = vmatpush1.msra.mxu0 %v137
      %1673 = vmatprep.subr.mxu0 %v141
      %1674 = vmatpush1.msra.mxu0 %v140
      %1675 = vmatprep.subr.mxu0 %v144
      %1676 = vmatpush1.msra.mxu0 %v143
      %1677 = vmatprep.subr.mxu0 %v147
      %1678 = vmatpush1.msra.mxu0 %v146
      %1679 = vmatprep.subr.mxu0 %v150
      %1680 = vmatpush1.msra.mxu0 %v149
      %1681 = vmatprep.subr.mxu0 %v153
      %1682 = vmatpush1.msra.mxu0 %v152
      %1683 = vmatprep.subr.mxu0 %v156
      %1684 = vmatpush1.msra.mxu0 %v155
      %1685 = vmatprep.subr.mxu0 %v159
      %1686 = vmatpush1.msra.mxu0 %v158
      %1687 = vmatprep.subr.mxu0 %v162
      %1688 = vmatpush1.msra.mxu0 %v161
      %1689 = vmatprep.subr.mxu0 %v165
      %1690 = vmatpush1.msra.mxu0 %v164
      %1691 = vmatprep.subr.mxu0 %v168
      %1692 = vmatpush1.msra.mxu0 %v167
      %1693 = vmatprep.subr.mxu0 %v171
      %1694 = vmatpush1.msra.mxu0 %v170
      %1695 = vmatprep.subr.mxu0 0.0
      %1696 = vmatpush1.msra.mxu0 0.0
      %1697 = vmatprep.subr.mxu0 0.0
      %1698 = vmatpush1.msra.mxu0 0.0
      %1699 = vmatprep.subr.mxu0 0.0
      %1700 = vmatpush1.msra.mxu0 0.0
      %1701 = vmatprep.subr.mxu0 0.0
      %1702 = vmatpush1.msra.mxu0 0.0
      %1703 = vmatprep.subr.mxu0 0.0
      %1704 = vmatpush1.msra.mxu0 0.0
      %1705 = vmatprep.subr.mxu0 0.0
      %1706 = vmatpush1.msra.mxu0 0.0
      %1707 = vmatprep.subr.mxu0 0.0
      %1708 = vmatpush1.msra.mxu0 0.0
      %1709 = vmatprep.subr.mxu0 0.0
      %1710 = vmatpush1.msra.mxu0 0.0
      %1711 = vmatprep.subr.mxu0 0.0
      %1712 = vmatpush1.msra.mxu0 0.0
      %1713 = vmatprep.subr.mxu0 0.0
      %1714 = vmatpush1.msra.mxu0 0.0
      %1715 = vmatprep.subr.mxu0 0.0
      %1716 = vmatpush1.msra.mxu0 0.0
      %1717 = vmatprep.subr.mxu0 0.0
      %1718 = vmatpush1.msra.mxu0 0.0
      %1719 = vmatprep.subr.mxu0 0.0
      %1720 = vmatpush1.msra.mxu0 0.0
      %1721 = vmatprep.subr.mxu0 0.0
      %1722 = vmatpush1.msra.mxu0 0.0
      %1723 = vmatprep.subr.mxu0 0.0
      %1724 = vmatpush1.msra.mxu0 0.0
      %1725 = vmatprep.subr.mxu0 0.0
      %1726 = vmatpush1.msra.mxu0 0.0
      %1727 = vmatprep.mubr.f32.mxu0 0.0
      %1728 = vmatmul.mubr.f32.gmra.mrb[0].mxu0 %v1662
      %v1729 = vpop.f32.mrb[0].mxu0
      %v1730 = vadd.f32 0.0, %v1729
      %v1731 = vpop.f32.mrb[0].mxu0
      %v1732 = vadd.f32 0.0, %v1731
      %1733 = vdwg.mxu0
      %1734 = vmatprep.subr.mxu0 0.0
      %1735 = vmatpush1.msra.mxu0 %v127
      %1736 = vmatprep.subr.mxu0 0.0
      %1737 = vmatpush1.msra.mxu0 %v130
      %1738 = vmatprep.subr.mxu0 0.0
      %1739 = vmatpush1.msra.mxu0 %v133
      %1740 = vmatprep.subr.mxu0 0.0
      %1741 = vmatpush1.msra.mxu0 %v136
      %1742 = vmatprep.subr.mxu0 0.0
      %1743 = vmatpush1.msra.mxu0 %v139
      %1744 = vmatprep.subr.mxu0 0.0
      %1745 = vmatpush1.msra.mxu0 %v142
      %1746 = vmatprep.subr.mxu0 0.0
      %1747 = vmatpush1.msra.mxu0 %v145
      %1748 = vmatprep.subr.mxu0 0.0
      %1749 = vmatpush1.msra.mxu0 %v148
      %1750 = vmatprep.subr.mxu0 0.0
      %1751 = vmatpush1.msra.mxu0 %v151
      %1752 = vmatprep.subr.mxu0 0.0
      %1753 = vmatpush1.msra.mxu0 %v154
      %1754 = vmatprep.subr.mxu0 0.0
      %1755 = vmatpush1.msra.mxu0 %v157
      %1756 = vmatprep.subr.mxu0 0.0
      %1757 = vmatpush1.msra.mxu0 %v160
      %1758 = vmatprep.subr.mxu0 0.0
      %1759 = vmatpush1.msra.mxu0 %v163
      %1760 = vmatprep.subr.mxu0 0.0
      %1761 = vmatpush1.msra.mxu0 %v166
      %1762 = vmatprep.subr.mxu0 0.0
      %1763 = vmatpush1.msra.mxu0 %v169
      %1764 = vmatprep.subr.mxu0 0.0
      %1765 = vmatpush1.msra.mxu0 %v172
      %1766 = vmatprep.subr.mxu0 0.0
      %1767 = vmatpush1.msra.mxu0 0.0
      %1768 = vmatprep.subr.mxu0 0.0
      %1769 = vmatpush1.msra.mxu0 0.0
      %1770 = vmatprep.subr.mxu0 0.0
      %1771 = vmatpush1.msra.mxu0 0.0
      %1772 = vmatprep.subr.mxu0 0.0
      %1773 = vmatpush1.msra.mxu0 0.0
      %1774 = vmatprep.subr.mxu0 0.0
      %1775 = vmatpush1.msra.mxu0 0.0
      %1776 = vmatprep.subr.mxu0 0.0
      %1777 = vmatpush1.msra.mxu0 0.0
      %1778 = vmatprep.subr.mxu0 0.0
      %1779 = vmatpush1.msra.mxu0 0.0
      %1780 = vmatprep.subr.mxu0 0.0
      %1781 = vmatpush1.msra.mxu0 0.0
      %1782 = vmatprep.subr.mxu0 0.0
      %1783 = vmatpush1.msra.mxu0 0.0
      %1784 = vmatprep.subr.mxu0 0.0
      %1785 = vmatpush1.msra.mxu0 0.0
      %1786 = vmatprep.subr.mxu0 0.0
      %1787 = vmatpush1.msra.mxu0 0.0
      %1788 = vmatprep.subr.mxu0 0.0
      %1789 = vmatpush1.msra.mxu0 0.0
      %1790 = vmatprep.subr.mxu0 0.0
      %1791 = vmatpush1.msra.mxu0 0.0
      %1792 = vmatprep.subr.mxu0 0.0
      %1793 = vmatpush1.msra.mxu0 0.0
      %1794 = vmatprep.subr.mxu0 0.0
      %1795 = vmatpush1.msra.mxu0 0.0
      %1796 = vmatprep.subr.mxu0 0.0
      %1797 = vmatpush1.msra.mxu0 0.0
      %1798 = vmatprep.mubr.f32.mxu0 0.0
      %1799 = vmatmul.mubr.f32.gmra.mrb[0].mxu0 %v1662
      %v1800 = vpop.f32.mrb[0].mxu0
      %v1801 = vadd.f32 0.0, %v1800
      %v1802 = vpop.f32.mrb[0].mxu0
      %1803 = vdwg.mxu0
      %s1804 = scalar_lea.vmem [#allocation2], 168
      %v1805 = vld [vmem:[%s1804] sm:$0xff]
      %v1806 = vld [vmem:[%s1804 + $0x8] sm:$0xff]
      %v1807 = vld [vmem:[%s1804 + $0x10] sm:$0xff]
      %v1808 = vadd.f32 %v1805, %v1730
      %v1809 = vxor.u32 %v1808, 2147483648
      %v1810 = vmul.f32 %v1809, 1.442695
      %v1811 = vpow.pop %v1810
      %v1812 = vadd.f32 %v1811, 1.0
      %v1813 = vrcp.pop %v1812
      %v1814 = vmul.f32 1.0, %v1813
      %v1815 = vadd.f32 %v1806, %v1732
      %v1816 = vxor.u32 %v1815, 2147483648
      %v1817 = vmul.f32 %v1816, 1.442695
      %v1818 = vpow.pop %v1817
      %v1819 = vadd.f32 %v1818, 1.0
      %v1820 = vrcp.pop %v1819
      %v1821 = vmul.f32 1.0, %v1820
      %v1822 = vadd.f32 %v1801, %v178
      %v1823 = vmul.f32 %v1814, %v1822
      %v1824 = vadd.f32 %v1807, %v1823
      %v1825 = vtanh.pop %v1824
      %v1826 = vsub.f32 1.0, %v1821
      %v1827 = vmul.f32 %v1826, %v1825
      %v1828 = vmul.f32 %v1821, %v1662
      %v1829 = vadd.f32 %v1827, %v1828
      %v1830 = vld [vmem:[#allocation12] sm:$0xff]
      %v1831 = vld [vmem:[#allocation12 + $0x8] sm:$0xff]
      %v1832 = vld [vmem:[#allocation12 + $0x10] sm:$0xff]
      %v1833 = vld [vmem:[#allocation12 + $0x18] sm:$0xff]
      %v1834 = vld [vmem:[#allocation12 + $0x20] sm:$0xff]
      %v1835 = vld [vmem:[#allocation12 + $0x28] sm:$0xff]
      %v1836 = vld [vmem:[#allocation12 + $0x30] sm:$0xff]
      %v1837 = vld [vmem:[#allocation12 + $0x38] sm:$0xff]
      %v1838 = vld [vmem:[#allocation12 + $0x40] sm:$0xff]
      %v1839 = vld [vmem:[#allocation12 + $0x48] sm:$0xff]
      %v1840 = vld [vmem:[#allocation12 + $0x50] sm:$0xff]
      %v1841 = vld [vmem:[#allocation12 + $0x58] sm:$0xff]
      %v1842 = vld [vmem:[#allocation12 + $0x60] sm:$0xff]
      %v1843 = vld [vmem:[#allocation12 + $0x68] sm:$0xff]
      %v1844 = vld [vmem:[#allocation12 + $0x70] sm:$0xff]
      %v1845 = vld [vmem:[#allocation12 + $0x78] sm:$0xff]
      %v1846 = vld [vmem:[#allocation12 + $0x80] sm:$0xff]
      %v1847 = vld [vmem:[#allocation12 + $0x88] sm:$0xff]
      %v1848 = vld [vmem:[#allocation12 + $0x90] sm:$0xff]
      %v1849 = vld [vmem:[#allocation12 + $0x98] sm:$0xff]
      %v1850 = vld [vmem:[#allocation12 + $0xa0] sm:$0xff]
      %v1851 = vld [vmem:[#allocation12 + $0xa8] sm:$0xff]
      %v1852 = vld [vmem:[#allocation12 + $0xb0] sm:$0xff]
      %v1853 = vld [vmem:[#allocation12 + $0xb8] sm:$0xff]
      %v1854 = vld [vmem:[#allocation12 + $0xc0] sm:$0xff]
      %v1855 = vld [vmem:[#allocation12 + $0xc8] sm:$0xff]
      %v1856 = vld [vmem:[#allocation12 + $0xd0] sm:$0xff]
      %v1857 = vld [vmem:[#allocation12 + $0xd8] sm:$0xff]
      %v1858 = vld [vmem:[#allocation12 + $0xe0] sm:$0xff]
      %v1859 = vld [vmem:[#allocation12 + $0xe8] sm:$0xff]
      %v1860 = vld [vmem:[#allocation12 + $0xf0] sm:$0xff]
      %v1861 = vld [vmem:[#allocation12 + $0xf8] sm:$0xff]
      %v1862 = vld [vmem:[#allocation12 + $0x100] sm:$0xff]
      %v1863 = vld [vmem:[#allocation12 + $0x108] sm:$0xff]
      %v1864 = vld [vmem:[#allocation12 + $0x110] sm:$0xff]
      %v1865 = vld [vmem:[#allocation12 + $0x118] sm:$0xff]
      %v1866 = vld [vmem:[#allocation12 + $0x120] sm:$0xff]
      %v1867 = vld [vmem:[#allocation12 + $0x128] sm:$0xff]
      %v1868 = vld [vmem:[#allocation12 + $0x130] sm:$0xff]
      %v1869 = vld [vmem:[#allocation12 + $0x138] sm:$0xff]
      %v1870 = vld [vmem:[#allocation12 + $0x140] sm:$0xff]
      %v1871 = vld [vmem:[#allocation12 + $0x148] sm:$0xff]
      %v1872 = vld [vmem:[#allocation12 + $0x150] sm:$0xff]
      %v1873 = vld [vmem:[#allocation12 + $0x158] sm:$0xff]
      %v1874 = vld [vmem:[#allocation12 + $0x160] sm:$0xff]
      %v1875 = vld [vmem:[#allocation12 + $0x168] sm:$0xff]
      %v1876 = vld [vmem:[#allocation12 + $0x170] sm:$0xff]
      %v1877 = vld [vmem:[#allocation12 + $0x178] sm:$0xff]
      %v1878 = vld [vmem:[%s7] sm:$0x7]
      %v1880 = vlaneseq
      %v1881 = vshrl.u32 %v1880, 7
      %v1882 = vsub.s32 0, %v1881
      %v1883 = vrot.slane %v1878, %v1882
      %v1884 = vlaneseq
      %v1885 = vshrl.u32 %v1884, 7
      %v1886 = vsub.s32 1, %v1885
      %v1887 = vrot.slane %v1878, %v1886
      %v1888 = vlaneseq
      %v1889 = vshrl.u32 %v1888, 7
      %v1890 = vsub.s32 2, %v1889
      %v1891 = vrot.slane %v1878, %v1890
      %1895 = vmatprep.subr.mxu0 %v1831
      %1896 = vmatpush1.msra.mxu0 %v1830
      %1897 = vmatprep.subr.mxu0 %v1834
      %1898 = vmatpush1.msra.mxu0 %v1833
      %1899 = vmatprep.subr.mxu0 %v1837
      %1900 = vmatpush1.msra.mxu0 %v1836
      %1901 = vmatprep.subr.mxu0 %v1840
      %1902 = vmatpush1.msra.mxu0 %v1839
      %1903 = vmatprep.subr.mxu0 %v1843
      %1904 = vmatpush1.msra.mxu0 %v1842
      %1905 = vmatprep.subr.mxu0 %v1846
      %1906 = vmatpush1.msra.mxu0 %v1845
      %1907 = vmatprep.subr.mxu0 %v1849
      %1908 = vmatpush1.msra.mxu0 %v1848
      %1909 = vmatprep.subr.mxu0 %v1852
      %1910 = vmatpush1.msra.mxu0 %v1851
      %1911 = vmatprep.subr.mxu0 %v1855
      %1912 = vmatpush1.msra.mxu0 %v1854
      %1913 = vmatprep.subr.mxu0 %v1858
      %1914 = vmatpush1.msra.mxu0 %v1857
      %1915 = vmatprep.subr.mxu0 %v1861
      %1916 = vmatpush1.msra.mxu0 %v1860
      %1917 = vmatprep.subr.mxu0 %v1864
      %1918 = vmatpush1.msra.mxu0 %v1863
      %1919 = vmatprep.subr.mxu0 %v1867
      %1920 = vmatpush1.msra.mxu0 %v1866
      %1921 = vmatprep.subr.mxu0 %v1870
      %1922 = vmatpush1.msra.mxu0 %v1869
      %1923 = vmatprep.subr.mxu0 %v1873
      %1924 = vmatpush1.msra.mxu0 %v1872
      %1925 = vmatprep.subr.mxu0 %v1876
      %1926 = vmatpush1.msra.mxu0 %v1875
      %1927 = vmatprep.subr.mxu0 0.0
      %1928 = vmatpush1.msra.mxu0 0.0
      %1929 = vmatprep.subr.mxu0 0.0
      %1930 = vmatpush1.msra.mxu0 0.0
      %1931 = vmatprep.subr.mxu0 0.0
      %1932 = vmatpush1.msra.mxu0 0.0
      %1933 = vmatprep.subr.mxu0 0.0
      %1934 = vmatpush1.msra.mxu0 0.0
      %1935 = vmatprep.subr.mxu0 0.0
      %1936 = vmatpush1.msra.mxu0 0.0
      %1937 = vmatprep.subr.mxu0 0.0
      %1938 = vmatpush1.msra.mxu0 0.0
      %1939 = vmatprep.subr.mxu0 0.0
      %1940 = vmatpush1.msra.mxu0 0.0
      %1941 = vmatprep.subr.mxu0 0.0
      %1942 = vmatpush1.msra.mxu0 0.0
      %1943 = vmatprep.subr.mxu0 0.0
      %1944 = vmatpush1.msra.mxu0 0.0
      %1945 = vmatprep.subr.mxu0 0.0
      %1946 = vmatpush1.msra.mxu0 0.0
      %1947 = vmatprep.subr.mxu0 0.0
      %1948 = vmatpush1.msra.mxu0 0.0
      %1949 = vmatprep.subr.mxu0 0.0
      %1950 = vmatpush1.msra.mxu0 0.0
      %1951 = vmatprep.subr.mxu0 0.0
      %1952 = vmatpush1.msra.mxu0 0.0
      %1953 = vmatprep.subr.mxu0 0.0
      %1954 = vmatpush1.msra.mxu0 0.0
      %1955 = vmatprep.subr.mxu0 0.0
      %1956 = vmatpush1.msra.mxu0 0.0
      %1957 = vmatprep.subr.mxu0 0.0
      %1958 = vmatpush1.msra.mxu0 0.0
      %1959 = vmatprep.mubr.f32.mxu0 0.0
      %1960 = vmatmul.mubr.f32.gmra.mrb[0].mxu0 %v1829
      %v1961 = vpop.f32.mrb[0].mxu0
      %v1962 = vadd.f32 %v1883, %v1961
      %v1963 = vpop.f32.mrb[0].mxu0
      %v1964 = vadd.f32 %v1887, %v1963
      %1965 = vdwg.mxu0
      %1966 = vmatprep.subr.mxu0 0.0
      %1967 = vmatpush1.msra.mxu0 %v1832
      %1968 = vmatprep.subr.mxu0 0.0
      %1969 = vmatpush1.msra.mxu0 %v1835
      %1970 = vmatprep.subr.mxu0 0.0
      %1971 = vmatpush1.msra.mxu0 %v1838
      %1972 = vmatprep.subr.mxu0 0.0
      %1973 = vmatpush1.msra.mxu0 %v1841
      %1974 = vmatprep.subr.mxu0 0.0
      %1975 = vmatpush1.msra.mxu0 %v1844
      %1976 = vmatprep.subr.mxu0 0.0
      %1977 = vmatpush1.msra.mxu0 %v1847
      %1978 = vmatprep.subr.mxu0 0.0
      %1979 = vmatpush1.msra.mxu0 %v1850
      %1980 = vmatprep.subr.mxu0 0.0
      %1981 = vmatpush1.msra.mxu0 %v1853
      %1982 = vmatprep.subr.mxu0 0.0
      %1983 = vmatpush1.msra.mxu0 %v1856
      %1984 = vmatprep.subr.mxu0 0.0
      %1985 = vmatpush1.msra.mxu0 %v1859
      %1986 = vmatprep.subr.mxu0 0.0
      %1987 = vmatpush1.msra.mxu0 %v1862
      %1988 = vmatprep.subr.mxu0 0.0
      %1989 = vmatpush1.msra.mxu0 %v1865
      %1990 = vmatprep.subr.mxu0 0.0
      %1991 = vmatpush1.msra.mxu0 %v1868
      %1992 = vmatprep.subr.mxu0 0.0
      %1993 = vmatpush1.msra.mxu0 %v1871
      %1994 = vmatprep.subr.mxu0 0.0
      %1995 = vmatpush1.msra.mxu0 %v1874
      %1996 = vmatprep.subr.mxu0 0.0
      %1997 = vmatpush1.msra.mxu0 %v1877
      %1998 = vmatprep.subr.mxu0 0.0
      %1999 = vmatpush1.msra.mxu0 0.0
      %2000 = vmatprep.subr.mxu0 0.0
      %2001 = vmatpush1.msra.mxu0 0.0
      %2002 = vmatprep.subr.mxu0 0.0
      %2003 = vmatpush1.msra.mxu0 0.0
      %2004 = vmatprep.subr.mxu0 0.0
      %2005 = vmatpush1.msra.mxu0 0.0
      %2006 = vmatprep.subr.mxu0 0.0
      %2007 = vmatpush1.msra.mxu0 0.0
      %2008 = vmatprep.subr.mxu0 0.0
      %2009 = vmatpush1.msra.mxu0 0.0
      %2010 = vmatprep.subr.mxu0 0.0
      %2011 = vmatpush1.msra.mxu0 0.0
      %2012 = vmatprep.subr.mxu0 0.0
      %2013 = vmatpush1.msra.mxu0 0.0
      %2014 = vmatprep.subr.mxu0 0.0
      %2015 = vmatpush1.msra.mxu0 0.0
      %2016 = vmatprep.subr.mxu0 0.0
      %2017 = vmatpush1.msra.mxu0 0.0
      %2018 = vmatprep.subr.mxu0 0.0
      %2019 = vmatpush1.msra.mxu0 0.0
      %2020 = vmatprep.subr.mxu0 0.0
      %2021 = vmatpush1.msra.mxu0 0.0
      %2022 = vmatprep.subr.mxu0 0.0
      %2023 = vmatpush1.msra.mxu0 0.0
      %2024 = vmatprep.subr.mxu0 0.0
      %2025 = vmatpush1.msra.mxu0 0.0
      %2026 = vmatprep.subr.mxu0 0.0
      %2027 = vmatpush1.msra.mxu0 0.0
      %2028 = vmatprep.subr.mxu0 0.0
      %2029 = vmatpush1.msra.mxu0 0.0
      %2030 = vmatprep.mubr.f32.mxu0 0.0
      %2031 = vmatmul.mubr.f32.gmra.mrb[0].mxu0 %v1829
      %v2032 = vpop.f32.mrb[0].mxu0
      %v2033 = vadd.f32 %v1891, %v2032
      %v2034 = vpop.f32.mrb[0].mxu0
      %2035 = vdwg.mxu0
      %2036 = vst [vmem:[#allocation3] sm:$0xff] %v1962
      %2037 = vst [vmem:[#allocation3 + $0x8] sm:$0xff] %v1964
      %2038 = vst [vmem:[#allocation3 + $0x10] sm:$0xff] %v2033
      %2039 = vst [vmem:[#allocation4] sm:$0xff] 0.0
    $region73: #{tpu_custom_call.1} parent=1 // pred_fallthru
      _
    %v2040 = vld [vmem:[#allocation14] sm:$0xff]
    %v2041 = vld [vmem:[#allocation14 + $0x8] sm:$0xff]
    %v2042 = vld [vmem:[#allocation14 + $0x10] sm:$0xff]
    %v2043 = vld [vmem:[#allocation14 + $0x18] sm:$0xff]
    %v2044 = vld [vmem:[#allocation14 + $0x20] sm:$0xff]
    %v2045 = vld [vmem:[#allocation14 + $0x28] sm:$0xff]
    %v2046 = vld [vmem:[#allocation14 + $0x30] sm:$0xff]
    %v2047 = vld [vmem:[#allocation14 + $0x38] sm:$0xff]
    %v2048 = vld [vmem:[#allocation14 + $0x40] sm:$0xff]
    %v2049 = vld [vmem:[#allocation14 + $0x48] sm:$0xff]
    %v2050 = vld [vmem:[#allocation14 + $0x50] sm:$0xff]
    %v2051 = vld [vmem:[#allocation14 + $0x58] sm:$0xff]
    %v2052 = vld [vmem:[#allocation14 + $0x60] sm:$0xff]
    %v2053 = vld [vmem:[#allocation14 + $0x68] sm:$0xff]
    %v2054 = vld [vmem:[#allocation14 + $0x70] sm:$0xff]
    %v2055 = vld [vmem:[#allocation14 + $0x78] sm:$0xff]
    %v2056 = vld [vmem:[#allocation14 + $0x80] sm:$0xff]
    %v2057 = vld [vmem:[#allocation14 + $0x88] sm:$0xff]
    %v2058 = vld [vmem:[#allocation14 + $0x90] sm:$0xff]
    %v2059 = vld [vmem:[#allocation14 + $0x98] sm:$0xff]
    %v2060 = vld [vmem:[#allocation14 + $0xa0] sm:$0xff]
    %v2061 = vld [vmem:[#allocation14 + $0xa8] sm:$0xff]
    %v2062 = vld [vmem:[#allocation14 + $0xb0] sm:$0xff]
    %v2063 = vld [vmem:[#allocation14 + $0xb8] sm:$0xff]
    %v2064 = vld [vmem:[#allocation14 + $0xc0] sm:$0xff]
    %v2065 = vld [vmem:[#allocation14 + $0xc8] sm:$0xff]
    %v2066 = vld [vmem:[#allocation14 + $0xd0] sm:$0xff]
    %v2067 = vld [vmem:[#allocation14 + $0xd8] sm:$0xff]
    %v2068 = vld [vmem:[#allocation14 + $0xe0] sm:$0xff]
    %v2069 = vld [vmem:[#allocation14 + $0xe8] sm:$0xff]
    %v2070 = vld [vmem:[#allocation14 + $0xf0] sm:$0xff]
    %v2071 = vld [vmem:[#allocation14 + $0xf8] sm:$0xff]
    %v2072 = vld [vmem:[#allocation14 + $0x100] sm:$0xff]
    %v2073 = vld [vmem:[#allocation14 + $0x108] sm:$0xff]
    %v2074 = vld [vmem:[#allocation14 + $0x110] sm:$0xff]
    %v2075 = vld [vmem:[#allocation14 + $0x118] sm:$0xff]
    %v2076 = vld [vmem:[#allocation14 + $0x120] sm:$0xff]
    %v2077 = vld [vmem:[#allocation14 + $0x128] sm:$0xff]
    %v2078 = vld [vmem:[#allocation14 + $0x130] sm:$0xff]
    %v2079 = vld [vmem:[#allocation14 + $0x138] sm:$0xff]
    %v2080 = vld [vmem:[#allocation14 + $0x140] sm:$0xff]
    %v2081 = vld [vmem:[#allocation14 + $0x148] sm:$0xff]
    %v2082 = vld [vmem:[#allocation14 + $0x150] sm:$0xff]
    %v2083 = vld [vmem:[#allocation14 + $0x158] sm:$0xff]
    %v2084 = vld [vmem:[#allocation14 + $0x160] sm:$0xff]
    %v2085 = vld [vmem:[#allocation14 + $0x168] sm:$0xff]
    %v2086 = vld [vmem:[#allocation14 + $0x170] sm:$0xff]
    %v2087 = vld [vmem:[#allocation14 + $0x178] sm:$0xff]
    %v2088 = vld [vmem:[%s8] sm:$0x1]
    %v2090 = vlaneseq
    %v2091 = vshrl.u32 %v2090, 7
    %v2092 = vsub.s32 0, %v2091
    %v2093 = vrot.slane %v2088, %v2092
    %v2095 = vld [vmem:[#allocation4] sm:$0xff]
    %2096 = vmatprep.subr.mxu0 %v2041
    %2097 = vmatpush1.msra.mxu0 %v2040
    %2098 = vmatprep.subr.mxu0 %v2044
    %2099 = vmatpush1.msra.mxu0 %v2043
    %2100 = vmatprep.subr.mxu0 %v2047
    %2101 = vmatpush1.msra.mxu0 %v2046
    %2102 = vmatprep.subr.mxu0 %v2050
    %2103 = vmatpush1.msra.mxu0 %v2049
    %2104 = vmatprep.subr.mxu0 %v2053
    %2105 = vmatpush1.msra.mxu0 %v2052
    %2106 = vmatprep.subr.mxu0 %v2056
    %2107 = vmatpush1.msra.mxu0 %v2055
    %2108 = vmatprep.subr.mxu0 %v2059
    %2109 = vmatpush1.msra.mxu0 %v2058
    %2110 = vmatprep.subr.mxu0 %v2062
    %2111 = vmatpush1.msra.mxu0 %v2061
    %2112 = vmatprep.subr.mxu0 %v2065
    %2113 = vmatpush1.msra.mxu0 %v2064
    %2114 = vmatprep.subr.mxu0 %v2068
    %2115 = vmatpush1.msra.mxu0 %v2067
    %2116 = vmatprep.subr.mxu0 %v2071
    %2117 = vmatpush1.msra.mxu0 %v2070
    %2118 = vmatprep.subr.mxu0 %v2074
    %2119 = vmatpush1.msra.mxu0 %v2073
    %2120 = vmatprep.subr.mxu0 %v2077
    %2121 = vmatpush1.msra.mxu0 %v2076
    %2122 = vmatprep.subr.mxu0 %v2080
    %2123 = vmatpush1.msra.mxu0 %v2079
    %2124 = vmatprep.subr.mxu0 %v2083
    %2125 = vmatpush1.msra.mxu0 %v2082
    %2126 = vmatprep.subr.mxu0 %v2086
    %2127 = vmatpush1.msra.mxu0 %v2085
    %2128 = vmatprep.subr.mxu0 0.0
    %2129 = vmatpush1.msra.mxu0 0.0
    %2130 = vmatprep.subr.mxu0 0.0
    %2131 = vmatpush1.msra.mxu0 0.0
    %2132 = vmatprep.subr.mxu0 0.0
    %2133 = vmatpush1.msra.mxu0 0.0
    %2134 = vmatprep.subr.mxu0 0.0
    %2135 = vmatpush1.msra.mxu0 0.0
    %2136 = vmatprep.subr.mxu0 0.0
    %2137 = vmatpush1.msra.mxu0 0.0
    %2138 = vmatprep.subr.mxu0 0.0
    %2139 = vmatpush1.msra.mxu0 0.0
    %2140 = vmatprep.subr.mxu0 0.0
    %2141 = vmatpush1.msra.mxu0 0.0
    %2142 = vmatprep.subr.mxu0 0.0
    %2143 = vmatpush1.msra.mxu0 0.0
    %2144 = vmatprep.subr.mxu0 0.0
    %2145 = vmatpush1.msra.mxu0 0.0
    %2146 = vmatprep.subr.mxu0 0.0
    %2147 = vmatpush1.msra.mxu0 0.0
    %2148 = vmatprep.subr.mxu0 0.0
    %2149 = vmatpush1.msra.mxu0 0.0
    %2150 = vmatprep.subr.mxu0 0.0
    %2151 = vmatpush1.msra.mxu0 0.0
    %2152 = vmatprep.subr.mxu0 0.0
    %2153 = vmatpush1.msra.mxu0 0.0
    %2154 = vmatprep.subr.mxu0 0.0
    %2155 = vmatpush1.msra.mxu0 0.0
    %2156 = vmatprep.subr.mxu0 0.0
    %2157 = vmatpush1.msra.mxu0 0.0
    %2158 = vmatprep.subr.mxu0 0.0
    %2159 = vmatpush1.msra.mxu0 0.0
    %2160 = vmatprep.mubr.f32.mxu0 0.0
    %2161 = vmatmul.mubr.f32.gmra.mrb[0].mxu0 %v2095
    %v2162 = vpop.f32.mrb[0].mxu0
    %v2163 = vadd.f32 0.0, %v2162
    %v2164 = vpop.f32.mrb[0].mxu0
    %v2165 = vadd.f32 0.0, %v2164
    %2166 = vdwg.mxu0
    %2167 = vmatprep.subr.mxu0 0.0
    %2168 = vmatpush1.msra.mxu0 %v2042
    %2169 = vmatprep.subr.mxu0 0.0
    %2170 = vmatpush1.msra.mxu0 %v2045
    %2171 = vmatprep.subr.mxu0 0.0
    %2172 = vmatpush1.msra.mxu0 %v2048
    %2173 = vmatprep.subr.mxu0 0.0
    %2174 = vmatpush1.msra.mxu0 %v2051
    %2175 = vmatprep.subr.mxu0 0.0
    %2176 = vmatpush1.msra.mxu0 %v2054
    %2177 = vmatprep.subr.mxu0 0.0
    %2178 = vmatpush1.msra.mxu0 %v2057
    %2179 = vmatprep.subr.mxu0 0.0
    %2180 = vmatpush1.msra.mxu0 %v2060
    %2181 = vmatprep.subr.mxu0 0.0
    %2182 = vmatpush1.msra.mxu0 %v2063
    %2183 = vmatprep.subr.mxu0 0.0
    %2184 = vmatpush1.msra.mxu0 %v2066
    %2185 = vmatprep.subr.mxu0 0.0
    %2186 = vmatpush1.msra.mxu0 %v2069
    %2187 = vmatprep.subr.mxu0 0.0
    %2188 = vmatpush1.msra.mxu0 %v2072
    %2189 = vmatprep.subr.mxu0 0.0
    %2190 = vmatpush1.msra.mxu0 %v2075
    %2191 = vmatprep.subr.mxu0 0.0
    %2192 = vmatpush1.msra.mxu0 %v2078
    %2193 = vmatprep.subr.mxu0 0.0
    %2194 = vmatpush1.msra.mxu0 %v2081
    %2195 = vmatprep.subr.mxu0 0.0
    %2196 = vmatpush1.msra.mxu0 %v2084
    %2197 = vmatprep.subr.mxu0 0.0
    %2198 = vmatpush1.msra.mxu0 %v2087
    %2199 = vmatprep.subr.mxu0 0.0
    %2200 = vmatpush1.msra.mxu0 0.0
    %2201 = vmatprep.subr.mxu0 0.0
    %2202 = vmatpush1.msra.mxu0 0.0
    %2203 = vmatprep.subr.mxu0 0.0
    %2204 = vmatpush1.msra.mxu0 0.0
    %2205 = vmatprep.subr.mxu0 0.0
    %2206 = vmatpush1.msra.mxu0 0.0
    %2207 = vmatprep.subr.mxu0 0.0
    %2208 = vmatpush1.msra.mxu0 0.0
    %2209 = vmatprep.subr.mxu0 0.0
    %2210 = vmatpush1.msra.mxu0 0.0
    %2211 = vmatprep.subr.mxu0 0.0
    %2212 = vmatpush1.msra.mxu0 0.0
    %2213 = vmatprep.subr.mxu0 0.0
    %2214 = vmatpush1.msra.mxu0 0.0
    %2215 = vmatprep.subr.mxu0 0.0
    %2216 = vmatpush1.msra.mxu0 0.0
    %2217 = vmatprep.subr.mxu0 0.0
    %2218 = vmatpush1.msra.mxu0 0.0
    %2219 = vmatprep.subr.mxu0 0.0
    %2220 = vmatpush1.msra.mxu0 0.0
    %2221 = vmatprep.subr.mxu0 0.0
    %2222 = vmatpush1.msra.mxu0 0.0
    %2223 = vmatprep.subr.mxu0 0.0
    %2224 = vmatpush1.msra.mxu0 0.0
    %2225 = vmatprep.subr.mxu0 0.0
    %2226 = vmatpush1.msra.mxu0 0.0
    %2227 = vmatprep.subr.mxu0 0.0
    %2228 = vmatpush1.msra.mxu0 0.0
    %2229 = vmatprep.subr.mxu0 0.0
    %2230 = vmatpush1.msra.mxu0 0.0
    %2231 = vmatprep.mubr.f32.mxu0 0.0
    %2232 = vmatmul.mubr.f32.gmra.mrb[0].mxu0 %v2095
    %v2233 = vpop.f32.mrb[0].mxu0
    %v2234 = vadd.f32 0.0, %v2233
    %v2235 = vpop.f32.mrb[0].mxu0
    %2236 = vdwg.mxu0
    %v2237 = vld [vmem:[#allocation3] sm:$0xff]
    %v2238 = vld [vmem:[#allocation3 + $0x8] sm:$0xff]
    %v2239 = vld [vmem:[#allocation3 + $0x10] sm:$0xff]
    %v2240 = vadd.f32 %v2237, %v2163
    %v2241 = vxor.u32 %v2240, 2147483648
    %v2242 = vmul.f32 %v2241, 1.442695
    %v2243 = vpow.pop %v2242
    %v2244 = vadd.f32 %v2243, 1.0
    %v2245 = vrcp.pop %v2244
    %v2246 = vmul.f32 1.0, %v2245
    %v2247 = vadd.f32 %v2238, %v2165
    %v2248 = vxor.u32 %v2247, 2147483648
    %v2249 = vmul.f32 %v2248, 1.442695
    %v2250 = vpow.pop %v2249
    %v2251 = vadd.f32 %v2250, 1.0
    %v2252 = vrcp.pop %v2251
    %v2253 = vmul.f32 1.0, %v2252
    %v2254 = vadd.f32 %v2234, %v2093
    %v2255 = vmul.f32 %v2246, %v2254
    %v2256 = vadd.f32 %v2239, %v2255
    %v2257 = vtanh.pop %v2256
    %v2258 = vsub.f32 1.0, %v2253
    %v2259 = vmul.f32 %v2258, %v2257
    %v2260 = vmul.f32 %v2253, %v2095
    %v2261 = vadd.f32 %v2259, %v2260
    %2262 = vst [vmem:[#allocation5] sm:$0xff] %v2261
    %2263 = vmatprep.subr.mxu0 %v2041
    %2264 = vmatpush1.msra.mxu0 %v2040
    %2265 = vmatprep.subr.mxu0 %v2044
    %2266 = vmatpush1.msra.mxu0 %v2043
    %2267 = vmatprep.subr.mxu0 %v2047
    %2268 = vmatpush1.msra.mxu0 %v2046
    %2269 = vmatprep.subr.mxu0 %v2050
    %2270 = vmatpush1.msra.mxu0 %v2049
    %2271 = vmatprep.subr.mxu0 %v2053
    %2272 = vmatpush1.msra.mxu0 %v2052
    %2273 = vmatprep.subr.mxu0 %v2056
    %2274 = vmatpush1.msra.mxu0 %v2055
    %2275 = vmatprep.subr.mxu0 %v2059
    %2276 = vmatpush1.msra.mxu0 %v2058
    %2277 = vmatprep.subr.mxu0 %v2062
    %2278 = vmatpush1.msra.mxu0 %v2061
    %2279 = vmatprep.subr.mxu0 %v2065
    %2280 = vmatpush1.msra.mxu0 %v2064
    %2281 = vmatprep.subr.mxu0 %v2068
    %2282 = vmatpush1.msra.mxu0 %v2067
    %2283 = vmatprep.subr.mxu0 %v2071
    %2284 = vmatpush1.msra.mxu0 %v2070
    %2285 = vmatprep.subr.mxu0 %v2074
    %2286 = vmatpush1.msra.mxu0 %v2073
    %2287 = vmatprep.subr.mxu0 %v2077
    %2288 = vmatpush1.msra.mxu0 %v2076
    %2289 = vmatprep.subr.mxu0 %v2080
    %2290 = vmatpush1.msra.mxu0 %v2079
    %2291 = vmatprep.subr.mxu0 %v2083
    %2292 = vmatpush1.msra.mxu0 %v2082
    %2293 = vmatprep.subr.mxu0 %v2086
    %2294 = vmatpush1.msra.mxu0 %v2085
    %2295 = vmatprep.subr.mxu0 0.0
    %2296 = vmatpush1.msra.mxu0 0.0
    %2297 = vmatprep.subr.mxu0 0.0
    %2298 = vmatpush1.msra.mxu0 0.0
    %2299 = vmatprep.subr.mxu0 0.0
    %2300 = vmatpush1.msra.mxu0 0.0
    %2301 = vmatprep.subr.mxu0 0.0
    %2302 = vmatpush1.msra.mxu0 0.0
    %2303 = vmatprep.subr.mxu0 0.0
    %2304 = vmatpush1.msra.mxu0 0.0
    %2305 = vmatprep.subr.mxu0 0.0
    %2306 = vmatpush1.msra.mxu0 0.0
    %2307 = vmatprep.subr.mxu0 0.0
    %2308 = vmatpush1.msra.mxu0 0.0
    %2309 = vmatprep.subr.mxu0 0.0
    %2310 = vmatpush1.msra.mxu0 0.0
    %2311 = vmatprep.subr.mxu0 0.0
    %2312 = vmatpush1.msra.mxu0 0.0
    %2313 = vmatprep.subr.mxu0 0.0
    %2314 = vmatpush1.msra.mxu0 0.0
    %2315 = vmatprep.subr.mxu0 0.0
    %2316 = vmatpush1.msra.mxu0 0.0
    %2317 = vmatprep.subr.mxu0 0.0
    %2318 = vmatpush1.msra.mxu0 0.0
    %2319 = vmatprep.subr.mxu0 0.0
    %2320 = vmatpush1.msra.mxu0 0.0
    %2321 = vmatprep.subr.mxu0 0.0
    %2322 = vmatpush1.msra.mxu0 0.0
    %2323 = vmatprep.subr.mxu0 0.0
    %2324 = vmatpush1.msra.mxu0 0.0
    %2325 = vmatprep.subr.mxu0 0.0
    %2326 = vmatpush1.msra.mxu0 0.0
    %2327 = vmatprep.mubr.f32.mxu0 0.0
    %2328 = vmatmul.mubr.f32.gmra.mrb[0].mxu0 %v2261
    %v2329 = vpop.f32.mrb[0].mxu0
    %v2330 = vadd.f32 0.0, %v2329
    %v2331 = vpop.f32.mrb[0].mxu0
    %v2332 = vadd.f32 0.0, %v2331
    %2333 = vdwg.mxu0
    %2334 = vmatprep.subr.mxu0 0.0
    %2335 = vmatpush1.msra.mxu0 %v2042
    %2336 = vmatprep.subr.mxu0 0.0
    %2337 = vmatpush1.msra.mxu0 %v2045
    %2338 = vmatprep.subr.mxu0 0.0
    %2339 = vmatpush1.msra.mxu0 %v2048
    %2340 = vmatprep.subr.mxu0 0.0
    %2341 = vmatpush1.msra.mxu0 %v2051
    %2342 = vmatprep.subr.mxu0 0.0
    %2343 = vmatpush1.msra.mxu0 %v2054
    %2344 = vmatprep.subr.mxu0 0.0
    %2345 = vmatpush1.msra.mxu0 %v2057
    %2346 = vmatprep.subr.mxu0 0.0
    %2347 = vmatpush1.msra.mxu0 %v2060
    %2348 = vmatprep.subr.mxu0 0.0
    %2349 = vmatpush1.msra.mxu0 %v2063
    %2350 = vmatprep.subr.mxu0 0.0
    %2351 = vmatpush1.msra.mxu0 %v2066
    %2352 = vmatprep.subr.mxu0 0.0
    %2353 = vmatpush1.msra.mxu0 %v2069
    %2354 = vmatprep.subr.mxu0 0.0
    %2355 = vmatpush1.msra.mxu0 %v2072
    %2356 = vmatprep.subr.mxu0 0.0
    %2357 = vmatpush1.msra.mxu0 %v2075
    %2358 = vmatprep.subr.mxu0 0.0
    %2359 = vmatpush1.msra.mxu0 %v2078
    %2360 = vmatprep.subr.mxu0 0.0
    %2361 = vmatpush1.msra.mxu0 %v2081
    %2362 = vmatprep.subr.mxu0 0.0
    %2363 = vmatpush1.msra.mxu0 %v2084
    %2364 = vmatprep.subr.mxu0 0.0
    %2365 = vmatpush1.msra.mxu0 %v2087
    %2366 = vmatprep.subr.mxu0 0.0
    %2367 = vmatpush1.msra.mxu0 0.0
    %2368 = vmatprep.subr.mxu0 0.0
    %2369 = vmatpush1.msra.mxu0 0.0
    %2370 = vmatprep.subr.mxu0 0.0
    %2371 = vmatpush1.msra.mxu0 0.0
    %2372 = vmatprep.subr.mxu0 0.0
    %2373 = vmatpush1.msra.mxu0 0.0
    %2374 = vmatprep.subr.mxu0 0.0
    %2375 = vmatpush1.msra.mxu0 0.0
    %2376 = vmatprep.subr.mxu0 0.0
    %2377 = vmatpush1.msra.mxu0 0.0
    %2378 = vmatprep.subr.mxu0 0.0
    %2379 = vmatpush1.msra.mxu0 0.0
    %2380 = vmatprep.subr.mxu0 0.0
    %2381 = vmatpush1.msra.mxu0 0.0
    %2382 = vmatprep.subr.mxu0 0.0
    %2383 = vmatpush1.msra.mxu0 0.0
    %2384 = vmatprep.subr.mxu0 0.0
    %2385 = vmatpush1.msra.mxu0 0.0
    %2386 = vmatprep.subr.mxu0 0.0
    %2387 = vmatpush1.msra.mxu0 0.0
    %2388 = vmatprep.subr.mxu0 0.0
    %2389 = vmatpush1.msra.mxu0 0.0
    %2390 = vmatprep.subr.mxu0 0.0
    %2391 = vmatpush1.msra.mxu0 0.0
    %2392 = vmatprep.subr.mxu0 0.0
    %2393 = vmatpush1.msra.mxu0 0.0
    %2394 = vmatprep.subr.mxu0 0.0
    %2395 = vmatpush1.msra.mxu0 0.0
    %2396 = vmatprep.subr.mxu0 0.0
    %2397 = vmatpush1.msra.mxu0 0.0
    %2398 = vmatprep.mubr.f32.mxu0 0.0
    %2399 = vmatmul.mubr.f32.gmra.mrb[0].mxu0 %v2261
    %v2400 = vpop.f32.mrb[0].mxu0
    %v2401 = vadd.f32 0.0, %v2400
    %v2402 = vpop.f32.mrb[0].mxu0
    %2403 = vdwg.mxu0
    %v2404 = vld [vmem:[#allocation3] sm:$0xff]
    %v2405 = vld [vmem:[#allocation3 + $0x8] sm:$0xff]
    %v2406 = vld [vmem:[#allocation3 + $0x10] sm:$0xff]
    %v2407 = vadd.f32 %v2404, %v2330
    %v2408 = vxor.u32 %v2407, 2147483648
    %v2409 = vmul.f32 %v2408, 1.442695
    %v2410 = vpow.pop %v2409
    %v2411 = vadd.f32 %v2410, 1.0
    %v2412 = vrcp.pop %v2411
    %v2413 = vmul.f32 1.0, %v2412
    %v2414 = vadd.f32 %v2405, %v2332
    %v2415 = vxor.u32 %v2414, 2147483648
    %v2416 = vmul.f32 %v2415, 1.442695
    %v2417 = vpow.pop %v2416
    %v2418 = vadd.f32 %v2417, 1.0
    %v2419 = vrcp.pop %v2418
    %v2420 = vmul.f32 1.0, %v2419
    %v2421 = vadd.f32 %v2401, %v2093
    %v2422 = vmul.f32 %v2413, %v2421
    %v2423 = vadd.f32 %v2406, %v2422
    %v2424 = vtanh.pop %v2423
    %v2425 = vsub.f32 1.0, %v2420
    %v2426 = vmul.f32 %v2425, %v2424
    %v2427 = vmul.f32 %v2420, %v2261
    %v2428 = vadd.f32 %v2426, %v2427
    %s2429 = scalar_lea.vmem [#allocation5], 8
    %2430 = vst [vmem:[%s2429] sm:$0xff] %v2428
    %2431 = vmatprep.subr.mxu0 %v2041
    %2432 = vmatpush1.msra.mxu0 %v2040
    %2433 = vmatprep.subr.mxu0 %v2044
    %2434 = vmatpush1.msra.mxu0 %v2043
    %2435 = vmatprep.subr.mxu0 %v2047
    %2436 = vmatpush1.msra.mxu0 %v2046
    %2437 = vmatprep.subr.mxu0 %v2050
    %2438 = vmatpush1.msra.mxu0 %v2049
    %2439 = vmatprep.subr.mxu0 %v2053
    %2440 = vmatpush1.msra.mxu0 %v2052
    %2441 = vmatprep.subr.mxu0 %v2056
    %2442 = vmatpush1.msra.mxu0 %v2055
    %2443 = vmatprep.subr.mxu0 %v2059
    %2444 = vmatpush1.msra.mxu0 %v2058
    %2445 = vmatprep.subr.mxu0 %v2062
    %2446 = vmatpush1.msra.mxu0 %v2061
    %2447 = vmatprep.subr.mxu0 %v2065
    %2448 = vmatpush1.msra.mxu0 %v2064
    %2449 = vmatprep.subr.mxu0 %v2068
    %2450 = vmatpush1.msra.mxu0 %v2067
    %2451 = vmatprep.subr.mxu0 %v2071
    %2452 = vmatpush1.msra.mxu0 %v2070
    %2453 = vmatprep.subr.mxu0 %v2074
    %2454 = vmatpush1.msra.mxu0 %v2073
    %2455 = vmatprep.subr.mxu0 %v2077
    %2456 = vmatpush1.msra.mxu0 %v2076
    %2457 = vmatprep.subr.mxu0 %v2080
    %2458 = vmatpush1.msra.mxu0 %v2079
    %2459 = vmatprep.subr.mxu0 %v2083
    %2460 = vmatpush1.msra.mxu0 %v2082
    %2461 = vmatprep.subr.mxu0 %v2086
    %2462 = vmatpush1.msra.mxu0 %v2085
    %2463 = vmatprep.subr.mxu0 0.0
    %2464 = vmatpush1.msra.mxu0 0.0
    %2465 = vmatprep.subr.mxu0 0.0
    %2466 = vmatpush1.msra.mxu0 0.0
    %2467 = vmatprep.subr.mxu0 0.0
    %2468 = vmatpush1.msra.mxu0 0.0
    %2469 = vmatprep.subr.mxu0 0.0
    %2470 = vmatpush1.msra.mxu0 0.0
    %2471 = vmatprep.subr.mxu0 0.0
    %2472 = vmatpush1.msra.mxu0 0.0
    %2473 = vmatprep.subr.mxu0 0.0
    %2474 = vmatpush1.msra.mxu0 0.0
    %2475 = vmatprep.subr.mxu0 0.0
    %2476 = vmatpush1.msra.mxu0 0.0
    %2477 = vmatprep.subr.mxu0 0.0
    %2478 = vmatpush1.msra.mxu0 0.0
    %2479 = vmatprep.subr.mxu0 0.0
    %2480 = vmatpush1.msra.mxu0 0.0
    %2481 = vmatprep.subr.mxu0 0.0
    %2482 = vmatpush1.msra.mxu0 0.0
    %2483 = vmatprep.subr.mxu0 0.0
    %2484 = vmatpush1.msra.mxu0 0.0
    %2485 = vmatprep.subr.mxu0 0.0
    %2486 = vmatpush1.msra.mxu0 0.0
    %2487 = vmatprep.subr.mxu0 0.0
    %2488 = vmatpush1.msra.mxu0 0.0
    %2489 = vmatprep.subr.mxu0 0.0
    %2490 = vmatpush1.msra.mxu0 0.0
    %2491 = vmatprep.subr.mxu0 0.0
    %2492 = vmatpush1.msra.mxu0 0.0
    %2493 = vmatprep.subr.mxu0 0.0
    %2494 = vmatpush1.msra.mxu0 0.0
    %2495 = vmatprep.mubr.f32.mxu0 0.0
    %2496 = vmatmul.mubr.f32.gmra.mrb[0].mxu0 %v2428
    %v2497 = vpop.f32.mrb[0].mxu0
    %v2498 = vadd.f32 0.0, %v2497
    %v2499 = vpop.f32.mrb[0].mxu0
    %v2500 = vadd.f32 0.0, %v2499
    %2501 = vdwg.mxu0
    %2502 = vmatprep.subr.mxu0 0.0
    %2503 = vmatpush1.msra.mxu0 %v2042
    %2504 = vmatprep.subr.mxu0 0.0
    %2505 = vmatpush1.msra.mxu0 %v2045
    %2506 = vmatprep.subr.mxu0 0.0
    %2507 = vmatpush1.msra.mxu0 %v2048
    %2508 = vmatprep.subr.mxu0 0.0
    %2509 = vmatpush1.msra.mxu0 %v2051
    %2510 = vmatprep.subr.mxu0 0.0
    %2511 = vmatpush1.msra.mxu0 %v2054
    %2512 = vmatprep.subr.mxu0 0.0
    %2513 = vmatpush1.msra.mxu0 %v2057
    %2514 = vmatprep.subr.mxu0 0.0
    %2515 = vmatpush1.msra.mxu0 %v2060
    %2516 = vmatprep.subr.mxu0 0.0
    %2517 = vmatpush1.msra.mxu0 %v2063
    %2518 = vmatprep.subr.mxu0 0.0
    %2519 = vmatpush1.msra.mxu0 %v2066
    %2520 = vmatprep.subr.mxu0 0.0
    %2521 = vmatpush1.msra.mxu0 %v2069
    %2522 = vmatprep.subr.mxu0 0.0
    %2523 = vmatpush1.msra.mxu0 %v2072
    %2524 = vmatprep.subr.mxu0 0.0
    %2525 = vmatpush1.msra.mxu0 %v2075
    %2526 = vmatprep.subr.mxu0 0.0
    %2527 = vmatpush1.msra.mxu0 %v2078
    %2528 = vmatprep.subr.mxu0 0.0
    %2529 = vmatpush1.msra.mxu0 %v2081
    %2530 = vmatprep.subr.mxu0 0.0
    %2531 = vmatpush1.msra.mxu0 %v2084
    %2532 = vmatprep.subr.mxu0 0.0
    %2533 = vmatpush1.msra.mxu0 %v2087
    %2534 = vmatprep.subr.mxu0 0.0
    %2535 = vmatpush1.msra.mxu0 0.0
    %2536 = vmatprep.subr.mxu0 0.0
    %2537 = vmatpush1.msra.mxu0 0.0
    %2538 = vmatprep.subr.mxu0 0.0
    %2539 = vmatpush1.msra.mxu0 0.0
    %2540 = vmatprep.subr.mxu0 0.0
    %2541 = vmatpush1.msra.mxu0 0.0
    %2542 = vmatprep.subr.mxu0 0.0
    %2543 = vmatpush1.msra.mxu0 0.0
    %2544 = vmatprep.subr.mxu0 0.0
    %2545 = vmatpush1.msra.mxu0 0.0
    %2546 = vmatprep.subr.mxu0 0.0
    %2547 = vmatpush1.msra.mxu0 0.0
    %2548 = vmatprep.subr.mxu0 0.0
    %2549 = vmatpush1.msra.mxu0 0.0
    %2550 = vmatprep.subr.mxu0 0.0
    %2551 = vmatpush1.msra.mxu0 0.0
    %2552 = vmatprep.subr.mxu0 0.0
    %2553 = vmatpush1.msra.mxu0 0.0
    %2554 = vmatprep.subr.mxu0 0.0
    %2555 = vmatpush1.msra.mxu0 0.0
    %2556 = vmatprep.subr.mxu0 0.0
    %2557 = vmatpush1.msra.mxu0 0.0
    %2558 = vmatprep.subr.mxu0 0.0
    %2559 = vmatpush1.msra.mxu0 0.0
    %2560 = vmatprep.subr.mxu0 0.0
    %2561 = vmatpush1.msra.mxu0 0.0
    %2562 = vmatprep.subr.mxu0 0.0
    %2563 = vmatpush1.msra.mxu0 0.0
    %2564 = vmatprep.subr.mxu0 0.0
    %2565 = vmatpush1.msra.mxu0 0.0
    %2566 = vmatprep.mubr.f32.mxu0 0.0
    %2567 = vmatmul.mubr.f32.gmra.mrb[0].mxu0 %v2428
    %v2568 = vpop.f32.mrb[0].mxu0
    %v2569 = vadd.f32 0.0, %v2568
    %v2570 = vpop.f32.mrb[0].mxu0
    %2571 = vdwg.mxu0
    %v2572 = vld [vmem:[#allocation3] sm:$0xff]
    %v2573 = vld [vmem:[#allocation3 + $0x8] sm:$0xff]
    %v2574 = vld [vmem:[#allocation3 + $0x10] sm:$0xff]
    %v2575 = vadd.f32 %v2572, %v2498
    %v2576 = vxor.u32 %v2575, 2147483648
    %v2577 = vmul.f32 %v2576, 1.442695
    %v2578 = vpow.pop %v2577
    %v2579 = vadd.f32 %v2578, 1.0
    %v2580 = vrcp.pop %v2579
    %v2581 = vmul.f32 1.0, %v2580
    %v2582 = vadd.f32 %v2573, %v2500
    %v2583 = vxor.u32 %v2582, 2147483648
    %v2584 = vmul.f32 %v2583, 1.442695
    %v2585 = vpow.pop %v2584
    %v2586 = vadd.f32 %v2585, 1.0
    %v2587 = vrcp.pop %v2586
    %v2588 = vmul.f32 1.0, %v2587
    %v2589 = vadd.f32 %v2569, %v2093
    %v2590 = vmul.f32 %v2581, %v2589
    %v2591 = vadd.f32 %v2574, %v2590
    %v2592 = vtanh.pop %v2591
    %v2593 = vsub.f32 1.0, %v2588
    %v2594 = vmul.f32 %v2593, %v2592
    %v2595 = vmul.f32 %v2588, %v2428
    %v2596 = vadd.f32 %v2594, %v2595
    %s2597 = scalar_lea.vmem [#allocation5], 16
    %2598 = vst [vmem:[%s2597] sm:$0xff] %v2596
    %2599 = vmatprep.subr.mxu0 %v2041
    %2600 = vmatpush1.msra.mxu0 %v2040
    %2601 = vmatprep.subr.mxu0 %v2044
    %2602 = vmatpush1.msra.mxu0 %v2043
    %2603 = vmatprep.subr.mxu0 %v2047
    %2604 = vmatpush1.msra.mxu0 %v2046
    %2605 = vmatprep.subr.mxu0 %v2050
    %2606 = vmatpush1.msra.mxu0 %v2049
    %2607 = vmatprep.subr.mxu0 %v2053
    %2608 = vmatpush1.msra.mxu0 %v2052
    %2609 = vmatprep.subr.mxu0 %v2056
    %2610 = vmatpush1.msra.mxu0 %v2055
    %2611 = vmatprep.subr.mxu0 %v2059
    %2612 = vmatpush1.msra.mxu0 %v2058
    %2613 = vmatprep.subr.mxu0 %v2062
    %2614 = vmatpush1.msra.mxu0 %v2061
    %2615 = vmatprep.subr.mxu0 %v2065
    %2616 = vmatpush1.msra.mxu0 %v2064
    %2617 = vmatprep.subr.mxu0 %v2068
    %2618 = vmatpush1.msra.mxu0 %v2067
    %2619 = vmatprep.subr.mxu0 %v2071
    %2620 = vmatpush1.msra.mxu0 %v2070
    %2621 = vmatprep.subr.mxu0 %v2074
    %2622 = vmatpush1.msra.mxu0 %v2073
    %2623 = vmatprep.subr.mxu0 %v2077
    %2624 = vmatpush1.msra.mxu0 %v2076
    %2625 = vmatprep.subr.mxu0 %v2080
    %2626 = vmatpush1.msra.mxu0 %v2079
    %2627 = vmatprep.subr.mxu0 %v2083
    %2628 = vmatpush1.msra.mxu0 %v2082
    %2629 = vmatprep.subr.mxu0 %v2086
    %2630 = vmatpush1.msra.mxu0 %v2085
    %2631 = vmatprep.subr.mxu0 0.0
    %2632 = vmatpush1.msra.mxu0 0.0
    %2633 = vmatprep.subr.mxu0 0.0
    %2634 = vmatpush1.msra.mxu0 0.0
    %2635 = vmatprep.subr.mxu0 0.0
    %2636 = vmatpush1.msra.mxu0 0.0
    %2637 = vmatprep.subr.mxu0 0.0
    %2638 = vmatpush1.msra.mxu0 0.0
    %2639 = vmatprep.subr.mxu0 0.0
    %2640 = vmatpush1.msra.mxu0 0.0
    %2641 = vmatprep.subr.mxu0 0.0
    %2642 = vmatpush1.msra.mxu0 0.0
    %2643 = vmatprep.subr.mxu0 0.0
    %2644 = vmatpush1.msra.mxu0 0.0
    %2645 = vmatprep.subr.mxu0 0.0
    %2646 = vmatpush1.msra.mxu0 0.0
    %2647 = vmatprep.subr.mxu0 0.0
    %2648 = vmatpush1.msra.mxu0 0.0
    %2649 = vmatprep.subr.mxu0 0.0
    %2650 = vmatpush1.msra.mxu0 0.0
    %2651 = vmatprep.subr.mxu0 0.0
    %2652 = vmatpush1.msra.mxu0 0.0
    %2653 = vmatprep.subr.mxu0 0.0
    %2654 = vmatpush1.msra.mxu0 0.0
    %2655 = vmatprep.subr.mxu0 0.0
    %2656 = vmatpush1.msra.mxu0 0.0
    %2657 = vmatprep.subr.mxu0 0.0
    %2658 = vmatpush1.msra.mxu0 0.0
    %2659 = vmatprep.subr.mxu0 0.0
    %2660 = vmatpush1.msra.mxu0 0.0
    %2661 = vmatprep.subr.mxu0 0.0
    %2662 = vmatpush1.msra.mxu0 0.0
    %2663 = vmatprep.mubr.f32.mxu0 0.0
    %2664 = vmatmul.mubr.f32.gmra.mrb[0].mxu0 %v2596
    %v2665 = vpop.f32.mrb[0].mxu0
    %v2666 = vadd.f32 0.0, %v2665
    %v2667 = vpop.f32.mrb[0].mxu0
    %v2668 = vadd.f32 0.0, %v2667
    %2669 = vdwg.mxu0
    %2670 = vmatprep.subr.mxu0 0.0
    %2671 = vmatpush1.msra.mxu0 %v2042
    %2672 = vmatprep.subr.mxu0 0.0
    %2673 = vmatpush1.msra.mxu0 %v2045
    %2674 = vmatprep.subr.mxu0 0.0
    %2675 = vmatpush1.msra.mxu0 %v2048
    %2676 = vmatprep.subr.mxu0 0.0
    %2677 = vmatpush1.msra.mxu0 %v2051
    %2678 = vmatprep.subr.mxu0 0.0
    %2679 = vmatpush1.msra.mxu0 %v2054
    %2680 = vmatprep.subr.mxu0 0.0
    %2681 = vmatpush1.msra.mxu0 %v2057
    %2682 = vmatprep.subr.mxu0 0.0
    %2683 = vmatpush1.msra.mxu0 %v2060
    %2684 = vmatprep.subr.mxu0 0.0
    %2685 = vmatpush1.msra.mxu0 %v2063
    %2686 = vmatprep.subr.mxu0 0.0
    %2687 = vmatpush1.msra.mxu0 %v2066
    %2688 = vmatprep.subr.mxu0 0.0
    %2689 = vmatpush1.msra.mxu0 %v2069
    %2690 = vmatprep.subr.mxu0 0.0
    %2691 = vmatpush1.msra.mxu0 %v2072
    %2692 = vmatprep.subr.mxu0 0.0
    %2693 = vmatpush1.msra.mxu0 %v2075
    %2694 = vmatprep.subr.mxu0 0.0
    %2695 = vmatpush1.msra.mxu0 %v2078
    %2696 = vmatprep.subr.mxu0 0.0
    %2697 = vmatpush1.msra.mxu0 %v2081
    %2698 = vmatprep.subr.mxu0 0.0
    %2699 = vmatpush1.msra.mxu0 %v2084
    %2700 = vmatprep.subr.mxu0 0.0
    %2701 = vmatpush1.msra.mxu0 %v2087
    %2702 = vmatprep.subr.mxu0 0.0
    %2703 = vmatpush1.msra.mxu0 0.0
    %2704 = vmatprep.subr.mxu0 0.0
    %2705 = vmatpush1.msra.mxu0 0.0
    %2706 = vmatprep.subr.mxu0 0.0
    %2707 = vmatpush1.msra.mxu0 0.0
    %2708 = vmatprep.subr.mxu0 0.0
    %2709 = vmatpush1.msra.mxu0 0.0
    %2710 = vmatprep.subr.mxu0 0.0
    %2711 = vmatpush1.msra.mxu0 0.0
    %2712 = vmatprep.subr.mxu0 0.0
    %2713 = vmatpush1.msra.mxu0 0.0
    %2714 = vmatprep.subr.mxu0 0.0
    %2715 = vmatpush1.msra.mxu0 0.0
    %2716 = vmatprep.subr.mxu0 0.0
    %2717 = vmatpush1.msra.mxu0 0.0
    %2718 = vmatprep.subr.mxu0 0.0
    %2719 = vmatpush1.msra.mxu0 0.0
    %2720 = vmatprep.subr.mxu0 0.0
    %2721 = vmatpush1.msra.mxu0 0.0
    %2722 = vmatprep.subr.mxu0 0.0
    %2723 = vmatpush1.msra.mxu0 0.0
    %2724 = vmatprep.subr.mxu0 0.0
    %2725 = vmatpush1.msra.mxu0 0.0
    %2726 = vmatprep.subr.mxu0 0.0
    %2727 = vmatpush1.msra.mxu0 0.0
    %2728 = vmatprep.subr.mxu0 0.0
    %2729 = vmatpush1.msra.mxu0 0.0
    %2730 = vmatprep.subr.mxu0 0.0
    %2731 = vmatpush1.msra.mxu0 0.0
    %2732 = vmatprep.subr.mxu0 0.0
    %2733 = vmatpush1.msra.mxu0 0.0
    %2734 = vmatprep.mubr.f32.mxu0 0.0
    %2735 = vmatmul.mubr.f32.gmra.mrb[0].mxu0 %v2596
    %v2736 = vpop.f32.mrb[0].mxu0
    %v2737 = vadd.f32 0.0, %v2736
    %v2738 = vpop.f32.mrb[0].mxu0
    %2739 = vdwg.mxu0
    %v2740 = vld [vmem:[#allocation3] sm:$0xff]
    %v2741 = vld [vmem:[#allocation3 + $0x8] sm:$0xff]
    %v2742 = vld [vmem:[#allocation3 + $0x10] sm:$0xff]
    %v2743 = vadd.f32 %v2740, %v2666
    %v2744 = vxor.u32 %v2743, 2147483648
    %v2745 = vmul.f32 %v2744, 1.442695
    %v2746 = vpow.pop %v2745
    %v2747 = vadd.f32 %v2746, 1.0
    %v2748 = vrcp.pop %v2747
    %v2749 = vmul.f32 1.0, %v2748
    %v2750 = vadd.f32 %v2741, %v2668
    %v2751 = vxor.u32 %v2750, 2147483648
    %v2752 = vmul.f32 %v2751, 1.442695
    %v2753 = vpow.pop %v2752
    %v2754 = vadd.f32 %v2753, 1.0
    %v2755 = vrcp.pop %v2754
    %v2756 = vmul.f32 1.0, %v2755
    %v2757 = vadd.f32 %v2737, %v2093
    %v2758 = vmul.f32 %v2749, %v2757
    %v2759 = vadd.f32 %v2742, %v2758
    %v2760 = vtanh.pop %v2759
    %v2761 = vsub.f32 1.0, %v2756
    %v2762 = vmul.f32 %v2761, %v2760
    %v2763 = vmul.f32 %v2756, %v2596
    %v2764 = vadd.f32 %v2762, %v2763
    %s2765 = scalar_lea.vmem [#allocation5], 24
    %2766 = vst [vmem:[%s2765] sm:$0xff] %v2764
    %2767 = vmatprep.subr.mxu0 %v2041
    %2768 = vmatpush1.msra.mxu0 %v2040
    %2769 = vmatprep.subr.mxu0 %v2044
    %2770 = vmatpush1.msra.mxu0 %v2043
    %2771 = vmatprep.subr.mxu0 %v2047
    %2772 = vmatpush1.msra.mxu0 %v2046
    %2773 = vmatprep.subr.mxu0 %v2050
    %2774 = vmatpush1.msra.mxu0 %v2049
    %2775 = vmatprep.subr.mxu0 %v2053
    %2776 = vmatpush1.msra.mxu0 %v2052
    %2777 = vmatprep.subr.mxu0 %v2056
    %2778 = vmatpush1.msra.mxu0 %v2055
    %2779 = vmatprep.subr.mxu0 %v2059
    %2780 = vmatpush1.msra.mxu0 %v2058
    %2781 = vmatprep.subr.mxu0 %v2062
    %2782 = vmatpush1.msra.mxu0 %v2061
    %2783 = vmatprep.subr.mxu0 %v2065
    %2784 = vmatpush1.msra.mxu0 %v2064
    %2785 = vmatprep.subr.mxu0 %v2068
    %2786 = vmatpush1.msra.mxu0 %v2067
    %2787 = vmatprep.subr.mxu0 %v2071
    %2788 = vmatpush1.msra.mxu0 %v2070
    %2789 = vmatprep.subr.mxu0 %v2074
    %2790 = vmatpush1.msra.mxu0 %v2073
    %2791 = vmatprep.subr.mxu0 %v2077
    %2792 = vmatpush1.msra.mxu0 %v2076
    %2793 = vmatprep.subr.mxu0 %v2080
    %2794 = vmatpush1.msra.mxu0 %v2079
    %2795 = vmatprep.subr.mxu0 %v2083
    %2796 = vmatpush1.msra.mxu0 %v2082
    %2797 = vmatprep.subr.mxu0 %v2086
    %2798 = vmatpush1.msra.mxu0 %v2085
    %2799 = vmatprep.subr.mxu0 0.0
    %2800 = vmatpush1.msra.mxu0 0.0
    %2801 = vmatprep.subr.mxu0 0.0
    %2802 = vmatpush1.msra.mxu0 0.0
    %2803 = vmatprep.subr.mxu0 0.0
    %2804 = vmatpush1.msra.mxu0 0.0
    %2805 = vmatprep.subr.mxu0 0.0
    %2806 = vmatpush1.msra.mxu0 0.0
    %2807 = vmatprep.subr.mxu0 0.0
    %2808 = vmatpush1.msra.mxu0 0.0
    %2809 = vmatprep.subr.mxu0 0.0
    %2810 = vmatpush1.msra.mxu0 0.0
    %2811 = vmatprep.subr.mxu0 0.0
    %2812 = vmatpush1.msra.mxu0 0.0
    %2813 = vmatprep.subr.mxu0 0.0
    %2814 = vmatpush1.msra.mxu0 0.0
    %2815 = vmatprep.subr.mxu0 0.0
    %2816 = vmatpush1.msra.mxu0 0.0
    %2817 = vmatprep.subr.mxu0 0.0
    %2818 = vmatpush1.msra.mxu0 0.0
    %2819 = vmatprep.subr.mxu0 0.0
    %2820 = vmatpush1.msra.mxu0 0.0
    %2821 = vmatprep.subr.mxu0 0.0
    %2822 = vmatpush1.msra.mxu0 0.0
    %2823 = vmatprep.subr.mxu0 0.0
    %2824 = vmatpush1.msra.mxu0 0.0
    %2825 = vmatprep.subr.mxu0 0.0
    %2826 = vmatpush1.msra.mxu0 0.0
    %2827 = vmatprep.subr.mxu0 0.0
    %2828 = vmatpush1.msra.mxu0 0.0
    %2829 = vmatprep.subr.mxu0 0.0
    %2830 = vmatpush1.msra.mxu0 0.0
    %2831 = vmatprep.mubr.f32.mxu0 0.0
    %2832 = vmatmul.mubr.f32.gmra.mrb[0].mxu0 %v2764
    %v2833 = vpop.f32.mrb[0].mxu0
    %v2834 = vadd.f32 0.0, %v2833
    %v2835 = vpop.f32.mrb[0].mxu0
    %v2836 = vadd.f32 0.0, %v2835
    %2837 = vdwg.mxu0
    %2838 = vmatprep.subr.mxu0 0.0
    %2839 = vmatpush1.msra.mxu0 %v2042
    %2840 = vmatprep.subr.mxu0 0.0
    %2841 = vmatpush1.msra.mxu0 %v2045
    %2842 = vmatprep.subr.mxu0 0.0
    %2843 = vmatpush1.msra.mxu0 %v2048
    %2844 = vmatprep.subr.mxu0 0.0
    %2845 = vmatpush1.msra.mxu0 %v2051
    %2846 = vmatprep.subr.mxu0 0.0
    %2847 = vmatpush1.msra.mxu0 %v2054
    %2848 = vmatprep.subr.mxu0 0.0
    %2849 = vmatpush1.msra.mxu0 %v2057
    %2850 = vmatprep.subr.mxu0 0.0
    %2851 = vmatpush1.msra.mxu0 %v2060
    %2852 = vmatprep.subr.mxu0 0.0
    %2853 = vmatpush1.msra.mxu0 %v2063
    %2854 = vmatprep.subr.mxu0 0.0
    %2855 = vmatpush1.msra.mxu0 %v2066
    %2856 = vmatprep.subr.mxu0 0.0
    %2857 = vmatpush1.msra.mxu0 %v2069
    %2858 = vmatprep.subr.mxu0 0.0
    %2859 = vmatpush1.msra.mxu0 %v2072
    %2860 = vmatprep.subr.mxu0 0.0
    %2861 = vmatpush1.msra.mxu0 %v2075
    %2862 = vmatprep.subr.mxu0 0.0
    %2863 = vmatpush1.msra.mxu0 %v2078
    %2864 = vmatprep.subr.mxu0 0.0
    %2865 = vmatpush1.msra.mxu0 %v2081
    %2866 = vmatprep.subr.mxu0 0.0
    %2867 = vmatpush1.msra.mxu0 %v2084
    %2868 = vmatprep.subr.mxu0 0.0
    %2869 = vmatpush1.msra.mxu0 %v2087
    %2870 = vmatprep.subr.mxu0 0.0
    %2871 = vmatpush1.msra.mxu0 0.0
    %2872 = vmatprep.subr.mxu0 0.0
    %2873 = vmatpush1.msra.mxu0 0.0
    %2874 = vmatprep.subr.mxu0 0.0
    %2875 = vmatpush1.msra.mxu0 0.0
    %2876 = vmatprep.subr.mxu0 0.0
    %2877 = vmatpush1.msra.mxu0 0.0
    %2878 = vmatprep.subr.mxu0 0.0
    %2879 = vmatpush1.msra.mxu0 0.0
    %2880 = vmatprep.subr.mxu0 0.0
    %2881 = vmatpush1.msra.mxu0 0.0
    %2882 = vmatprep.subr.mxu0 0.0
    %2883 = vmatpush1.msra.mxu0 0.0
    %2884 = vmatprep.subr.mxu0 0.0
    %2885 = vmatpush1.msra.mxu0 0.0
    %2886 = vmatprep.subr.mxu0 0.0
    %2887 = vmatpush1.msra.mxu0 0.0
    %2888 = vmatprep.subr.mxu0 0.0
    %2889 = vmatpush1.msra.mxu0 0.0
    %2890 = vmatprep.subr.mxu0 0.0
    %2891 = vmatpush1.msra.mxu0 0.0
    %2892 = vmatprep.subr.mxu0 0.0
    %2893 = vmatpush1.msra.mxu0 0.0
    %2894 = vmatprep.subr.mxu0 0.0
    %2895 = vmatpush1.msra.mxu0 0.0
    %2896 = vmatprep.subr.mxu0 0.0
    %2897 = vmatpush1.msra.mxu0 0.0
    %2898 = vmatprep.subr.mxu0 0.0
    %2899 = vmatpush1.msra.mxu0 0.0
    %2900 = vmatprep.subr.mxu0 0.0
    %2901 = vmatpush1.msra.mxu0 0.0
    %2902 = vmatprep.mubr.f32.mxu0 0.0
    %2903 = vmatmul.mubr.f32.gmra.mrb[0].mxu0 %v2764
    %v2904 = vpop.f32.mrb[0].mxu0
    %v2905 = vadd.f32 0.0, %v2904
    %v2906 = vpop.f32.mrb[0].mxu0
    %2907 = vdwg.mxu0
    %v2908 = vld [vmem:[#allocation3] sm:$0xff]
    %v2909 = vld [vmem:[#allocation3 + $0x8] sm:$0xff]
    %v2910 = vld [vmem:[#allocation3 + $0x10] sm:$0xff]
    %v2911 = vadd.f32 %v2908, %v2834
    %v2912 = vxor.u32 %v2911, 2147483648
    %v2913 = vmul.f32 %v2912, 1.442695
    %v2914 = vpow.pop %v2913
    %v2915 = vadd.f32 %v2914, 1.0
    %v2916 = vrcp.pop %v2915
    %v2917 = vmul.f32 1.0, %v2916
    %v2918 = vadd.f32 %v2909, %v2836
    %v2919 = vxor.u32 %v2918, 2147483648
    %v2920 = vmul.f32 %v2919, 1.442695
    %v2921 = vpow.pop %v2920
    %v2922 = vadd.f32 %v2921, 1.0
    %v2923 = vrcp.pop %v2922
    %v2924 = vmul.f32 1.0, %v2923
    %v2925 = vadd.f32 %v2905, %v2093
    %v2926 = vmul.f32 %v2917, %v2925
    %v2927 = vadd.f32 %v2910, %v2926
    %v2928 = vtanh.pop %v2927
    %v2929 = vsub.f32 1.0, %v2924
    %v2930 = vmul.f32 %v2929, %v2928
    %v2931 = vmul.f32 %v2924, %v2764
    %v2932 = vadd.f32 %v2930, %v2931
    %s2933 = scalar_lea.vmem [#allocation5], 32
    %2934 = vst [vmem:[%s2933] sm:$0xff] %v2932
    %2935 = vmatprep.subr.mxu0 %v2041
    %2936 = vmatpush1.msra.mxu0 %v2040
    %2937 = vmatprep.subr.mxu0 %v2044
    %2938 = vmatpush1.msra.mxu0 %v2043
    %2939 = vmatprep.subr.mxu0 %v2047
    %2940 = vmatpush1.msra.mxu0 %v2046
    %2941 = vmatprep.subr.mxu0 %v2050
    %2942 = vmatpush1.msra.mxu0 %v2049
    %2943 = vmatprep.subr.mxu0 %v2053
    %2944 = vmatpush1.msra.mxu0 %v2052
    %2945 = vmatprep.subr.mxu0 %v2056
    %2946 = vmatpush1.msra.mxu0 %v2055
    %2947 = vmatprep.subr.mxu0 %v2059
    %2948 = vmatpush1.msra.mxu0 %v2058
    %2949 = vmatprep.subr.mxu0 %v2062
    %2950 = vmatpush1.msra.mxu0 %v2061
    %2951 = vmatprep.subr.mxu0 %v2065
    %2952 = vmatpush1.msra.mxu0 %v2064
    %2953 = vmatprep.subr.mxu0 %v2068
    %2954 = vmatpush1.msra.mxu0 %v2067
    %2955 = vmatprep.subr.mxu0 %v2071
    %2956 = vmatpush1.msra.mxu0 %v2070
    %2957 = vmatprep.subr.mxu0 %v2074
    %2958 = vmatpush1.msra.mxu0 %v2073
    %2959 = vmatprep.subr.mxu0 %v2077
    %2960 = vmatpush1.msra.mxu0 %v2076
    %2961 = vmatprep.subr.mxu0 %v2080
    %2962 = vmatpush1.msra.mxu0 %v2079
    %2963 = vmatprep.subr.mxu0 %v2083
    %2964 = vmatpush1.msra.mxu0 %v2082
    %2965 = vmatprep.subr.mxu0 %v2086
    %2966 = vmatpush1.msra.mxu0 %v2085
    %2967 = vmatprep.subr.mxu0 0.0
    %2968 = vmatpush1.msra.mxu0 0.0
    %2969 = vmatprep.subr.mxu0 0.0
    %2970 = vmatpush1.msra.mxu0 0.0
    %2971 = vmatprep.subr.mxu0 0.0
    %2972 = vmatpush1.msra.mxu0 0.0
    %2973 = vmatprep.subr.mxu0 0.0
    %2974 = vmatpush1.msra.mxu0 0.0
    %2975 = vmatprep.subr.mxu0 0.0
    %2976 = vmatpush1.msra.mxu0 0.0
    %2977 = vmatprep.subr.mxu0 0.0
    %2978 = vmatpush1.msra.mxu0 0.0
    %2979 = vmatprep.subr.mxu0 0.0
    %2980 = vmatpush1.msra.mxu0 0.0
    %2981 = vmatprep.subr.mxu0 0.0
    %2982 = vmatpush1.msra.mxu0 0.0
    %2983 = vmatprep.subr.mxu0 0.0
    %2984 = vmatpush1.msra.mxu0 0.0
    %2985 = vmatprep.subr.mxu0 0.0
    %2986 = vmatpush1.msra.mxu0 0.0
    %2987 = vmatprep.subr.mxu0 0.0
    %2988 = vmatpush1.msra.mxu0 0.0
    %2989 = vmatprep.subr.mxu0 0.0
    %2990 = vmatpush1.msra.mxu0 0.0
    %2991 = vmatprep.subr.mxu0 0.0
    %2992 = vmatpush1.msra.mxu0 0.0
    %2993 = vmatprep.subr.mxu0 0.0
    %2994 = vmatpush1.msra.mxu0 0.0
    %2995 = vmatprep.subr.mxu0 0.0
    %2996 = vmatpush1.msra.mxu0 0.0
    %2997 = vmatprep.subr.mxu0 0.0
    %2998 = vmatpush1.msra.mxu0 0.0
    %2999 = vmatprep.mubr.f32.mxu0 0.0
    %3000 = vmatmul.mubr.f32.gmra.mrb[0].mxu0 %v2932
    %v3001 = vpop.f32.mrb[0].mxu0
    %v3002 = vadd.f32 0.0, %v3001
    %v3003 = vpop.f32.mrb[0].mxu0
    %v3004 = vadd.f32 0.0, %v3003
    %3005 = vdwg.mxu0
    %3006 = vmatprep.subr.mxu0 0.0
    %3007 = vmatpush1.msra.mxu0 %v2042
    %3008 = vmatprep.subr.mxu0 0.0
    %3009 = vmatpush1.msra.mxu0 %v2045
    %3010 = vmatprep.subr.mxu0 0.0
    %3011 = vmatpush1.msra.mxu0 %v2048
    %3012 = vmatprep.subr.mxu0 0.0
    %3013 = vmatpush1.msra.mxu0 %v2051
    %3014 = vmatprep.subr.mxu0 0.0
    %3015 = vmatpush1.msra.mxu0 %v2054
    %3016 = vmatprep.subr.mxu0 0.0
    %3017 = vmatpush1.msra.mxu0 %v2057
    %3018 = vmatprep.subr.mxu0 0.0
    %3019 = vmatpush1.msra.mxu0 %v2060
    %3020 = vmatprep.subr.mxu0 0.0
    %3021 = vmatpush1.msra.mxu0 %v2063
    %3022 = vmatprep.subr.mxu0 0.0
    %3023 = vmatpush1.msra.mxu0 %v2066
    %3024 = vmatprep.subr.mxu0 0.0
    %3025 = vmatpush1.msra.mxu0 %v2069
    %3026 = vmatprep.subr.mxu0 0.0
    %3027 = vmatpush1.msra.mxu0 %v2072
    %3028 = vmatprep.subr.mxu0 0.0
    %3029 = vmatpush1.msra.mxu0 %v2075
    %3030 = vmatprep.subr.mxu0 0.0
    %3031 = vmatpush1.msra.mxu0 %v2078
    %3032 = vmatprep.subr.mxu0 0.0
    %3033 = vmatpush1.msra.mxu0 %v2081
    %3034 = vmatprep.subr.mxu0 0.0
    %3035 = vmatpush1.msra.mxu0 %v2084
    %3036 = vmatprep.subr.mxu0 0.0
    %3037 = vmatpush1.msra.mxu0 %v2087
    %3038 = vmatprep.subr.mxu0 0.0
    %3039 = vmatpush1.msra.mxu0 0.0
    %3040 = vmatprep.subr.mxu0 0.0
    %3041 = vmatpush1.msra.mxu0 0.0
    %3042 = vmatprep.subr.mxu0 0.0
    %3043 = vmatpush1.msra.mxu0 0.0
    %3044 = vmatprep.subr.mxu0 0.0
    %3045 = vmatpush1.msra.mxu0 0.0
    %3046 = vmatprep.subr.mxu0 0.0
    %3047 = vmatpush1.msra.mxu0 0.0
    %3048 = vmatprep.subr.mxu0 0.0
    %3049 = vmatpush1.msra.mxu0 0.0
    %3050 = vmatprep.subr.mxu0 0.0
    %3051 = vmatpush1.msra.mxu0 0.0
    %3052 = vmatprep.subr.mxu0 0.0
    %3053 = vmatpush1.msra.mxu0 0.0
    %3054 = vmatprep.subr.mxu0 0.0
    %3055 = vmatpush1.msra.mxu0 0.0
    %3056 = vmatprep.subr.mxu0 0.0
    %3057 = vmatpush1.msra.mxu0 0.0
    %3058 = vmatprep.subr.mxu0 0.0
    %3059 = vmatpush1.msra.mxu0 0.0
    %3060 = vmatprep.subr.mxu0 0.0
    %3061 = vmatpush1.msra.mxu0 0.0
    %3062 = vmatprep.subr.mxu0 0.0
    %3063 = vmatpush1.msra.mxu0 0.0
    %3064 = vmatprep.subr.mxu0 0.0
    %3065 = vmatpush1.msra.mxu0 0.0
    %3066 = vmatprep.subr.mxu0 0.0
    %3067 = vmatpush1.msra.mxu0 0.0
    %3068 = vmatprep.subr.mxu0 0.0
    %3069 = vmatpush1.msra.mxu0 0.0
    %3070 = vmatprep.mubr.f32.mxu0 0.0
    %3071 = vmatmul.mubr.f32.gmra.mrb[0].mxu0 %v2932
    %v3072 = vpop.f32.mrb[0].mxu0
    %v3073 = vadd.f32 0.0, %v3072
    %v3074 = vpop.f32.mrb[0].mxu0
    %3075 = vdwg.mxu0
    %v3076 = vld [vmem:[#allocation3] sm:$0xff]
    %v3077 = vld [vmem:[#allocation3 + $0x8] sm:$0xff]
    %v3078 = vld [vmem:[#allocation3 + $0x10] sm:$0xff]
    %v3079 = vadd.f32 %v3076, %v3002
    %v3080 = vxor.u32 %v3079, 2147483648
    %v3081 = vmul.f32 %v3080, 1.442695
    %v3082 = vpow.pop %v3081
    %v3083 = vadd.f32 %v3082, 1.0
    %v3084 = vrcp.pop %v3083
    %v3085 = vmul.f32 1.0, %v3084
    %v3086 = vadd.f32 %v3077, %v3004
    %v3087 = vxor.u32 %v3086, 2147483648
    %v3088 = vmul.f32 %v3087, 1.442695
    %v3089 = vpow.pop %v3088
    %v3090 = vadd.f32 %v3089, 1.0
    %v3091 = vrcp.pop %v3090
    %v3092 = vmul.f32 1.0, %v3091
    %v3093 = vadd.f32 %v3073, %v2093
    %v3094 = vmul.f32 %v3085, %v3093
    %v3095 = vadd.f32 %v3078, %v3094
    %v3096 = vtanh.pop %v3095
    %v3097 = vsub.f32 1.0, %v3092
    %v3098 = vmul.f32 %v3097, %v3096
    %v3099 = vmul.f32 %v3092, %v2932
    %v3100 = vadd.f32 %v3098, %v3099
    %s3101 = scalar_lea.vmem [#allocation5], 40
    %3102 = vst [vmem:[%s3101] sm:$0xff] %v3100
    %3103 = vmatprep.subr.mxu0 %v2041
    %3104 = vmatpush1.msra.mxu0 %v2040
    %3105 = vmatprep.subr.mxu0 %v2044
    %3106 = vmatpush1.msra.mxu0 %v2043
    %3107 = vmatprep.subr.mxu0 %v2047
    %3108 = vmatpush1.msra.mxu0 %v2046
    %3109 = vmatprep.subr.mxu0 %v2050
    %3110 = vmatpush1.msra.mxu0 %v2049
    %3111 = vmatprep.subr.mxu0 %v2053
    %3112 = vmatpush1.msra.mxu0 %v2052
    %3113 = vmatprep.subr.mxu0 %v2056
    %3114 = vmatpush1.msra.mxu0 %v2055
    %3115 = vmatprep.subr.mxu0 %v2059
    %3116 = vmatpush1.msra.mxu0 %v2058
    %3117 = vmatprep.subr.mxu0 %v2062
    %3118 = vmatpush1.msra.mxu0 %v2061
    %3119 = vmatprep.subr.mxu0 %v2065
    %3120 = vmatpush1.msra.mxu0 %v2064
    %3121 = vmatprep.subr.mxu0 %v2068
    %3122 = vmatpush1.msra.mxu0 %v2067
    %3123 = vmatprep.subr.mxu0 %v2071
    %3124 = vmatpush1.msra.mxu0 %v2070
    %3125 = vmatprep.subr.mxu0 %v2074
    %3126 = vmatpush1.msra.mxu0 %v2073
    %3127 = vmatprep.subr.mxu0 %v2077
    %3128 = vmatpush1.msra.mxu0 %v2076
    %3129 = vmatprep.subr.mxu0 %v2080
    %3130 = vmatpush1.msra.mxu0 %v2079
    %3131 = vmatprep.subr.mxu0 %v2083
    %3132 = vmatpush1.msra.mxu0 %v2082
    %3133 = vmatprep.subr.mxu0 %v2086
    %3134 = vmatpush1.msra.mxu0 %v2085
    %3135 = vmatprep.subr.mxu0 0.0
    %3136 = vmatpush1.msra.mxu0 0.0
    %3137 = vmatprep.subr.mxu0 0.0
    %3138 = vmatpush1.msra.mxu0 0.0
    %3139 = vmatprep.subr.mxu0 0.0
    %3140 = vmatpush1.msra.mxu0 0.0
    %3141 = vmatprep.subr.mxu0 0.0
    %3142 = vmatpush1.msra.mxu0 0.0
    %3143 = vmatprep.subr.mxu0 0.0
    %3144 = vmatpush1.msra.mxu0 0.0
    %3145 = vmatprep.subr.mxu0 0.0
    %3146 = vmatpush1.msra.mxu0 0.0
    %3147 = vmatprep.subr.mxu0 0.0
    %3148 = vmatpush1.msra.mxu0 0.0
    %3149 = vmatprep.subr.mxu0 0.0
    %3150 = vmatpush1.msra.mxu0 0.0
    %3151 = vmatprep.subr.mxu0 0.0
    %3152 = vmatpush1.msra.mxu0 0.0
    %3153 = vmatprep.subr.mxu0 0.0
    %3154 = vmatpush1.msra.mxu0 0.0
    %3155 = vmatprep.subr.mxu0 0.0
    %3156 = vmatpush1.msra.mxu0 0.0
    %3157 = vmatprep.subr.mxu0 0.0
    %3158 = vmatpush1.msra.mxu0 0.0
    %3159 = vmatprep.subr.mxu0 0.0
    %3160 = vmatpush1.msra.mxu0 0.0
    %3161 = vmatprep.subr.mxu0 0.0
    %3162 = vmatpush1.msra.mxu0 0.0
    %3163 = vmatprep.subr.mxu0 0.0
    %3164 = vmatpush1.msra.mxu0 0.0
    %3165 = vmatprep.subr.mxu0 0.0
    %3166 = vmatpush1.msra.mxu0 0.0
    %3167 = vmatprep.mubr.f32.mxu0 0.0
    %3168 = vmatmul.mubr.f32.gmra.mrb[0].mxu0 %v3100
    %v3169 = vpop.f32.mrb[0].mxu0
    %v3170 = vadd.f32 0.0, %v3169
    %v3171 = vpop.f32.mrb[0].mxu0
    %v3172 = vadd.f32 0.0, %v3171
    %3173 = vdwg.mxu0
    %3174 = vmatprep.subr.mxu0 0.0
    %3175 = vmatpush1.msra.mxu0 %v2042
    %3176 = vmatprep.subr.mxu0 0.0
    %3177 = vmatpush1.msra.mxu0 %v2045
    %3178 = vmatprep.subr.mxu0 0.0
    %3179 = vmatpush1.msra.mxu0 %v2048
    %3180 = vmatprep.subr.mxu0 0.0
    %3181 = vmatpush1.msra.mxu0 %v2051
    %3182 = vmatprep.subr.mxu0 0.0
    %3183 = vmatpush1.msra.mxu0 %v2054
    %3184 = vmatprep.subr.mxu0 0.0
    %3185 = vmatpush1.msra.mxu0 %v2057
    %3186 = vmatprep.subr.mxu0 0.0
    %3187 = vmatpush1.msra.mxu0 %v2060
    %3188 = vmatprep.subr.mxu0 0.0
    %3189 = vmatpush1.msra.mxu0 %v2063
    %3190 = vmatprep.subr.mxu0 0.0
    %3191 = vmatpush1.msra.mxu0 %v2066
    %3192 = vmatprep.subr.mxu0 0.0
    %3193 = vmatpush1.msra.mxu0 %v2069
    %3194 = vmatprep.subr.mxu0 0.0
    %3195 = vmatpush1.msra.mxu0 %v2072
    %3196 = vmatprep.subr.mxu0 0.0
    %3197 = vmatpush1.msra.mxu0 %v2075
    %3198 = vmatprep.subr.mxu0 0.0
    %3199 = vmatpush1.msra.mxu0 %v2078
    %3200 = vmatprep.subr.mxu0 0.0
    %3201 = vmatpush1.msra.mxu0 %v2081
    %3202 = vmatprep.subr.mxu0 0.0
    %3203 = vmatpush1.msra.mxu0 %v2084
    %3204 = vmatprep.subr.mxu0 0.0
    %3205 = vmatpush1.msra.mxu0 %v2087
    %3206 = vmatprep.subr.mxu0 0.0
    %3207 = vmatpush1.msra.mxu0 0.0
    %3208 = vmatprep.subr.mxu0 0.0
    %3209 = vmatpush1.msra.mxu0 0.0
    %3210 = vmatprep.subr.mxu0 0.0
    %3211 = vmatpush1.msra.mxu0 0.0
    %3212 = vmatprep.subr.mxu0 0.0
    %3213 = vmatpush1.msra.mxu0 0.0
    %3214 = vmatprep.subr.mxu0 0.0
    %3215 = vmatpush1.msra.mxu0 0.0
    %3216 = vmatprep.subr.mxu0 0.0
    %3217 = vmatpush1.msra.mxu0 0.0
    %3218 = vmatprep.subr.mxu0 0.0
    %3219 = vmatpush1.msra.mxu0 0.0
    %3220 = vmatprep.subr.mxu0 0.0
    %3221 = vmatpush1.msra.mxu0 0.0
    %3222 = vmatprep.subr.mxu0 0.0
    %3223 = vmatpush1.msra.mxu0 0.0
    %3224 = vmatprep.subr.mxu0 0.0
    %3225 = vmatpush1.msra.mxu0 0.0
    %3226 = vmatprep.subr.mxu0 0.0
    %3227 = vmatpush1.msra.mxu0 0.0
    %3228 = vmatprep.subr.mxu0 0.0
    %3229 = vmatpush1.msra.mxu0 0.0
    %3230 = vmatprep.subr.mxu0 0.0
    %3231 = vmatpush1.msra.mxu0 0.0
    %3232 = vmatprep.subr.mxu0 0.0
    %3233 = vmatpush1.msra.mxu0 0.0
    %3234 = vmatprep.subr.mxu0 0.0
    %3235 = vmatpush1.msra.mxu0 0.0
    %3236 = vmatprep.subr.mxu0 0.0
    %3237 = vmatpush1.msra.mxu0 0.0
    %3238 = vmatprep.mubr.f32.mxu0 0.0
    %3239 = vmatmul.mubr.f32.gmra.mrb[0].mxu0 %v3100
    %v3240 = vpop.f32.mrb[0].mxu0
    %v3241 = vadd.f32 0.0, %v3240
    %v3242 = vpop.f32.mrb[0].mxu0
    %3243 = vdwg.mxu0
    %v3244 = vld [vmem:[#allocation3] sm:$0xff]
    %v3245 = vld [vmem:[#allocation3 + $0x8] sm:$0xff]
    %v3246 = vld [vmem:[#allocation3 + $0x10] sm:$0xff]
    %v3247 = vadd.f32 %v3244, %v3170
    %v3248 = vxor.u32 %v3247, 2147483648
    %v3249 = vmul.f32 %v3248, 1.442695
    %v3250 = vpow.pop %v3249
    %v3251 = vadd.f32 %v3250, 1.0
    %v3252 = vrcp.pop %v3251
    %v3253 = vmul.f32 1.0, %v3252
    %v3254 = vadd.f32 %v3245, %v3172
    %v3255 = vxor.u32 %v3254, 2147483648
    %v3256 = vmul.f32 %v3255, 1.442695
    %v3257 = vpow.pop %v3256
    %v3258 = vadd.f32 %v3257, 1.0
    %v3259 = vrcp.pop %v3258
    %v3260 = vmul.f32 1.0, %v3259
    %v3261 = vadd.f32 %v3241, %v2093
    %v3262 = vmul.f32 %v3253, %v3261
    %v3263 = vadd.f32 %v3246, %v3262
    %v3264 = vtanh.pop %v3263
    %v3265 = vsub.f32 1.0, %v3260
    %v3266 = vmul.f32 %v3265, %v3264
    %v3267 = vmul.f32 %v3260, %v3100
    %v3268 = vadd.f32 %v3266, %v3267
    %s3269 = scalar_lea.vmem [#allocation5], 48
    %3270 = vst [vmem:[%s3269] sm:$0xff] %v3268
    %3271 = vmatprep.subr.mxu0 %v2041
    %3272 = vmatpush1.msra.mxu0 %v2040
    %3273 = vmatprep.subr.mxu0 %v2044
    %3274 = vmatpush1.msra.mxu0 %v2043
    %3275 = vmatprep.subr.mxu0 %v2047
    %3276 = vmatpush1.msra.mxu0 %v2046
    %3277 = vmatprep.subr.mxu0 %v2050
    %3278 = vmatpush1.msra.mxu0 %v2049
    %3279 = vmatprep.subr.mxu0 %v2053
    %3280 = vmatpush1.msra.mxu0 %v2052
    %3281 = vmatprep.subr.mxu0 %v2056
    %3282 = vmatpush1.msra.mxu0 %v2055
    %3283 = vmatprep.subr.mxu0 %v2059
    %3284 = vmatpush1.msra.mxu0 %v2058
    %3285 = vmatprep.subr.mxu0 %v2062
    %3286 = vmatpush1.msra.mxu0 %v2061
    %3287 = vmatprep.subr.mxu0 %v2065
    %3288 = vmatpush1.msra.mxu0 %v2064
    %3289 = vmatprep.subr.mxu0 %v2068
    %3290 = vmatpush1.msra.mxu0 %v2067
    %3291 = vmatprep.subr.mxu0 %v2071
    %3292 = vmatpush1.msra.mxu0 %v2070
    %3293 = vmatprep.subr.mxu0 %v2074
    %3294 = vmatpush1.msra.mxu0 %v2073
    %3295 = vmatprep.subr.mxu0 %v2077
    %3296 = vmatpush1.msra.mxu0 %v2076
    %3297 = vmatprep.subr.mxu0 %v2080
    %3298 = vmatpush1.msra.mxu0 %v2079
    %3299 = vmatprep.subr.mxu0 %v2083
    %3300 = vmatpush1.msra.mxu0 %v2082
    %3301 = vmatprep.subr.mxu0 %v2086
    %3302 = vmatpush1.msra.mxu0 %v2085
    %3303 = vmatprep.subr.mxu0 0.0
    %3304 = vmatpush1.msra.mxu0 0.0
    %3305 = vmatprep.subr.mxu0 0.0
    %3306 = vmatpush1.msra.mxu0 0.0
    %3307 = vmatprep.subr.mxu0 0.0
    %3308 = vmatpush1.msra.mxu0 0.0
    %3309 = vmatprep.subr.mxu0 0.0
    %3310 = vmatpush1.msra.mxu0 0.0
    %3311 = vmatprep.subr.mxu0 0.0
    %3312 = vmatpush1.msra.mxu0 0.0
    %3313 = vmatprep.subr.mxu0 0.0
    %3314 = vmatpush1.msra.mxu0 0.0
    %3315 = vmatprep.subr.mxu0 0.0
    %3316 = vmatpush1.msra.mxu0 0.0
    %3317 = vmatprep.subr.mxu0 0.0
    %3318 = vmatpush1.msra.mxu0 0.0
    %3319 = vmatprep.subr.mxu0 0.0
    %3320 = vmatpush1.msra.mxu0 0.0
    %3321 = vmatprep.subr.mxu0 0.0
    %3322 = vmatpush1.msra.mxu0 0.0
    %3323 = vmatprep.subr.mxu0 0.0
    %3324 = vmatpush1.msra.mxu0 0.0
    %3325 = vmatprep.subr.mxu0 0.0
    %3326 = vmatpush1.msra.mxu0 0.0
    %3327 = vmatprep.subr.mxu0 0.0
    %3328 = vmatpush1.msra.mxu0 0.0
    %3329 = vmatprep.subr.mxu0 0.0
    %3330 = vmatpush1.msra.mxu0 0.0
    %3331 = vmatprep.subr.mxu0 0.0
    %3332 = vmatpush1.msra.mxu0 0.0
    %3333 = vmatprep.subr.mxu0 0.0
    %3334 = vmatpush1.msra.mxu0 0.0
    %3335 = vmatprep.mubr.f32.mxu0 0.0
    %3336 = vmatmul.mubr.f32.gmra.mrb[0].mxu0 %v3268
    %v3337 = vpop.f32.mrb[0].mxu0
    %v3338 = vadd.f32 0.0, %v3337
    %v3339 = vpop.f32.mrb[0].mxu0
    %v3340 = vadd.f32 0.0, %v3339
    %3341 = vdwg.mxu0
    %3342 = vmatprep.subr.mxu0 0.0
    %3343 = vmatpush1.msra.mxu0 %v2042
    %3344 = vmatprep.subr.mxu0 0.0
    %3345 = vmatpush1.msra.mxu0 %v2045
    %3346 = vmatprep.subr.mxu0 0.0
    %3347 = vmatpush1.msra.mxu0 %v2048
    %3348 = vmatprep.subr.mxu0 0.0
    %3349 = vmatpush1.msra.mxu0 %v2051
    %3350 = vmatprep.subr.mxu0 0.0
    %3351 = vmatpush1.msra.mxu0 %v2054
    %3352 = vmatprep.subr.mxu0 0.0
    %3353 = vmatpush1.msra.mxu0 %v2057
    %3354 = vmatprep.subr.mxu0 0.0
    %3355 = vmatpush1.msra.mxu0 %v2060
    %3356 = vmatprep.subr.mxu0 0.0
    %3357 = vmatpush1.msra.mxu0 %v2063
    %3358 = vmatprep.subr.mxu0 0.0
    %3359 = vmatpush1.msra.mxu0 %v2066
    %3360 = vmatprep.subr.mxu0 0.0
    %3361 = vmatpush1.msra.mxu0 %v2069
    %3362 = vmatprep.subr.mxu0 0.0
    %3363 = vmatpush1.msra.mxu0 %v2072
    %3364 = vmatprep.subr.mxu0 0.0
    %3365 = vmatpush1.msra.mxu0 %v2075
    %3366 = vmatprep.subr.mxu0 0.0
    %3367 = vmatpush1.msra.mxu0 %v2078
    %3368 = vmatprep.subr.mxu0 0.0
    %3369 = vmatpush1.msra.mxu0 %v2081
    %3370 = vmatprep.subr.mxu0 0.0
    %3371 = vmatpush1.msra.mxu0 %v2084
    %3372 = vmatprep.subr.mxu0 0.0
    %3373 = vmatpush1.msra.mxu0 %v2087
    %3374 = vmatprep.subr.mxu0 0.0
    %3375 = vmatpush1.msra.mxu0 0.0
    %3376 = vmatprep.subr.mxu0 0.0
    %3377 = vmatpush1.msra.mxu0 0.0
    %3378 = vmatprep.subr.mxu0 0.0
    %3379 = vmatpush1.msra.mxu0 0.0
    %3380 = vmatprep.subr.mxu0 0.0
    %3381 = vmatpush1.msra.mxu0 0.0
    %3382 = vmatprep.subr.mxu0 0.0
    %3383 = vmatpush1.msra.mxu0 0.0
    %3384 = vmatprep.subr.mxu0 0.0
    %3385 = vmatpush1.msra.mxu0 0.0
    %3386 = vmatprep.subr.mxu0 0.0
    %3387 = vmatpush1.msra.mxu0 0.0
    %3388 = vmatprep.subr.mxu0 0.0
    %3389 = vmatpush1.msra.mxu0 0.0
    %3390 = vmatprep.subr.mxu0 0.0
    %3391 = vmatpush1.msra.mxu0 0.0
    %3392 = vmatprep.subr.mxu0 0.0
    %3393 = vmatpush1.msra.mxu0 0.0
    %3394 = vmatprep.subr.mxu0 0.0
    %3395 = vmatpush1.msra.mxu0 0.0
    %3396 = vmatprep.subr.mxu0 0.0
    %3397 = vmatpush1.msra.mxu0 0.0
    %3398 = vmatprep.subr.mxu0 0.0
    %3399 = vmatpush1.msra.mxu0 0.0
    %3400 = vmatprep.subr.mxu0 0.0
    %3401 = vmatpush1.msra.mxu0 0.0
    %3402 = vmatprep.subr.mxu0 0.0
    %3403 = vmatpush1.msra.mxu0 0.0
    %3404 = vmatprep.subr.mxu0 0.0
    %3405 = vmatpush1.msra.mxu0 0.0
    %3406 = vmatprep.mubr.f32.mxu0 0.0
    %3407 = vmatmul.mubr.f32.gmra.mrb[0].mxu0 %v3268
    %v3408 = vpop.f32.mrb[0].mxu0
    %v3409 = vadd.f32 0.0, %v3408
    %v3410 = vpop.f32.mrb[0].mxu0
    %3411 = vdwg.mxu0
    %v3412 = vld [vmem:[#allocation3] sm:$0xff]
    %v3413 = vld [vmem:[#allocation3 + $0x8] sm:$0xff]
    %v3414 = vld [vmem:[#allocation3 + $0x10] sm:$0xff]
    %v3415 = vadd.f32 %v3412, %v3338
    %v3416 = vxor.u32 %v3415, 2147483648
    %v3417 = vmul.f32 %v3416, 1.442695
    %v3418 = vpow.pop %v3417
    %v3419 = vadd.f32 %v3418, 1.0
    %v3420 = vrcp.pop %v3419
    %v3421 = vmul.f32 1.0, %v3420
    %v3422 = vadd.f32 %v3413, %v3340
    %v3423 = vxor.u32 %v3422, 2147483648
    %v3424 = vmul.f32 %v3423, 1.442695
    %v3425 = vpow.pop %v3424
    %v3426 = vadd.f32 %v3425, 1.0
    %v3427 = vrcp.pop %v3426
    %v3428 = vmul.f32 1.0, %v3427
    %v3429 = vadd.f32 %v3409, %v2093
    %v3430 = vmul.f32 %v3421, %v3429
    %v3431 = vadd.f32 %v3414, %v3430
    %v3432 = vtanh.pop %v3431
    %v3433 = vsub.f32 1.0, %v3428
    %v3434 = vmul.f32 %v3433, %v3432
    %v3435 = vmul.f32 %v3428, %v3268
    %v3436 = vadd.f32 %v3434, %v3435
    %s3437 = scalar_lea.vmem [#allocation5], 56
    %3438 = vst [vmem:[%s3437] sm:$0xff] %v3436
    %3439 = vst [vmem:[#allocation4] sm:$0xff] %v3436
    %v3440 = vld [vmem:[#allocation5] sm:$0xff]
    %v3441 = vld [vmem:[#allocation5 + $0x8] sm:$0xff]
    %v3442 = vld [vmem:[#allocation5 + $0x10] sm:$0xff]
    %v3443 = vld [vmem:[#allocation5 + $0x18] sm:$0xff]
    %v3444 = vld [vmem:[#allocation5 + $0x20] sm:$0xff]
    %v3445 = vld [vmem:[#allocation5 + $0x28] sm:$0xff]
    %v3446 = vld [vmem:[#allocation5 + $0x30] sm:$0xff]
    %v3447 = vld [vmem:[#allocation5 + $0x38] sm:$0xff]
    %v3448 = vld [vmem:[#allocation15] sm:$0xff]
    %v3449 = vld [vmem:[#allocation15 + $0x8] sm:$0xff]
    %v3450 = vld [vmem:[#allocation15 + $0x10] sm:$0xff]
    %v3451 = vld [vmem:[#allocation15 + $0x18] sm:$0xff]
    %v3452 = vld [vmem:[#allocation15 + $0x20] sm:$0xff]
    %v3453 = vld [vmem:[#allocation15 + $0x28] sm:$0xff]
    %v3454 = vld [vmem:[#allocation15 + $0x30] sm:$0xff]
    %v3455 = vld [vmem:[#allocation15 + $0x38] sm:$0xff]
    %v3456 = vld [vmem:[#allocation15 + $0x40] sm:$0xff]
    %v3457 = vld [vmem:[#allocation15 + $0x48] sm:$0xff]
    %v3458 = vld [vmem:[#allocation15 + $0x50] sm:$0xff]
    %v3459 = vld [vmem:[#allocation15 + $0x58] sm:$0xff]
    %v3460 = vld [vmem:[#allocation15 + $0x60] sm:$0xff]
    %v3461 = vld [vmem:[#allocation15 + $0x68] sm:$0xff]
    %v3462 = vld [vmem:[#allocation15 + $0x70] sm:$0xff]
    %v3463 = vld [vmem:[#allocation15 + $0x78] sm:$0xff]
    %v3464 = vld [vmem:[%s10] sm:$0x1]
    %v3466 = vlaneseq
    %v3467 = vshrl.u32 %v3466, 7
    %v3468 = vsub.s32 0, %v3467
    %v3469 = vrot.slane %v3464, %v3468
    %3471 = vmatprep.subr.mxu0 0.0
    %3472 = vmatpush1.msra.mxu0 %v3448
    %3473 = vmatprep.subr.mxu0 0.0
    %3474 = vmatpush1.msra.mxu0 %v3449
    %3475 = vmatprep.subr.mxu0 0.0
    %3476 = vmatpush1.msra.mxu0 %v3450
    %3477 = vmatprep.subr.mxu0 0.0
    %3478 = vmatpush1.msra.mxu0 %v3451
    %3479 = vmatprep.subr.mxu0 0.0
    %3480 = vmatpush1.msra.mxu0 %v3452
    %3481 = vmatprep.subr.mxu0 0.0
    %3482 = vmatpush1.msra.mxu0 %v3453
    %3483 = vmatprep.subr.mxu0 0.0
    %3484 = vmatpush1.msra.mxu0 %v3454
    %3485 = vmatprep.subr.mxu0 0.0
    %3486 = vmatpush1.msra.mxu0 %v3455
    %3487 = vmatprep.subr.mxu0 0.0
    %3488 = vmatpush1.msra.mxu0 %v3456
    %3489 = vmatprep.subr.mxu0 0.0
    %3490 = vmatpush1.msra.mxu0 %v3457
    %3491 = vmatprep.subr.mxu0 0.0
    %3492 = vmatpush1.msra.mxu0 %v3458
    %3493 = vmatprep.subr.mxu0 0.0
    %3494 = vmatpush1.msra.mxu0 %v3459
    %3495 = vmatprep.subr.mxu0 0.0
    %3496 = vmatpush1.msra.mxu0 %v3460
    %3497 = vmatprep.subr.mxu0 0.0
    %3498 = vmatpush1.msra.mxu0 %v3461
    %3499 = vmatprep.subr.mxu0 0.0
    %3500 = vmatpush1.msra.mxu0 %v3462
    %3501 = vmatprep.subr.mxu0 0.0
    %3502 = vmatpush1.msra.mxu0 %v3463
    %3503 = vmatprep.subr.mxu0 0.0
    %3504 = vmatpush1.msra.mxu0 0.0
    %3505 = vmatprep.subr.mxu0 0.0
    %3506 = vmatpush1.msra.mxu0 0.0
    %3507 = vmatprep.subr.mxu0 0.0
    %3508 = vmatpush1.msra.mxu0 0.0
    %3509 = vmatprep.subr.mxu0 0.0
    %3510 = vmatpush1.msra.mxu0 0.0
    %3511 = vmatprep.subr.mxu0 0.0
    %3512 = vmatpush1.msra.mxu0 0.0
    %3513 = vmatprep.subr.mxu0 0.0
    %3514 = vmatpush1.msra.mxu0 0.0
    %3515 = vmatprep.subr.mxu0 0.0
    %3516 = vmatpush1.msra.mxu0 0.0
    %3517 = vmatprep.subr.mxu0 0.0
    %3518 = vmatpush1.msra.mxu0 0.0
    %3519 = vmatprep.subr.mxu0 0.0
    %3520 = vmatpush1.msra.mxu0 0.0
    %3521 = vmatprep.subr.mxu0 0.0
    %3522 = vmatpush1.msra.mxu0 0.0
    %3523 = vmatprep.subr.mxu0 0.0
    %3524 = vmatpush1.msra.mxu0 0.0
    %3525 = vmatprep.subr.mxu0 0.0
    %3526 = vmatpush1.msra.mxu0 0.0
    %3527 = vmatprep.subr.mxu0 0.0
    %3528 = vmatpush1.msra.mxu0 0.0
    %3529 = vmatprep.subr.mxu0 0.0
    %3530 = vmatpush1.msra.mxu0 0.0
    %3531 = vmatprep.subr.mxu0 0.0
    %3532 = vmatpush1.msra.mxu0 0.0
    %3533 = vmatprep.subr.mxu0 0.0
    %3534 = vmatpush1.msra.mxu0 0.0
    %3535 = vmatprep.mubr.f32.mxu0 0.0
    %3536 = vmatmul.mubr.f32.gmra.mrb[0].mxu0 %v3440
    %v3537 = vpop.f32.mrb[0].mxu0
    %v3538 = vadd.f32 %v3469, %v3537
    %v3539 = vpop.f32.mrb[0].mxu0
    %3540 = vmatprep.mubr.f32.mxu0 0.0
    %3541 = vmatmul.mubr.f32.gmra.mrb[0].mxu0 %v3441
    %v3542 = vpop.f32.mrb[0].mxu0
    %v3543 = vadd.f32 %v3469, %v3542
    %v3544 = vpop.f32.mrb[0].mxu0
    %3545 = vmatprep.mubr.f32.mxu0 0.0
    %3546 = vmatmul.mubr.f32.gmra.mrb[0].mxu0 %v3442
    %v3547 = vpop.f32.mrb[0].mxu0
    %v3548 = vadd.f32 %v3469, %v3547
    %v3549 = vpop.f32.mrb[0].mxu0
    %3550 = vmatprep.mubr.f32.mxu0 0.0
    %3551 = vmatmul.mubr.f32.gmra.mrb[0].mxu0 %v3443
    %v3552 = vpop.f32.mrb[0].mxu0
    %v3553 = vadd.f32 %v3469, %v3552
    %v3554 = vpop.f32.mrb[0].mxu0
    %3555 = vmatprep.mubr.f32.mxu0 0.0
    %3556 = vmatmul.mubr.f32.gmra.mrb[0].mxu0 %v3444
    %v3557 = vpop.f32.mrb[0].mxu0
    %v3558 = vadd.f32 %v3469, %v3557
    %v3559 = vpop.f32.mrb[0].mxu0
    %3560 = vmatprep.mubr.f32.mxu0 0.0
    %3561 = vmatmul.mubr.f32.gmra.mrb[0].mxu0 %v3445
    %v3562 = vpop.f32.mrb[0].mxu0
    %v3563 = vadd.f32 %v3469, %v3562
    %v3564 = vpop.f32.mrb[0].mxu0
    %3565 = vmatprep.mubr.f32.mxu0 0.0
    %3566 = vmatmul.mubr.f32.gmra.mrb[0].mxu0 %v3446
    %v3567 = vpop.f32.mrb[0].mxu0
    %v3568 = vadd.f32 %v3469, %v3567
    %v3569 = vpop.f32.mrb[0].mxu0
    %3570 = vmatprep.mubr.f32.mxu0 0.0
    %3571 = vmatmul.mubr.f32.gmra.mrb[0].mxu0 %v3447
    %v3572 = vpop.f32.mrb[0].mxu0
    %v3573 = vadd.f32 %v3469, %v3572
    %v3574 = vpop.f32.mrb[0].mxu0
    %3575 = vdwg.mxu0
    %3576 = vst [vmem:[#allocation17] sm:$0xff] %v3538
    %3577 = vst [vmem:[#allocation17 + $0x8] sm:$0xff] %v3543
    %3578 = vst [vmem:[#allocation17 + $0x10] sm:$0xff] %v3548
    %3579 = vst [vmem:[#allocation17 + $0x18] sm:$0xff] %v3553
    %3580 = vst [vmem:[#allocation17 + $0x20] sm:$0xff] %v3558
    %3581 = vst [vmem:[#allocation17 + $0x28] sm:$0xff] %v3563
    %3582 = vst [vmem:[#allocation17 + $0x30] sm:$0xff] %v3568
    %3583 = vst [vmem:[#allocation17 + $0x38] sm:$0xff] %v3573
    // Predicated region
    $region74: #{tpu_custom_call.1} parent=1 // pred_check
      _
    $region75: #{tpu_custom_call.1} parent=1 // pred_check_branch
      %3585 = sbr.rel (0) target = $region77
    $region76: #{tpu_custom_call.1} parent=1 // pred_region
      %s3587 = ssub.s32 1024, 1024
      %3588 = vsyncadd [#allocation8], %s3587
      %s3589 = sshll.u32 [#allocation17], 4
      %s3590 = int_to_ptr.vmem [resolvable:$true] %s3589
      %3595 = dma.vmem_to_hbm [thread:$0]  %s3590, 1024, %s11, [#allocation8], 128, 128, 8
    $region77: #{tpu_custom_call.1} parent=1 // pred_fallthru
      _
    // Predicated region
    $region78: #{tpu_custom_call.1} parent=1 // pred_check
      _
    $region79: #{tpu_custom_call.1} parent=1 // pred_check_branch
      %3597 = sbr.rel (0) target = $region81
    $region80: #{tpu_custom_call.1} parent=1 // pred_region
      %3598 = dma.done [#allocation8], 1024
    $region81: #{tpu_custom_call.1} parent=1 // pred_fallthru
      _
    %3599 = vsyncpa [#allocation7], 1
    %3600 = vsyncpa [#allocation10], 1
    %3601 = vsyncpa [#allocation13], 1
    %3602 = vsyncpa [#allocation16], 1
    %3603 = vsyncpa [#allocation8], 1

</llo_original>
